<compile_context>
chip_gen: v5e
topology: v5e:2x2
jax: 0.10.0
libtpu: 0.0.40
codegen_flags: <defaults>
</compile_context>

<pallas_src>
import jax
import jax.numpy as jnp
from jax import lax
from jax.experimental import pallas as pl
from jax.experimental.pallas import tpu as pltpu

BN_EPS = 1e-5
_HI = lax.Precision.HIGHEST           # reference only
_VMEM_LIMIT = 32 * 1024 * 1024        # safe on v5e/v6e (128 MiB) and v7x (64 MiB)


def _cparams():
    return pltpu.CompilerParams(
        dimension_semantics=("parallel",),
        vmem_limit_bytes=_VMEM_LIMIT,
    )


# ---------------------------------------------------------------- ConvTranspose2d(k=2, s=2)

def _conv_transpose_2x2(x_nhwc, wt, bt):
    """x: (N,H,W,Cin) f32; wt: (Cin,Cout,2,2); bt: (Cout,) -> up (N,2H,2W,Cout) f32."""
    N, H, W, Cin = x_nhwc.shape
    Cout = wt.shape[1]
    # column index = (dy*2 + dx)*Cout + o ; bf16 operands for the MXU
    wm = jnp.transpose(wt, (0, 2, 3, 1)).reshape(Cin, 4 * Cout).astype(jnp.bfloat16)
    bias = jnp.tile(bt, 4)[None, :].astype(jnp.float32)

    def kernel(x_ref, w_ref, b_ref, o_ref):
        w = w_ref[...]
        b = b_ref[...]
        xall = x_ref[...]                                  # (N, 1, W, Cin)
        rows = []
        for n in range(N):                                 # N is small & static
            xr = xall[n, 0].astype(jnp.bfloat16)           # (W, Cin)
            rows.append(jnp.dot(xr, w, preferred_element_type=jnp.float32) + b)
        o_ref[...] = jnp.stack(rows, axis=0)[:, None]      # (N, 1, W, 4*Cout)

    flops = 2 * N * H * W * Cin * 4 * Cout
    bytes_acc = 4 * (N * H * W * Cin + N * H * W * 4 * Cout) + 2 * Cin * 4 * Cout

    up_raw = pl.pallas_call(
        kernel,
        out_shape=jax.ShapeDtypeStruct((N, H, W, 4 * Cout), jnp.float32),
        grid=(H,),
        in_specs=[
            pl.BlockSpec((N, 1, W, Cin), lambda h: (0, h, 0, 0)),
            pl.BlockSpec((Cin, 4 * Cout), lambda h: (0, 0)),
            pl.BlockSpec((1, 4 * Cout), lambda h: (0, 0)),
        ],
        out_specs=pl.BlockSpec((N, 1, W, 4 * Cout), lambda h: (0, h, 0, 0)),
        compiler_params=_cparams(),
        cost_estimate=pl.CostEstimate(flops=flops, transcendentals=0,
                                      bytes_accessed=bytes_acc),
    )(x_nhwc, wm, bias)

    # 2x2 pixel-shuffle of the (dy,dx) column groups -> NHWC upsampled map (XLA glue)
    up = (up_raw.reshape(N, H, W, 2, 2, Cout)
          .transpose(0, 1, 3, 2, 4, 5)
          .reshape(N, 2 * H, 2 * W, Cout))
    return up


# ---------------------------------------------------------------- conv1: fused crop+concat, emits raw h1 + BN moments

def _conv1_concat_moments(up, down, w1, *, crop_dy, crop_dx):
    """3x3 valid conv over concat([up, center_crop(down)], C), tiled over output rows.

    Returns (h1_raw, row_sum, row_sumsq); BN statistics are finished outside.
    """
    N, Hu, Wu, Cu = up.shape
    _, Hd, Wd, Cs = down.shape
    Cout = w1.shape[0]
    Ho, Wo = Hu - 2, Wu - 2

    # split the conv weight into the up-channel and crop-channel column blocks
    w_up = jnp.transpose(w1[:, :Cu], (2, 3, 1, 0)).astype(jnp.bfloat16)   # (3,3,Cu,Cout)
    w_cr = jnp.transpose(w1[:, Cu:], (2, 3, 1, 0)).astype(jnp.bfloat16)   # (3,3,Cs,Cout)

    def kernel(u0, u1, u2, c0, c1, c2, wu_ref, wc_ref, h_ref, s_ref, q_ref):
        wu = wu_ref[...]
        wc = wc_ref[...]
        urows = [u0[...], u1[...], u2[...]]          # each (N, 1, Wu, Cu)
        crows = [c0[...], c1[...], c2[...]]          # each (N, 1, Wd, Cs)
        accs = [jnp.zeros((Wo, Cout), jnp.float32) for _ in range(N)]
        for dy in range(3):
            u = urows[dy].astype(jnp.bfloat16)
            c = crows[dy].astype(jnp.bfloat16)
            for n in range(N):
                un = u[n, 0]                         # (Wu, Cu)
                cn = c[n, 0]                         # (Wd, Cs)
                for dx in range(3):
                    accs[n] += jnp.dot(un[dx:dx + Wo, :], wu[dy, dx],
                                       preferred_element_type=jnp.float32)
                    accs[n] += jnp.dot(cn[crop_dx + dx:crop_dx + dx + Wo, :], wc[dy, dx],
                                       preferred_element_type=jnp.float32)
        h = jnp.stack(accs, axis=0)                  # (N, Wo, Cout) f32
        h_ref[...] = h[:, None]
        s_ref[...] = jnp.sum(h, axis=(0, 1), keepdims=True)          # (1,1,Cout)
        q_ref[...] = jnp.sum(h * h, axis=(0, 1), keepdims=True)

    in_specs = (
        [pl.BlockSpec((N, 1, Wu, Cu), lambda i, d=d: (0, i + d, 0, 0)) for d in range(3)]
        + [pl.BlockSpec((N, 1, Wd, Cs), lambda i, d=d: (0, i + d + crop_dy, 0, 0))
           for d in range(3)]
        + [pl.BlockSpec((3, 3, Cu, Cout), lambda i: (0, 0, 0, 0)),
           pl.BlockSpec((3, 3, Cs, Cout), lambda i: (0, 0, 0, 0))]
    )
    out_specs = (
        pl.BlockSpec((N, 1, Wo, Cout), lambda i: (0, i, 0, 0)),
        pl.BlockSpec((1, 1, Cout), lambda i: (i, 0, 0)),
        pl.BlockSpec((1, 1, Cout), lambda i: (i, 0, 0)),
    )
    out_shape = (
        jax.ShapeDtypeStruct((N, Ho, Wo, Cout), jnp.float32),
        jax.ShapeDtypeStruct((Ho, 1, Cout), jnp.float32),
        jax.ShapeDtypeStruct((Ho, 1, Cout), jnp.float32),
    )
    flops = 2 * N * Ho * Wo * 9 * (Cu + Cs) * Cout
    bytes_acc = 4 * (3 * N * Ho * (Wu * Cu + Wd * Cs) + N * Ho * Wo * Cout)

    return pl.pallas_call(
        kernel,
        out_shape=out_shape,
        grid=(Ho,),
        in_specs=in_specs,
        out_specs=out_specs,
        compiler_params=_cparams(),
        cost_estimate=pl.CostEstimate(flops=flops, transcendentals=0,
                                      bytes_accessed=bytes_acc),
    )(up, up, up, down, down, down, w_up, w_cr)


# ---------------------------------------------------------------- conv2: BN1+ReLU fused into the input load, emits raw h2 + BN moments

def _conv3x3_bnin_moments(h_in, scale_in, shift_in, w2):
    N, Hi, Wi, Ci = h_in.shape
    Cout = w2.shape[0]
    Ho, Wo = Hi - 2, Wi - 2
    wm = jnp.transpose(w2, (2, 3, 1, 0)).astype(jnp.bfloat16)             # (3,3,Ci,Cout)
    s_in = scale_in.reshape(1, Ci).astype(jnp.float32)
    t_in = shift_in.reshape(1, Ci).astype(jnp.float32)

    def kernel(h0, h1r, h2r, s_ref, t_ref, w_ref, o_ref, ms_ref, mq_ref):
        w = w_ref[...]
        s = s_ref[...]
        t = t_ref[...]
        rows = [h0[...], h1r[...], h2r[...]]         # each (N, 1, Wi, Ci) raw pre-BN
        accs = [jnp.zeros((Wo, Cout), jnp.float32) for _ in range(N)]
        for dy in range(3):
            # fused BatchNorm (affine form) + ReLU on the loaded row, then bf16
            r = jnp.maximum(rows[dy] * s + t, 0.0).astype(jnp.bfloat16)
            for n in range(N):
                rn = r[n, 0]                         # (Wi, Ci)
                for dx in range(3):
                    accs[n] += jnp.dot(rn[dx:dx + Wo, :], w[dy, dx],
                                       preferred_element_type=jnp.float32)
        h = jnp.stack(accs, axis=0)                  # (N, Wo, Cout)
        o_ref[...] = h[:, None]
        ms_ref[...] = jnp.sum(h, axis=(0, 1), keepdims=True)
        mq_ref[...] = jnp.sum(h * h, axis=(0, 1), keepdims=True)

    in_specs = (
        [pl.BlockSpec((N, 1, Wi, Ci), lambda i, d=d: (0, i + d, 0, 0)) for d in range(3)]
        + [pl.BlockSpec((1, Ci), lambda i: (0, 0)),
           pl.BlockSpec((1, Ci), lambda i: (0, 0)),
           pl.BlockSpec((3, 3, Ci, Cout), lambda i: (0, 0, 0, 0))]
    )
    out_specs = (
        pl.BlockSpec((N, 1, Wo, Cout), lambda i: (0, i, 0, 0)),
        pl.BlockSpec((1, 1, Cout), lambda i: (i, 0, 0)),
        pl.BlockSpec((1, 1, Cout), lambda i: (i, 0, 0)),
    )
    out_shape = (
        jax.ShapeDtypeStruct((N, Ho, Wo, Cout), jnp.float32),
        jax.ShapeDtypeStruct((Ho, 1, Cout), jnp.float32),
        jax.ShapeDtypeStruct((Ho, 1, Cout), jnp.float32),
    )
    flops = 2 * N * Ho * Wo * 9 * Ci * Cout
    bytes_acc = 4 * (3 * N * Ho * Wi * Ci + N * Ho * Wo * Cout)

    return pl.pallas_call(
        kernel,
        out_shape=out_shape,
        grid=(Ho,),
        in_specs=in_specs,
        out_specs=out_specs,
        compiler_params=_cparams(),
        cost_estimate=pl.CostEstimate(flops=flops, transcendentals=0,
                                      bytes_accessed=bytes_acc),
    )(h_in, h_in, h_in, s_in, t_in, wm)


# ---------------------------------------------------------------- final BN2 + ReLU (tiled elementwise pass)

def _bn_relu(h_in, scale, shift):
    N, Hh, Wh, C = h_in.shape
    s = scale.reshape(1, C).astype(jnp.float32)
    t = shift.reshape(1, C).astype(jnp.float32)

    def kernel(h_ref, s_ref, t_ref, o_ref):
        o_ref[...] = jnp.maximum(h_ref[...] * s_ref[...] + t_ref[...], 0.0)

    return pl.pallas_call(
        kernel,
        out_shape=jax.ShapeDtypeStruct((N, Hh, Wh, C), jnp.float32),
        grid=(Hh,),
        in_specs=[pl.BlockSpec((N, 1, Wh, C), lambda i: (0, i, 0, 0)),
                  pl.BlockSpec((1, C), lambda i: (0, 0)),
                  pl.BlockSpec((1, C), lambda i: (0, 0))],
        out_specs=pl.BlockSpec((N, 1, Wh, C), lambda i: (0, i, 0, 0)),
        compiler_params=_cparams(),
    )(h_in, s, t)


# ---------------------------------------------------------------- BN finalize (tiny, XLA)

def _bn_affine(rsum, rsumsq, count, gamma, beta):
    mean = jnp.sum(rsum, axis=(0, 1)) / count
    var = jnp.maximum(jnp.sum(rsumsq, axis=(0, 1)) / count - mean * mean, 0.0)
    scale = gamma * lax.rsqrt(var + BN_EPS)
    shift = beta - mean * scale
    return scale, shift


# ---------------------------------------------------------------- forward

def up_forward(x_nchw, down_nchw, params):
    """Forward pass of the `Up` module. Inputs/outputs are NCHW like PyTorch."""
    x = jnp.transpose(x_nchw, (0, 2, 3, 1))        # NHWC
    down = jnp.transpose(down_nchw, (0, 2, 3, 1))  # NHWC
    N = x.shape[0]

    # ConvTranspose2d(k=2, s=2) -> (N, 2H, 2W, Cout)
    up = _conv_transpose_2x2(x, params["wt"], params["bt"])
    Hu, Wu = up.shape[1], up.shape[2]
    Hd, Wd = down.shape[1], down.shape[2]
    crop_dy, crop_dx = (Hd - Hu) // 2, (Wd - Wu) // 2

    # conv1: center-crop + channel-concat fused into the kernel; raw output + moments
    h1_raw, rs1, rq1 = _conv1_concat_moments(up, down, params["w1"],
                                             crop_dy=crop_dy, crop_dx=crop_dx)
    cnt1 = N * h1_raw.shape[1] * h1_raw.shape[2]
    scale1, shift1 = _bn_affine(rs1, rq1, cnt1, params["g1"], params["b1"])

    # conv2 with BN1+ReLU applied on the fly to its input rows; raw output + moments
    h2_raw, rs2, rq2 = _conv3x3_bnin_moments(h1_raw, scale1, shift1, params["w2"])
    cnt2 = N * h2_raw.shape[1] * h2_raw.shape[2]
    scale2, shift2 = _bn_affine(rs2, rq2, cnt2, params["g2"], params["b2"])

    # final BN2 + ReLU
    out = _bn_relu(h2_raw, scale2, shift2)
    return jnp.transpose(out, (0, 3, 1, 2))        # back to NCHW


# ---------------------------------------------------------------- pure-JAX reference (f32, HIGHEST)

def _ref_forward(x, down, params):
    wt, bt = params["wt"], params["bt"]
    y = jnp.einsum("nchw,coab->nohawb", x, wt, precision=_HI)
    N, Co, H, _, W, _ = y.shape
    up = y.reshape(N, Co, 2 * H, 2 * W) + bt[None, :, None, None]
    Hd, Wd = down.shape[2], down.shape[3]
    dy = (Hd - 2 * H) // 2
    dx = (Wd - 2 * W) // 2
    crop = down[:, :, dy:dy + 2 * H, dx:dx + 2 * W]
    cat = jnp.concatenate([up, crop], axis=1)

    def conv_bn_relu(inp, w, g, b):
        h = lax.conv_general_dilated(
            inp, w, (1, 1), "VALID",
            dimension_numbers=("NCHW", "OIHW", "NCHW"), precision=_HI)
        mean = h.mean(axis=(0, 2, 3), keepdims=True)
        var = ((h - mean) ** 2).mean(axis=(0, 2, 3), keepdims=True)
        yh = (h - mean) * lax.rsqrt(var + BN_EPS)
        yh = yh * g[None, :, None, None] + b[None, :, None, None]
        return jnp.maximum(yh, 0.0)

    h1 = conv_bn_relu(cat, params["w1"], params["g1"], params["b1"])
    h2 = conv_bn_relu(h1, params["w2"], params["g2"], params["b2"])
    return h2


# ---------------------------------------------------------------- main

if __name__ == "__main__":
    in_size, out_size = 8, 4
    N, H, W = 2, 8, 8            # x: (N, in_size, H, W)
    Hd = Wd = 2 * H + 4          # skip connection is larger -> gets center-cropped

    key = jax.random.PRNGKey(0)
    k = jax.random.split(key, 10)

    params = {
        "wt": 0.2 * jax.random.normal(k[0], (in_size, out_size, 2, 2), jnp.float32),
        "bt": 0.1 * jax.random.normal(k[1], (out_size,), jnp.float32),
        "w1": 0.2 * jax.random.normal(k[2], (out_size, in_size, 3, 3), jnp.float32),
        "g1": 1.0 + 0.1 * jax.random.normal(k[3], (out_size,), jnp.float32),
        "b1": 0.1 * jax.random.normal(k[4], (out_size,), jnp.float32),
        "w2": 0.2 * jax.random.normal(k[5], (out_size, out_size, 3, 3), jnp.float32),
        "g2": 1.0 + 0.1 * jax.random.normal(k[6], (out_size,), jnp.float32),
        "b2": 0.1 * jax.random.normal(k[7], (out_size,), jnp.float32),
    }

    x = jax.random.normal(k[8], (N, in_size, H, W), jnp.float32)
    # skip connection channels = in_size - out_size so the concat has in_size channels
    down = jax.random.normal(k[9], (N, in_size - out_size, Hd, Wd), jnp.float32)

    out = jax.block_until_ready(jax.jit(up_forward)(x, down, params))
    ref = jax.block_until_ready(_ref_forward(x, down, params))

    assert out.shape == (N, out_size, 2 * H - 4, 2 * W - 4), out.shape
    # bf16 MXU operands (f32 accumulation) vs the f32 HIGHEST reference -> looser tol
    max_err = float(jnp.max(jnp.abs(out - ref)))
    assert max_err < 5e-2, f"mismatch vs reference: {max_err}"

    print("KERNEL_OK")
</pallas_src>

<mosaic_0001>
module attributes {stable_mosaic.version = 11 : i64} {
  func.func @kernel(%arg0: i32, %arg1: memref<2x1x8x8xf32, #tpu.memory_space<vmem>>, %arg2: memref<8x16xbf16, #tpu.memory_space<vmem>>, %arg3: memref<1x16xf32, #tpu.memory_space<vmem>>, %arg4: memref<2x1x8x16xf32, #tpu.memory_space<vmem>>) attributes {dimension_semantics = [#tpu.dimension_semantics<parallel>], iteration_bounds = array<i64: 8>, scalar_prefetch = 0 : i64, scratch_operands = 0 : i64, tpu.core_type = #tpu.core_type<tc>, window_params = [{transform_indices = @transform_0, window_bounds = array<i64: 2, 1, 8, 8>}, {pipeline_mode = #tpu.pipeline_mode<synchronous>, transform_indices = @transform_1, window_bounds = array<i64: 8, 16>}, {pipeline_mode = #tpu.pipeline_mode<synchronous>, transform_indices = @transform_2, window_bounds = array<i64: 1, 16>}, {transform_indices = @transform_3, window_bounds = array<i64: 2, 1, 8, 16>}]} {
    %c0 = arith.constant 0 : index
    %c0_0 = arith.constant 0 : index
    %0 = vector.load %arg2[%c0, %c0_0] : memref<8x16xbf16, #tpu.memory_space<vmem>>, vector<8x16xbf16>
    %c0_1 = arith.constant 0 : index
    %c0_2 = arith.constant 0 : index
    %1 = vector.load %arg3[%c0_1, %c0_2] : memref<1x16xf32, #tpu.memory_space<vmem>>, vector<1x16xf32>
    %c0_3 = arith.constant 0 : index
    %c0_4 = arith.constant 0 : index
    %c0_5 = arith.constant 0 : index
    %c0_6 = arith.constant 0 : index
    %2 = vector.load %arg1[%c0_3, %c0_4, %c0_5, %c0_6] : memref<2x1x8x8xf32, #tpu.memory_space<vmem>>, vector<2x1x8x8xf32>
    %3 = vector.extract_strided_slice %2 {offsets = [0, 0, 0, 0], sizes = [1, 1, 8, 8], strides = [1, 1, 1, 1]} : vector<2x1x8x8xf32> to vector<1x1x8x8xf32>
    %4 = vector.shape_cast %3 : vector<1x1x8x8xf32> to vector<8x8xf32>
    %5 = arith.truncf %4 : vector<8x8xf32> to vector<8x8xbf16>
    %cst = arith.constant dense<0.000000e+00> : vector<8x16xf32>
    %6 = tpu.matmul %5, %0, %cst {dimension_numbers = #tpu.dot_dimension_numbers<[1], [0], [0], [1], [0, 0, 1, 1], [], []>} : vector<8x8xbf16>, vector<8x16xbf16>, vector<8x16xf32> -> vector<8x16xf32>
    %7 = vector.broadcast %1 : vector<1x16xf32> to vector<8x16xf32>
    %8 = arith.addf %6, %7 : vector<8x16xf32>
    %9 = vector.extract_strided_slice %2 {offsets = [1, 0, 0, 0], sizes = [1, 1, 8, 8], strides = [1, 1, 1, 1]} : vector<2x1x8x8xf32> to vector<1x1x8x8xf32>
    %10 = vector.shape_cast %9 : vector<1x1x8x8xf32> to vector<8x8xf32>
    %11 = arith.truncf %10 : vector<8x8xf32> to vector<8x8xbf16>
    %cst_7 = arith.constant dense<0.000000e+00> : vector<8x16xf32>
    %12 = tpu.matmul %11, %0, %cst_7 {dimension_numbers = #tpu.dot_dimension_numbers<[1], [0], [0], [1], [0, 0, 1, 1], [], []>} : vector<8x8xbf16>, vector<8x16xbf16>, vector<8x16xf32> -> vector<8x16xf32>
    %13 = vector.broadcast %1 : vector<1x16xf32> to vector<8x16xf32>
    %14 = arith.addf %12, %13 : vector<8x16xf32>
    %15 = vector.shape_cast %8 : vector<8x16xf32> to vector<1x8x16xf32>
    %16 = vector.shape_cast %14 : vector<8x16xf32> to vector<1x8x16xf32>
    %17 = tpu.concatenate %15, %16 in 0 : vector<1x8x16xf32>, vector<1x8x16xf32> -> vector<2x8x16xf32>
    %18 = vector.shape_cast %17 : vector<2x8x16xf32> to vector<2x1x8x16xf32>
    %c0_8 = arith.constant 0 : index
    %c0_9 = arith.constant 0 : index
    %c0_10 = arith.constant 0 : index
    %c0_11 = arith.constant 0 : index
    %19 = vector.load %arg4[%c0_8, %c0_9, %c0_10, %c0_11] : memref<2x1x8x16xf32, #tpu.memory_space<vmem>>, vector<2x1x8x16xf32>
    tpu.vector_store %arg4[%c0_8, %c0_9, %c0_10, %c0_11], %18 {strides = array<i32>} : memref<2x1x8x16xf32, #tpu.memory_space<vmem>>, vector<2x1x8x16xf32>,
    return
  }
  func.func @transform_0(%arg0: i32) -> (i32, i32, i32, i32) {
    %c0_i32 = arith.constant 0 : i32
    %c0_i32_0 = arith.constant 0 : i32
    %c0_i32_1 = arith.constant 0 : i32
    %c0_i32_2 = arith.constant 0 : i32
    return %c0_i32, %arg0, %c0_i32_0, %c0_i32_1 : i32, i32, i32, i32
  }
  func.func @transform_1(%arg0: i32) -> (i32, i32) {
    %c0_i32 = arith.constant 0 : i32
    %c0_i32_0 = arith.constant 0 : i32
    %c0_i32_1 = arith.constant 0 : i32
    return %c0_i32, %c0_i32_0 : i32, i32
  }
  func.func @transform_2(%arg0: i32) -> (i32, i32) {
    %c0_i32 = arith.constant 0 : i32
    %c0_i32_0 = arith.constant 0 : i32
    %c0_i32_1 = arith.constant 0 : i32
    return %c0_i32, %c0_i32_0 : i32, i32
  }
  func.func @transform_3(%arg0: i32) -> (i32, i32, i32, i32) {
    %c0_i32 = arith.constant 0 : i32
    %c0_i32_0 = arith.constant 0 : i32
    %c0_i32_1 = arith.constant 0 : i32
    %c0_i32_2 = arith.constant 0 : i32
    return %c0_i32, %arg0, %c0_i32_0, %c0_i32_1 : i32, i32, i32, i32
  }
}

module attributes {stable_mosaic.version = 11 : i64} {
  func.func @kernel(%arg0: i32, %arg1: memref<2x1x16x4xf32, #tpu.memory_space<vmem>>, %arg2: memref<2x1x16x4xf32, #tpu.memory_space<vmem>>, %arg3: memref<2x1x16x4xf32, #tpu.memory_space<vmem>>, %arg4: memref<2x1x20x4xf32, #tpu.memory_space<vmem>>, %arg5: memref<2x1x20x4xf32, #tpu.memory_space<vmem>>, %arg6: memref<2x1x20x4xf32, #tpu.memory_space<vmem>>, %arg7: memref<3x3x4x4xbf16, #tpu.memory_space<vmem>>, %arg8: memref<3x3x4x4xbf16, #tpu.memory_space<vmem>>, %arg9: memref<2x1x14x4xf32, #tpu.memory_space<vmem>>, %arg10: memref<1x1x4xf32, #tpu.memory_space<vmem>>, %arg11: memref<1x1x4xf32, #tpu.memory_space<vmem>>) attributes {dimension_semantics = [#tpu.dimension_semantics<parallel>], iteration_bounds = array<i64: 14>, scalar_prefetch = 0 : i64, scratch_operands = 0 : i64, tpu.core_type = #tpu.core_type<tc>, window_params = [{transform_indices = @transform_0, window_bounds = array<i64: 2, 1, 16, 4>}, {transform_indices = @transform_1, window_bounds = array<i64: 2, 1, 16, 4>}, {transform_indices = @transform_2, window_bounds = array<i64: 2, 1, 16, 4>}, {transform_indices = @transform_3, window_bounds = array<i64: 2, 1, 20, 4>}, {transform_indices = @transform_4, window_bounds = array<i64: 2, 1, 20, 4>}, {transform_indices = @transform_5, window_bounds = array<i64: 2, 1, 20, 4>}, {pipeline_mode = #tpu.pipeline_mode<synchronous>, transform_indices = @transform_6, window_bounds = array<i64: 3, 3, 4, 4>}, {pipeline_mode = #tpu.pipeline_mode<synchronous>, transform_indices = @transform_7, window_bounds = array<i64: 3, 3, 4, 4>}, {transform_indices = @transform_8, window_bounds = array<i64: 2, 1, 14, 4>}, {transform_indices = @transform_9, window_bounds = array<i64: 1, 1, 4>}, {transform_indices = @transform_10, window_bounds = array<i64: 1, 1, 4>}]} {
    %c0 = arith.constant 0 : index
    %c0_0 = arith.constant 0 : index
    %c0_1 = arith.constant 0 : index
    %c0_2 = arith.constant 0 : index
    %0 = vector.load %arg7[%c0, %c0_0, %c0_1, %c0_2] : memref<3x3x4x4xbf16, #tpu.memory_space<vmem>>, vector<3x3x4x4xbf16>
    %c0_3 = arith.constant 0 : index
    %c0_4 = arith.constant 0 : index
    %c0_5 = arith.constant 0 : index
    %c0_6 = arith.constant 0 : index
    %1 = vector.load %arg8[%c0_3, %c0_4, %c0_5, %c0_6] : memref<3x3x4x4xbf16, #tpu.memory_space<vmem>>, vector<3x3x4x4xbf16>
    %c0_7 = arith.constant 0 : index
    %c0_8 = arith.constant 0 : index
    %c0_9 = arith.constant 0 : index
    %c0_10 = arith.constant 0 : index
    %2 = vector.load %arg1[%c0_7, %c0_8, %c0_9, %c0_10] : memref<2x1x16x4xf32, #tpu.memory_space<vmem>>, vector<2x1x16x4xf32>
    %c0_11 = arith.constant 0 : index
    %c0_12 = arith.constant 0 : index
    %c0_13 = arith.constant 0 : index
    %c0_14 = arith.constant 0 : index
    %3 = vector.load %arg2[%c0_11, %c0_12, %c0_13, %c0_14] : memref<2x1x16x4xf32, #tpu.memory_space<vmem>>, vector<2x1x16x4xf32>
    %c0_15 = arith.constant 0 : index
    %c0_16 = arith.constant 0 : index
    %c0_17 = arith.constant 0 : index
    %c0_18 = arith.constant 0 : index
    %4 = vector.load %arg3[%c0_15, %c0_16, %c0_17, %c0_18] : memref<2x1x16x4xf32, #tpu.memory_space<vmem>>, vector<2x1x16x4xf32>
    %c0_19 = arith.constant 0 : index
    %c0_20 = arith.constant 0 : index
    %c0_21 = arith.constant 0 : index
    %c0_22 = arith.constant 0 : index
    %5 = vector.load %arg4[%c0_19, %c0_20, %c0_21, %c0_22] : memref<2x1x20x4xf32, #tpu.memory_space<vmem>>, vector<2x1x20x4xf32>
    %c0_23 = arith.constant 0 : index
    %c0_24 = arith.constant 0 : index
    %c0_25 = arith.constant 0 : index
    %c0_26 = arith.constant 0 : index
    %6 = vector.load %arg5[%c0_23, %c0_24, %c0_25, %c0_26] : memref<2x1x20x4xf32, #tpu.memory_space<vmem>>, vector<2x1x20x4xf32>
    %c0_27 = arith.constant 0 : index
    %c0_28 = arith.constant 0 : index
    %c0_29 = arith.constant 0 : index
    %c0_30 = arith.constant 0 : index
    %7 = vector.load %arg6[%c0_27, %c0_28, %c0_29, %c0_30] : memref<2x1x20x4xf32, #tpu.memory_space<vmem>>, vector<2x1x20x4xf32>
    %cst = arith.constant 0.000000e+00 : f32
    %8 = vector.broadcast %cst : f32 to vector<14x4xf32>
    %cst_31 = arith.constant 0.000000e+00 : f32
    %9 = vector.broadcast %cst_31 : f32 to vector<14x4xf32>
    %10 = arith.truncf %2 : vector<2x1x16x4xf32> to vector<2x1x16x4xbf16>
    %11 = arith.truncf %5 : vector<2x1x20x4xf32> to vector<2x1x20x4xbf16>
    %12 = vector.extract_strided_slice %10 {offsets = [0, 0, 0, 0], sizes = [1, 1, 16, 4], strides = [1, 1, 1, 1]} : vector<2x1x16x4xbf16> to vector<1x1x16x4xbf16>
    %13 = vector.shape_cast %12 : vector<1x1x16x4xbf16> to vector<16x4xbf16>
    %14 = vector.extract_strided_slice %11 {offsets = [0, 0, 0, 0], sizes = [1, 1, 20, 4], strides = [1, 1, 1, 1]} : vector<2x1x20x4xbf16> to vector<1x1x20x4xbf16>
    %15 = vector.shape_cast %14 : vector<1x1x20x4xbf16> to vector<20x4xbf16>
    %16 = vector.extract_strided_slice %13 {offsets = [0, 0], sizes = [14, 4], strides = [1, 1]} : vector<16x4xbf16> to vector<14x4xbf16>
    %17 = vector.extract_strided_slice %0 {offsets = [0, 0, 0, 0], sizes = [1, 1, 4, 4], strides = [1, 1, 1, 1]} : vector<3x3x4x4xbf16> to vector<1x1x4x4xbf16>
    %18 = vector.shape_cast %17 : vector<1x1x4x4xbf16> to vector<4x4xbf16>
    %cst_32 = arith.constant dense<0.000000e+00> : vector<14x4xf32>
    %19 = tpu.matmul %16, %18, %cst_32 {dimension_numbers = #tpu.dot_dimension_numbers<[1], [0], [0], [1], [0, 0, 1, 1], [], []>} : vector<14x4xbf16>, vector<4x4xbf16>, vector<14x4xf32> -> vector<14x4xf32>
    %20 = arith.addf %8, %19 : vector<14x4xf32>
    %21 = vector.extract_strided_slice %15 {offsets = [2, 0], sizes = [14, 4], strides = [1, 1]} : vector<20x4xbf16> to vector<14x4xbf16>
    %22 = vector.extract_strided_slice %1 {offsets = [0, 0, 0, 0], sizes = [1, 1, 4, 4], strides = [1, 1, 1, 1]} : vector<3x3x4x4xbf16> to vector<1x1x4x4xbf16>
    %23 = vector.shape_cast %22 : vector<1x1x4x4xbf16> to vector<4x4xbf16>
    %cst_33 = arith.constant dense<0.000000e+00> : vector<14x4xf32>
    %24 = tpu.matmul %21, %23, %cst_33 {dimension_numbers = #tpu.dot_dimension_numbers<[1], [0], [0], [1], [0, 0, 1, 1], [], []>} : vector<14x4xbf16>, vector<4x4xbf16>, vector<14x4xf32> -> vector<14x4xf32>
    %25 = arith.addf %20, %24 : vector<14x4xf32>
    %26 = vector.extract_strided_slice %13 {offsets = [1, 0], sizes = [14, 4], strides = [1, 1]} : vector<16x4xbf16> to vector<14x4xbf16>
    %27 = vector.extract_strided_slice %0 {offsets = [0, 1, 0, 0], sizes = [1, 1, 4, 4], strides = [1, 1, 1, 1]} : vector<3x3x4x4xbf16> to vector<1x1x4x4xbf16>
    %28 = vector.shape_cast %27 : vector<1x1x4x4xbf16> to vector<4x4xbf16>
    %cst_34 = arith.constant dense<0.000000e+00> : vector<14x4xf32>
    %29 = tpu.matmul %26, %28, %cst_34 {dimension_numbers = #tpu.dot_dimension_numbers<[1], [0], [0], [1], [0, 0, 1, 1], [], []>} : vector<14x4xbf16>, vector<4x4xbf16>, vector<14x4xf32> -> vector<14x4xf32>
    %30 = arith.addf %25, %29 : vector<14x4xf32>
    %31 = vector.extract_strided_slice %15 {offsets = [3, 0], sizes = [14, 4], strides = [1, 1]} : vector<20x4xbf16> to vector<14x4xbf16>
    %32 = vector.extract_strided_slice %1 {offsets = [0, 1, 0, 0], sizes = [1, 1, 4, 4], strides = [1, 1, 1, 1]} : vector<3x3x4x4xbf16> to vector<1x1x4x4xbf16>
    %33 = vector.shape_cast %32 : vector<1x1x4x4xbf16> to vector<4x4xbf16>
    %cst_35 = arith.constant dense<0.000000e+00> : vector<14x4xf32>
    %34 = tpu.matmul %31, %33, %cst_35 {dimension_numbers = #tpu.dot_dimension_numbers<[1], [0], [0], [1], [0, 0, 1, 1], [], []>} : vector<14x4xbf16>, vector<4x4xbf16>, vector<14x4xf32> -> vector<14x4xf32>
    %35 = arith.addf %30, %34 : vector<14x4xf32>
    %36 = vector.extract_strided_slice %13 {offsets = [2, 0], sizes = [14, 4], strides = [1, 1]} : vector<16x4xbf16> to vector<14x4xbf16>
    %37 = vector.extract_strided_slice %0 {offsets = [0, 2, 0, 0], sizes = [1, 1, 4, 4], strides = [1, 1, 1, 1]} : vector<3x3x4x4xbf16> to vector<1x1x4x4xbf16>
    %38 = vector.shape_cast %37 : vector<1x1x4x4xbf16> to vector<4x4xbf16>
    %cst_36 = arith.constant dense<0.000000e+00> : vector<14x4xf32>
    %39 = tpu.matmul %36, %38, %cst_36 {dimension_numbers = #tpu.dot_dimension_numbers<[1], [0], [0], [1], [0, 0, 1, 1], [], []>} : vector<14x4xbf16>, vector<4x4xbf16>, vector<14x4xf32> -> vector<14x4xf32>
    %40 = arith.addf %35, %39 : vector<14x4xf32>
    %41 = vector.extract_strided_slice %15 {offsets = [4, 0], sizes = [14, 4], strides = [1, 1]} : vector<20x4xbf16> to vector<14x4xbf16>
    %42 = vector.extract_strided_slice %1 {offsets = [0, 2, 0, 0], sizes = [1, 1, 4, 4], strides = [1, 1, 1, 1]} : vector<3x3x4x4xbf16> to vector<1x1x4x4xbf16>
    %43 = vector.shape_cast %42 : vector<1x1x4x4xbf16> to vector<4x4xbf16>
    %cst_37 = arith.constant dense<0.000000e+00> : vector<14x4xf32>
    %44 = tpu.matmul %41, %43, %cst_37 {dimension_numbers = #tpu.dot_dimension_numbers<[1], [0], [0], [1], [0, 0, 1, 1], [], []>} : vector<14x4xbf16>, vector<4x4xbf16>, vector<14x4xf32> -> vector<14x4xf32>
    %45 = arith.addf %40, %44 : vector<14x4xf32>
    %46 = vector.extract_strided_slice %10 {offsets = [1, 0, 0, 0], sizes = [1, 1, 16, 4], strides = [1, 1, 1, 1]} : vector<2x1x16x4xbf16> to vector<1x1x16x4xbf16>
    %47 = vector.shape_cast %46 : vector<1x1x16x4xbf16> to vector<16x4xbf16>
    %48 = vector.extract_strided_slice %11 {offsets = [1, 0, 0, 0], sizes = [1, 1, 20, 4], strides = [1, 1, 1, 1]} : vector<2x1x20x4xbf16> to vector<1x1x20x4xbf16>
    %49 = vector.shape_cast %48 : vector<1x1x20x4xbf16> to vector<20x4xbf16>
    %50 = vector.extract_strided_slice %47 {offsets = [0, 0], sizes = [14, 4], strides = [1, 1]} : vector<16x4xbf16> to vector<14x4xbf16>
    %51 = vector.extract_strided_slice %0 {offsets = [0, 0, 0, 0], sizes = [1, 1, 4, 4], strides = [1, 1, 1, 1]} : vector<3x3x4x4xbf16> to vector<1x1x4x4xbf16>
    %52 = vector.shape_cast %51 : vector<1x1x4x4xbf16> to vector<4x4xbf16>
    %cst_38 = arith.constant dense<0.000000e+00> : vector<14x4xf32>
    %53 = tpu.matmul %50, %52, %cst_38 {dimension_numbers = #tpu.dot_dimension_numbers<[1], [0], [0], [1], [0, 0, 1, 1], [], []>} : vector<14x4xbf16>, vector<4x4xbf16>, vector<14x4xf32> -> vector<14x4xf32>
    %54 = arith.addf %9, %53 : vector<14x4xf32>
    %55 = vector.extract_strided_slice %49 {offsets = [2, 0], sizes = [14, 4], strides = [1, 1]} : vector<20x4xbf16> to vector<14x4xbf16>
    %56 = vector.extract_strided_slice %1 {offsets = [0, 0, 0, 0], sizes = [1, 1, 4, 4], strides = [1, 1, 1, 1]} : vector<3x3x4x4xbf16> to vector<1x1x4x4xbf16>
    %57 = vector.shape_cast %56 : vector<1x1x4x4xbf16> to vector<4x4xbf16>
    %cst_39 = arith.constant dense<0.000000e+00> : vector<14x4xf32>
    %58 = tpu.matmul %55, %57, %cst_39 {dimension_numbers = #tpu.dot_dimension_numbers<[1], [0], [0], [1], [0, 0, 1, 1], [], []>} : vector<14x4xbf16>, vector<4x4xbf16>, vector<14x4xf32> -> vector<14x4xf32>
    %59 = arith.addf %54, %58 : vector<14x4xf32>
    %60 = vector.extract_strided_slice %47 {offsets = [1, 0], sizes = [14, 4], strides = [1, 1]} : vector<16x4xbf16> to vector<14x4xbf16>
    %61 = vector.extract_strided_slice %0 {offsets = [0, 1, 0, 0], sizes = [1, 1, 4, 4], strides = [1, 1, 1, 1]} : vector<3x3x4x4xbf16> to vector<1x1x4x4xbf16>
    %62 = vector.shape_cast %61 : vector<1x1x4x4xbf16> to vector<4x4xbf16>
    %cst_40 = arith.constant dense<0.000000e+00> : vector<14x4xf32>
    %63 = tpu.matmul %60, %62, %cst_40 {dimension_numbers = #tpu.dot_dimension_numbers<[1], [0], [0], [1], [0, 0, 1, 1], [], []>} : vector<14x4xbf16>, vector<4x4xbf16>, vector<14x4xf32> -> vector<14x4xf32>
    %64 = arith.addf %59, %63 : vector<14x4xf32>
    %65 = vector.extract_strided_slice %49 {offsets = [3, 0], sizes = [14, 4], strides = [1, 1]} : vector<20x4xbf16> to vector<14x4xbf16>
    %66 = vector.extract_strided_slice %1 {offsets = [0, 1, 0, 0], sizes = [1, 1, 4, 4], strides = [1, 1, 1, 1]} : vector<3x3x4x4xbf16> to vector<1x1x4x4xbf16>
    %67 = vector.shape_cast %66 : vector<1x1x4x4xbf16> to vector<4x4xbf16>
    %cst_41 = arith.constant dense<0.000000e+00> : vector<14x4xf32>
    %68 = tpu.matmul %65, %67, %cst_41 {dimension_numbers = #tpu.dot_dimension_numbers<[1], [0], [0], [1], [0, 0, 1, 1], [], []>} : vector<14x4xbf16>, vector<4x4xbf16>, vector<14x4xf32> -> vector<14x4xf32>
    %69 = arith.addf %64, %68 : vector<14x4xf32>
    %70 = vector.extract_strided_slice %47 {offsets = [2, 0], sizes = [14, 4], strides = [1, 1]} : vector<16x4xbf16> to vector<14x4xbf16>
    %71 = vector.extract_strided_slice %0 {offsets = [0, 2, 0, 0], sizes = [1, 1, 4, 4], strides = [1, 1, 1, 1]} : vector<3x3x4x4xbf16> to vector<1x1x4x4xbf16>
    %72 = vector.shape_cast %71 : vector<1x1x4x4xbf16> to vector<4x4xbf16>
    %cst_42 = arith.constant dense<0.000000e+00> : vector<14x4xf32>
    %73 = tpu.matmul %70, %72, %cst_42 {dimension_numbers = #tpu.dot_dimension_numbers<[1], [0], [0], [1], [0, 0, 1, 1], [], []>} : vector<14x4xbf16>, vector<4x4xbf16>, vector<14x4xf32> -> vector<14x4xf32>
    %74 = arith.addf %69, %73 : vector<14x4xf32>
    %75 = vector.extract_strided_slice %49 {offsets = [4, 0], sizes = [14, 4], strides = [1, 1]} : vector<20x4xbf16> to vector<14x4xbf16>
    %76 = vector.extract_strided_slice %1 {offsets = [0, 2, 0, 0], sizes = [1, 1, 4, 4], strides = [1, 1, 1, 1]} : vector<3x3x4x4xbf16> to vector<1x1x4x4xbf16>
    %77 = vector.shape_cast %76 : vector<1x1x4x4xbf16> to vector<4x4xbf16>
    %cst_43 = arith.constant dense<0.000000e+00> : vector<14x4xf32>
    %78 = tpu.matmul %75, %77, %cst_43 {dimension_numbers = #tpu.dot_dimension_numbers<[1], [0], [0], [1], [0, 0, 1, 1], [], []>} : vector<14x4xbf16>, vector<4x4xbf16>, vector<14x4xf32> -> vector<14x4xf32>
    %79 = arith.addf %74, %78 : vector<14x4xf32>
    %80 = arith.truncf %3 : vector<2x1x16x4xf32> to vector<2x1x16x4xbf16>
    %81 = arith.truncf %6 : vector<2x1x20x4xf32> to vector<2x1x20x4xbf16>
    %82 = vector.extract_strided_slice %80 {offsets = [0, 0, 0, 0], sizes = [1, 1, 16, 4], strides = [1, 1, 1, 1]} : vector<2x1x16x4xbf16> to vector<1x1x16x4xbf16>
    %83 = vector.shape_cast %82 : vector<1x1x16x4xbf16> to vector<16x4xbf16>
    %84 = vector.extract_strided_slice %81 {offsets = [0, 0, 0, 0], sizes = [1, 1, 20, 4], strides = [1, 1, 1, 1]} : vector<2x1x20x4xbf16> to vector<1x1x20x4xbf16>
    %85 = vector.shape_cast %84 : vector<1x1x20x4xbf16> to vector<20x4xbf16>
    %86 = vector.extract_strided_slice %83 {offsets = [0, 0], sizes = [14, 4], strides = [1, 1]} : vector<16x4xbf16> to vector<14x4xbf16>
    %87 = vector.extract_strided_slice %0 {offsets = [1, 0, 0, 0], sizes = [1, 1, 4, 4], strides = [1, 1, 1, 1]} : vector<3x3x4x4xbf16> to vector<1x1x4x4xbf16>
    %88 = vector.shape_cast %87 : vector<1x1x4x4xbf16> to vector<4x4xbf16>
    %cst_44 = arith.constant dense<0.000000e+00> : vector<14x4xf32>
    %89 = tpu.matmul %86, %88, %cst_44 {dimension_numbers = #tpu.dot_dimension_numbers<[1], [0], [0], [1], [0, 0, 1, 1], [], []>} : vector<14x4xbf16>, vector<4x4xbf16>, vector<14x4xf32> -> vector<14x4xf32>
    %90 = arith.addf %45, %89 : vector<14x4xf32>
    %91 = vector.extract_strided_slice %85 {offsets = [2, 0], sizes = [14, 4], strides = [1, 1]} : vector<20x4xbf16> to vector<14x4xbf16>
    %92 = vector.extract_strided_slice %1 {offsets = [1, 0, 0, 0], sizes = [1, 1, 4, 4], strides = [1, 1, 1, 1]} : vector<3x3x4x4xbf16> to vector<1x1x4x4xbf16>
    %93 = vector.shape_cast %92 : vector<1x1x4x4xbf16> to vector<4x4xbf16>
    %cst_45 = arith.constant dense<0.000000e+00> : vector<14x4xf32>
    %94 = tpu.matmul %91, %93, %cst_45 {dimension_numbers = #tpu.dot_dimension_numbers<[1], [0], [0], [1], [0, 0, 1, 1], [], []>} : vector<14x4xbf16>, vector<4x4xbf16>, vector<14x4xf32> -> vector<14x4xf32>
    %95 = arith.addf %90, %94 : vector<14x4xf32>
    %96 = vector.extract_strided_slice %83 {offsets = [1, 0], sizes = [14, 4], strides = [1, 1]} : vector<16x4xbf16> to vector<14x4xbf16>
    %97 = vector.extract_strided_slice %0 {offsets = [1, 1, 0, 0], sizes = [1, 1, 4, 4], strides = [1, 1, 1, 1]} : vector<3x3x4x4xbf16> to vector<1x1x4x4xbf16>
    %98 = vector.shape_cast %97 : vector<1x1x4x4xbf16> to vector<4x4xbf16>
    %cst_46 = arith.constant dense<0.000000e+00> : vector<14x4xf32>
    %99 = tpu.matmul %96, %98, %cst_46 {dimension_numbers = #tpu.dot_dimension_numbers<[1], [0], [0], [1], [0, 0, 1, 1], [], []>} : vector<14x4xbf16>, vector<4x4xbf16>, vector<14x4xf32> -> vector<14x4xf32>
    %100 = arith.addf %95, %99 : vector<14x4xf32>
    %101 = vector.extract_strided_slice %85 {offsets = [3, 0], sizes = [14, 4], strides = [1, 1]} : vector<20x4xbf16> to vector<14x4xbf16>
    %102 = vector.extract_strided_slice %1 {offsets = [1, 1, 0, 0], sizes = [1, 1, 4, 4], strides = [1, 1, 1, 1]} : vector<3x3x4x4xbf16> to vector<1x1x4x4xbf16>
    %103 = vector.shape_cast %102 : vector<1x1x4x4xbf16> to vector<4x4xbf16>
    %cst_47 = arith.constant dense<0.000000e+00> : vector<14x4xf32>
    %104 = tpu.matmul %101, %103, %cst_47 {dimension_numbers = #tpu.dot_dimension_numbers<[1], [0], [0], [1], [0, 0, 1, 1], [], []>} : vector<14x4xbf16>, vector<4x4xbf16>, vector<14x4xf32> -> vector<14x4xf32>
    %105 = arith.addf %100, %104 : vector<14x4xf32>
    %106 = vector.extract_strided_slice %83 {offsets = [2, 0], sizes = [14, 4], strides = [1, 1]} : vector<16x4xbf16> to vector<14x4xbf16>
    %107 = vector.extract_strided_slice %0 {offsets = [1, 2, 0, 0], sizes = [1, 1, 4, 4], strides = [1, 1, 1, 1]} : vector<3x3x4x4xbf16> to vector<1x1x4x4xbf16>
    %108 = vector.shape_cast %107 : vector<1x1x4x4xbf16> to vector<4x4xbf16>
    %cst_48 = arith.constant dense<0.000000e+00> : vector<14x4xf32>
    %109 = tpu.matmul %106, %108, %cst_48 {dimension_numbers = #tpu.dot_dimension_numbers<[1], [0], [0], [1], [0, 0, 1, 1], [], []>} : vector<14x4xbf16>, vector<4x4xbf16>, vector<14x4xf32> -> vector<14x4xf32>
    %110 = arith.addf %105, %109 : vector<14x4xf32>
    %111 = vector.extract_strided_slice %85 {offsets = [4, 0], sizes = [14, 4], strides = [1, 1]} : vector<20x4xbf16> to vector<14x4xbf16>
    %112 = vector.extract_strided_slice %1 {offsets = [1, 2, 0, 0], sizes = [1, 1, 4, 4], strides = [1, 1, 1, 1]} : vector<3x3x4x4xbf16> to vector<1x1x4x4xbf16>
    %113 = vector.shape_cast %112 : vector<1x1x4x4xbf16> to vector<4x4xbf16>
    %cst_49 = arith.constant dense<0.000000e+00> : vector<14x4xf32>
    %114 = tpu.matmul %111, %113, %cst_49 {dimension_numbers = #tpu.dot_dimension_numbers<[1], [0], [0], [1], [0, 0, 1, 1], [], []>} : vector<14x4xbf16>, vector<4x4xbf16>, vector<14x4xf32> -> vector<14x4xf32>
    %115 = arith.addf %110, %114 : vector<14x4xf32>
    %116 = vector.extract_strided_slice %80 {offsets = [1, 0, 0, 0], sizes = [1, 1, 16, 4], strides = [1, 1, 1, 1]} : vector<2x1x16x4xbf16> to vector<1x1x16x4xbf16>
    %117 = vector.shape_cast %116 : vector<1x1x16x4xbf16> to vector<16x4xbf16>
    %118 = vector.extract_strided_slice %81 {offsets = [1, 0, 0, 0], sizes = [1, 1, 20, 4], strides = [1, 1, 1, 1]} : vector<2x1x20x4xbf16> to vector<1x1x20x4xbf16>
    %119 = vector.shape_cast %118 : vector<1x1x20x4xbf16> to vector<20x4xbf16>
    %120 = vector.extract_strided_slice %117 {offsets = [0, 0], sizes = [14, 4], strides = [1, 1]} : vector<16x4xbf16> to vector<14x4xbf16>
    %121 = vector.extract_strided_slice %0 {offsets = [1, 0, 0, 0], sizes = [1, 1, 4, 4], strides = [1, 1, 1, 1]} : vector<3x3x4x4xbf16> to vector<1x1x4x4xbf16>
    %122 = vector.shape_cast %121 : vector<1x1x4x4xbf16> to vector<4x4xbf16>
    %cst_50 = arith.constant dense<0.000000e+00> : vector<14x4xf32>
    %123 = tpu.matmul %120, %122, %cst_50 {dimension_numbers = #tpu.dot_dimension_numbers<[1], [0], [0], [1], [0, 0, 1, 1], [], []>} : vector<14x4xbf16>, vector<4x4xbf16>, vector<14x4xf32> -> vector<14x4xf32>
    %124 = arith.addf %79, %123 : vector<14x4xf32>
    %125 = vector.extract_strided_slice %119 {offsets = [2, 0], sizes = [14, 4], strides = [1, 1]} : vector<20x4xbf16> to vector<14x4xbf16>
    %126 = vector.extract_strided_slice %1 {offsets = [1, 0, 0, 0], sizes = [1, 1, 4, 4], strides = [1, 1, 1, 1]} : vector<3x3x4x4xbf16> to vector<1x1x4x4xbf16>
    %127 = vector.shape_cast %126 : vector<1x1x4x4xbf16> to vector<4x4xbf16>
    %cst_51 = arith.constant dense<0.000000e+00> : vector<14x4xf32>
    %128 = tpu.matmul %125, %127, %cst_51 {dimension_numbers = #tpu.dot_dimension_numbers<[1], [0], [0], [1], [0, 0, 1, 1], [], []>} : vector<14x4xbf16>, vector<4x4xbf16>, vector<14x4xf32> -> vector<14x4xf32>
    %129 = arith.addf %124, %128 : vector<14x4xf32>
    %130 = vector.extract_strided_slice %117 {offsets = [1, 0], sizes = [14, 4], strides = [1, 1]} : vector<16x4xbf16> to vector<14x4xbf16>
    %131 = vector.extract_strided_slice %0 {offsets = [1, 1, 0, 0], sizes = [1, 1, 4, 4], strides = [1, 1, 1, 1]} : vector<3x3x4x4xbf16> to vector<1x1x4x4xbf16>
    %132 = vector.shape_cast %131 : vector<1x1x4x4xbf16> to vector<4x4xbf16>
    %cst_52 = arith.constant dense<0.000000e+00> : vector<14x4xf32>
    %133 = tpu.matmul %130, %132, %cst_52 {dimension_numbers = #tpu.dot_dimension_numbers<[1], [0], [0], [1], [0, 0, 1, 1], [], []>} : vector<14x4xbf16>, vector<4x4xbf16>, vector<14x4xf32> -> vector<14x4xf32>
    %134 = arith.addf %129, %133 : vector<14x4xf32>
    %135 = vector.extract_strided_slice %119 {offsets = [3, 0], sizes = [14, 4], strides = [1, 1]} : vector<20x4xbf16> to vector<14x4xbf16>
    %136 = vector.extract_strided_slice %1 {offsets = [1, 1, 0, 0], sizes = [1, 1, 4, 4], strides = [1, 1, 1, 1]} : vector<3x3x4x4xbf16> to vector<1x1x4x4xbf16>
    %137 = vector.shape_cast %136 : vector<1x1x4x4xbf16> to vector<4x4xbf16>
    %cst_53 = arith.constant dense<0.000000e+00> : vector<14x4xf32>
    %138 = tpu.matmul %135, %137, %cst_53 {dimension_numbers = #tpu.dot_dimension_numbers<[1], [0], [0], [1], [0, 0, 1, 1], [], []>} : vector<14x4xbf16>, vector<4x4xbf16>, vector<14x4xf32> -> vector<14x4xf32>
    %139 = arith.addf %134, %138 : vector<14x4xf32>
    %140 = vector.extract_strided_slice %117 {offsets = [2, 0], sizes = [14, 4], strides = [1, 1]} : vector<16x4xbf16> to vector<14x4xbf16>
    %141 = vector.extract_strided_slice %0 {offsets = [1, 2, 0, 0], sizes = [1, 1, 4, 4], strides = [1, 1, 1, 1]} : vector<3x3x4x4xbf16> to vector<1x1x4x4xbf16>
    %142 = vector.shape_cast %141 : vector<1x1x4x4xbf16> to vector<4x4xbf16>
    %cst_54 = arith.constant dense<0.000000e+00> : vector<14x4xf32>
    %143 = tpu.matmul %140, %142, %cst_54 {dimension_numbers = #tpu.dot_dimension_numbers<[1], [0], [0], [1], [0, 0, 1, 1], [], []>} : vector<14x4xbf16>, vector<4x4xbf16>, vector<14x4xf32> -> vector<14x4xf32>
    %144 = arith.addf %139, %143 : vector<14x4xf32>
    %145 = vector.extract_strided_slice %119 {offsets = [4, 0], sizes = [14, 4], strides = [1, 1]} : vector<20x4xbf16> to vector<14x4xbf16>
    %146 = vector.extract_strided_slice %1 {offsets = [1, 2, 0, 0], sizes = [1, 1, 4, 4], strides = [1, 1, 1, 1]} : vector<3x3x4x4xbf16> to vector<1x1x4x4xbf16>
    %147 = vector.shape_cast %146 : vector<1x1x4x4xbf16> to vector<4x4xbf16>
    %cst_55 = arith.constant dense<0.000000e+00> : vector<14x4xf32>
    %148 = tpu.matmul %145, %147, %cst_55 {dimension_numbers = #tpu.dot_dimension_numbers<[1], [0], [0], [1], [0, 0, 1, 1], [], []>} : vector<14x4xbf16>, vector<4x4xbf16>, vector<14x4xf32> -> vector<14x4xf32>
    %149 = arith.addf %144, %148 : vector<14x4xf32>
    %150 = arith.truncf %4 : vector<2x1x16x4xf32> to vector<2x1x16x4xbf16>
    %151 = arith.truncf %7 : vector<2x1x20x4xf32> to vector<2x1x20x4xbf16>
    %152 = vector.extract_strided_slice %150 {offsets = [0, 0, 0, 0], sizes = [1, 1, 16, 4], strides = [1, 1, 1, 1]} : vector<2x1x16x4xbf16> to vector<1x1x16x4xbf16>
    %153 = vector.shape_cast %152 : vector<1x1x16x4xbf16> to vector<16x4xbf16>
    %154 = vector.extract_strided_slice %151 {offsets = [0, 0, 0, 0], sizes = [1, 1, 20, 4], strides = [1, 1, 1, 1]} : vector<2x1x20x4xbf16> to vector<1x1x20x4xbf16>
    %155 = vector.shape_cast %154 : vector<1x1x20x4xbf16> to vector<20x4xbf16>
    %156 = vector.extract_strided_slice %153 {offsets = [0, 0], sizes = [14, 4], strides = [1, 1]} : vector<16x4xbf16> to vector<14x4xbf16>
    %157 = vector.extract_strided_slice %0 {offsets = [2, 0, 0, 0], sizes = [1, 1, 4, 4], strides = [1, 1, 1, 1]} : vector<3x3x4x4xbf16> to vector<1x1x4x4xbf16>
    %158 = vector.shape_cast %157 : vector<1x1x4x4xbf16> to vector<4x4xbf16>
    %cst_56 = arith.constant dense<0.000000e+00> : vector<14x4xf32>
    %159 = tpu.matmul %156, %158, %cst_56 {dimension_numbers = #tpu.dot_dimension_numbers<[1], [0], [0], [1], [0, 0, 1, 1], [], []>} : vector<14x4xbf16>, vector<4x4xbf16>, vector<14x4xf32> -> vector<14x4xf32>
    %160 = arith.addf %115, %159 : vector<14x4xf32>
    %161 = vector.extract_strided_slice %155 {offsets = [2, 0], sizes = [14, 4], strides = [1, 1]} : vector<20x4xbf16> to vector<14x4xbf16>
    %162 = vector.extract_strided_slice %1 {offsets = [2, 0, 0, 0], sizes = [1, 1, 4, 4], strides = [1, 1, 1, 1]} : vector<3x3x4x4xbf16> to vector<1x1x4x4xbf16>
    %163 = vector.shape_cast %162 : vector<1x1x4x4xbf16> to vector<4x4xbf16>
    %cst_57 = arith.constant dense<0.000000e+00> : vector<14x4xf32>
    %164 = tpu.matmul %161, %163, %cst_57 {dimension_numbers = #tpu.dot_dimension_numbers<[1], [0], [0], [1], [0, 0, 1, 1], [], []>} : vector<14x4xbf16>, vector<4x4xbf16>, vector<14x4xf32> -> vector<14x4xf32>
    %165 = arith.addf %160, %164 : vector<14x4xf32>
    %166 = vector.extract_strided_slice %153 {offsets = [1, 0], sizes = [14, 4], strides = [1, 1]} : vector<16x4xbf16> to vector<14x4xbf16>
    %167 = vector.extract_strided_slice %0 {offsets = [2, 1, 0, 0], sizes = [1, 1, 4, 4], strides = [1, 1, 1, 1]} : vector<3x3x4x4xbf16> to vector<1x1x4x4xbf16>
    %168 = vector.shape_cast %167 : vector<1x1x4x4xbf16> to vector<4x4xbf16>
    %cst_58 = arith.constant dense<0.000000e+00> : vector<14x4xf32>
    %169 = tpu.matmul %166, %168, %cst_58 {dimension_numbers = #tpu.dot_dimension_numbers<[1], [0], [0], [1], [0, 0, 1, 1], [], []>} : vector<14x4xbf16>, vector<4x4xbf16>, vector<14x4xf32> -> vector<14x4xf32>
    %170 = arith.addf %165, %169 : vector<14x4xf32>
    %171 = vector.extract_strided_slice %155 {offsets = [3, 0], sizes = [14, 4], strides = [1, 1]} : vector<20x4xbf16> to vector<14x4xbf16>
    %172 = vector.extract_strided_slice %1 {offsets = [2, 1, 0, 0], sizes = [1, 1, 4, 4], strides = [1, 1, 1, 1]} : vector<3x3x4x4xbf16> to vector<1x1x4x4xbf16>
    %173 = vector.shape_cast %172 : vector<1x1x4x4xbf16> to vector<4x4xbf16>
    %cst_59 = arith.constant dense<0.000000e+00> : vector<14x4xf32>
    %174 = tpu.matmul %171, %173, %cst_59 {dimension_numbers = #tpu.dot_dimension_numbers<[1], [0], [0], [1], [0, 0, 1, 1], [], []>} : vector<14x4xbf16>, vector<4x4xbf16>, vector<14x4xf32> -> vector<14x4xf32>
    %175 = arith.addf %170, %174 : vector<14x4xf32>
    %176 = vector.extract_strided_slice %153 {offsets = [2, 0], sizes = [14, 4], strides = [1, 1]} : vector<16x4xbf16> to vector<14x4xbf16>
    %177 = vector.extract_strided_slice %0 {offsets = [2, 2, 0, 0], sizes = [1, 1, 4, 4], strides = [1, 1, 1, 1]} : vector<3x3x4x4xbf16> to vector<1x1x4x4xbf16>
    %178 = vector.shape_cast %177 : vector<1x1x4x4xbf16> to vector<4x4xbf16>
    %cst_60 = arith.constant dense<0.000000e+00> : vector<14x4xf32>
    %179 = tpu.matmul %176, %178, %cst_60 {dimension_numbers = #tpu.dot_dimension_numbers<[1], [0], [0], [1], [0, 0, 1, 1], [], []>} : vector<14x4xbf16>, vector<4x4xbf16>, vector<14x4xf32> -> vector<14x4xf32>
    %180 = arith.addf %175, %179 : vector<14x4xf32>
    %181 = vector.extract_strided_slice %155 {offsets = [4, 0], sizes = [14, 4], strides = [1, 1]} : vector<20x4xbf16> to vector<14x4xbf16>
    %182 = vector.extract_strided_slice %1 {offsets = [2, 2, 0, 0], sizes = [1, 1, 4, 4], strides = [1, 1, 1, 1]} : vector<3x3x4x4xbf16> to vector<1x1x4x4xbf16>
    %183 = vector.shape_cast %182 : vector<1x1x4x4xbf16> to vector<4x4xbf16>
    %cst_61 = arith.constant dense<0.000000e+00> : vector<14x4xf32>
    %184 = tpu.matmul %181, %183, %cst_61 {dimension_numbers = #tpu.dot_dimension_numbers<[1], [0], [0], [1], [0, 0, 1, 1], [], []>} : vector<14x4xbf16>, vector<4x4xbf16>, vector<14x4xf32> -> vector<14x4xf32>
    %185 = arith.addf %180, %184 : vector<14x4xf32>
    %186 = vector.extract_strided_slice %150 {offsets = [1, 0, 0, 0], sizes = [1, 1, 16, 4], strides = [1, 1, 1, 1]} : vector<2x1x16x4xbf16> to vector<1x1x16x4xbf16>
    %187 = vector.shape_cast %186 : vector<1x1x16x4xbf16> to vector<16x4xbf16>
    %188 = vector.extract_strided_slice %151 {offsets = [1, 0, 0, 0], sizes = [1, 1, 20, 4], strides = [1, 1, 1, 1]} : vector<2x1x20x4xbf16> to vector<1x1x20x4xbf16>
    %189 = vector.shape_cast %188 : vector<1x1x20x4xbf16> to vector<20x4xbf16>
    %190 = vector.extract_strided_slice %187 {offsets = [0, 0], sizes = [14, 4], strides = [1, 1]} : vector<16x4xbf16> to vector<14x4xbf16>
    %191 = vector.extract_strided_slice %0 {offsets = [2, 0, 0, 0], sizes = [1, 1, 4, 4], strides = [1, 1, 1, 1]} : vector<3x3x4x4xbf16> to vector<1x1x4x4xbf16>
    %192 = vector.shape_cast %191 : vector<1x1x4x4xbf16> to vector<4x4xbf16>
    %cst_62 = arith.constant dense<0.000000e+00> : vector<14x4xf32>
    %193 = tpu.matmul %190, %192, %cst_62 {dimension_numbers = #tpu.dot_dimension_numbers<[1], [0], [0], [1], [0, 0, 1, 1], [], []>} : vector<14x4xbf16>, vector<4x4xbf16>, vector<14x4xf32> -> vector<14x4xf32>
    %194 = arith.addf %149, %193 : vector<14x4xf32>
    %195 = vector.extract_strided_slice %189 {offsets = [2, 0], sizes = [14, 4], strides = [1, 1]} : vector<20x4xbf16> to vector<14x4xbf16>
    %196 = vector.extract_strided_slice %1 {offsets = [2, 0, 0, 0], sizes = [1, 1, 4, 4], strides = [1, 1, 1, 1]} : vector<3x3x4x4xbf16> to vector<1x1x4x4xbf16>
    %197 = vector.shape_cast %196 : vector<1x1x4x4xbf16> to vector<4x4xbf16>
    %cst_63 = arith.constant dense<0.000000e+00> : vector<14x4xf32>
    %198 = tpu.matmul %195, %197, %cst_63 {dimension_numbers = #tpu.dot_dimension_numbers<[1], [0], [0], [1], [0, 0, 1, 1], [], []>} : vector<14x4xbf16>, vector<4x4xbf16>, vector<14x4xf32> -> vector<14x4xf32>
    %199 = arith.addf %194, %198 : vector<14x4xf32>
    %200 = vector.extract_strided_slice %187 {offsets = [1, 0], sizes = [14, 4], strides = [1, 1]} : vector<16x4xbf16> to vector<14x4xbf16>
    %201 = vector.extract_strided_slice %0 {offsets = [2, 1, 0, 0], sizes = [1, 1, 4, 4], strides = [1, 1, 1, 1]} : vector<3x3x4x4xbf16> to vector<1x1x4x4xbf16>
    %202 = vector.shape_cast %201 : vector<1x1x4x4xbf16> to vector<4x4xbf16>
    %cst_64 = arith.constant dense<0.000000e+00> : vector<14x4xf32>
    %203 = tpu.matmul %200, %202, %cst_64 {dimension_numbers = #tpu.dot_dimension_numbers<[1], [0], [0], [1], [0, 0, 1, 1], [], []>} : vector<14x4xbf16>, vector<4x4xbf16>, vector<14x4xf32> -> vector<14x4xf32>
    %204 = arith.addf %199, %203 : vector<14x4xf32>
    %205 = vector.extract_strided_slice %189 {offsets = [3, 0], sizes = [14, 4], strides = [1, 1]} : vector<20x4xbf16> to vector<14x4xbf16>
    %206 = vector.extract_strided_slice %1 {offsets = [2, 1, 0, 0], sizes = [1, 1, 4, 4], strides = [1, 1, 1, 1]} : vector<3x3x4x4xbf16> to vector<1x1x4x4xbf16>
    %207 = vector.shape_cast %206 : vector<1x1x4x4xbf16> to vector<4x4xbf16>
    %cst_65 = arith.constant dense<0.000000e+00> : vector<14x4xf32>
    %208 = tpu.matmul %205, %207, %cst_65 {dimension_numbers = #tpu.dot_dimension_numbers<[1], [0], [0], [1], [0, 0, 1, 1], [], []>} : vector<14x4xbf16>, vector<4x4xbf16>, vector<14x4xf32> -> vector<14x4xf32>
    %209 = arith.addf %204, %208 : vector<14x4xf32>
    %210 = vector.extract_strided_slice %187 {offsets = [2, 0], sizes = [14, 4], strides = [1, 1]} : vector<16x4xbf16> to vector<14x4xbf16>
    %211 = vector.extract_strided_slice %0 {offsets = [2, 2, 0, 0], sizes = [1, 1, 4, 4], strides = [1, 1, 1, 1]} : vector<3x3x4x4xbf16> to vector<1x1x4x4xbf16>
    %212 = vector.shape_cast %211 : vector<1x1x4x4xbf16> to vector<4x4xbf16>
    %cst_66 = arith.constant dense<0.000000e+00> : vector<14x4xf32>
    %213 = tpu.matmul %210, %212, %cst_66 {dimension_numbers = #tpu.dot_dimension_numbers<[1], [0], [0], [1], [0, 0, 1, 1], [], []>} : vector<14x4xbf16>, vector<4x4xbf16>, vector<14x4xf32> -> vector<14x4xf32>
    %214 = arith.addf %209, %213 : vector<14x4xf32>
    %215 = vector.extract_strided_slice %189 {offsets = [4, 0], sizes = [14, 4], strides = [1, 1]} : vector<20x4xbf16> to vector<14x4xbf16>
    %216 = vector.extract_strided_slice %1 {offsets = [2, 2, 0, 0], sizes = [1, 1, 4, 4], strides = [1, 1, 1, 1]} : vector<3x3x4x4xbf16> to vector<1x1x4x4xbf16>
    %217 = vector.shape_cast %216 : vector<1x1x4x4xbf16> to vector<4x4xbf16>
    %cst_67 = arith.constant dense<0.000000e+00> : vector<14x4xf32>
    %218 = tpu.matmul %215, %217, %cst_67 {dimension_numbers = #tpu.dot_dimension_numbers<[1], [0], [0], [1], [0, 0, 1, 1], [], []>} : vector<14x4xbf16>, vector<4x4xbf16>, vector<14x4xf32> -> vector<14x4xf32>
    %219 = arith.addf %214, %218 : vector<14x4xf32>
    %220 = vector.shape_cast %185 : vector<14x4xf32> to vector<1x14x4xf32>
    %221 = vector.shape_cast %219 : vector<14x4xf32> to vector<1x14x4xf32>
    %222 = tpu.concatenate %220, %221 in 0 : vector<1x14x4xf32>, vector<1x14x4xf32> -> vector<2x14x4xf32>
    %223 = vector.shape_cast %222 : vector<2x14x4xf32> to vector<2x1x14x4xf32>
    %c0_68 = arith.constant 0 : index
    %c0_69 = arith.constant 0 : index
    %c0_70 = arith.constant 0 : index
    %c0_71 = arith.constant 0 : index
    %224 = vector.load %arg9[%c0_68, %c0_69, %c0_70, %c0_71] : memref<2x1x14x4xf32, #tpu.memory_space<vmem>>, vector<2x1x14x4xf32>
    tpu.vector_store %arg9[%c0_68, %c0_69, %c0_70, %c0_71], %223 {strides = array<i32>} : memref<2x1x14x4xf32, #tpu.memory_space<vmem>>, vector<2x1x14x4xf32>,
    %cst_72 = arith.constant dense<0.000000e+00> : vector<4xf32>
    %225 = vector.multi_reduction <add>, %222, %cst_72 [0, 1] : vector<2x14x4xf32> to vector<4xf32>
    %226 = vector.shape_cast %225 : vector<4xf32> to vector<1x1x4xf32>
    %c0_73 = arith.constant 0 : index
    %c0_74 = arith.constant 0 : index
    %c0_75 = arith.constant 0 : index
    %227 = vector.load %arg10[%c0_73, %c0_74, %c0_75] : memref<1x1x4xf32, #tpu.memory_space<vmem>>, vector<1x1x4xf32>
    tpu.vector_store %arg10[%c0_73, %c0_74, %c0_75], %226 {strides = array<i32>} : memref<1x1x4xf32, #tpu.memory_space<vmem>>, vector<1x1x4xf32>,
    %228 = arith.mulf %222, %222 : vector<2x14x4xf32>
    %cst_76 = arith.constant dense<0.000000e+00> : vector<4xf32>
    %229 = vector.multi_reduction <add>, %228, %cst_76 [0, 1] : vector<2x14x4xf32> to vector<4xf32>
    %230 = vector.shape_cast %229 : vector<4xf32> to vector<1x1x4xf32>
    %c0_77 = arith.constant 0 : index
    %c0_78 = arith.constant 0 : index
    %c0_79 = arith.constant 0 : index
    %231 = vector.load %arg11[%c0_77, %c0_78, %c0_79] : memref<1x1x4xf32, #tpu.memory_space<vmem>>, vector<1x1x4xf32>
    tpu.vector_store %arg11[%c0_77, %c0_78, %c0_79], %230 {strides = array<i32>} : memref<1x1x4xf32, #tpu.memory_space<vmem>>, vector<1x1x4xf32>,
    return
  }
  func.func @transform_0(%arg0: i32) -> (i32, i32, i32, i32) {
    %c0_i32 = arith.constant 0 : i32
    %0 = arith.addi %arg0, %c0_i32 : i32
    %c0_i32_0 = arith.constant 0 : i32
    %c0_i32_1 = arith.constant 0 : i32
    %c0_i32_2 = arith.constant 0 : i32
    %c0_i32_3 = arith.constant 0 : i32
    return %c0_i32_0, %0, %c0_i32_1, %c0_i32_2 : i32, i32, i32, i32
  }
  func.func @transform_1(%arg0: i32) -> (i32, i32, i32, i32) {
    %c1_i32 = arith.constant 1 : i32
    %0 = arith.addi %arg0, %c1_i32 : i32
    %c0_i32 = arith.constant 0 : i32
    %c0_i32_0 = arith.constant 0 : i32
    %c0_i32_1 = arith.constant 0 : i32
    %c0_i32_2 = arith.constant 0 : i32
    return %c0_i32, %0, %c0_i32_0, %c0_i32_1 : i32, i32, i32, i32
  }
  func.func @transform_2(%arg0: i32) -> (i32, i32, i32, i32) {
    %c2_i32 = arith.constant 2 : i32
    %0 = arith.addi %arg0, %c2_i32 : i32
    %c0_i32 = arith.constant 0 : i32
    %c0_i32_0 = arith.constant 0 : i32
    %c0_i32_1 = arith.constant 0 : i32
    %c0_i32_2 = arith.constant 0 : i32
    return %c0_i32, %0, %c0_i32_0, %c0_i32_1 : i32, i32, i32, i32
  }
  func.func @transform_3(%arg0: i32) -> (i32, i32, i32, i32) {
    %c0_i32 = arith.constant 0 : i32
    %0 = arith.addi %arg0, %c0_i32 : i32
    %c2_i32 = arith.constant 2 : i32
    %1 = arith.addi %0, %c2_i32 : i32
    %c0_i32_0 = arith.constant 0 : i32
    %c0_i32_1 = arith.constant 0 : i32
    %c0_i32_2 = arith.constant 0 : i32
    %c0_i32_3 = arith.constant 0 : i32
    return %c0_i32_0, %1, %c0_i32_1, %c0_i32_2 : i32, i32, i32, i32
  }
  func.func @transform_4(%arg0: i32) -> (i32, i32, i32, i32) {
    %c1_i32 = arith.constant 1 : i32
    %0 = arith.addi %arg0, %c1_i32 : i32
    %c2_i32 = arith.constant 2 : i32
    %1 = arith.addi %0, %c2_i32 : i32
    %c0_i32 = arith.constant 0 : i32
    %c0_i32_0 = arith.constant 0 : i32
    %c0_i32_1 = arith.constant 0 : i32
    %c0_i32_2 = arith.constant 0 : i32
    return %c0_i32, %1, %c0_i32_0, %c0_i32_1 : i32, i32, i32, i32
  }
  func.func @transform_5(%arg0: i32) -> (i32, i32, i32, i32) {
    %c2_i32 = arith.constant 2 : i32
    %0 = arith.addi %arg0, %c2_i32 : i32
    %c2_i32_0 = arith.constant 2 : i32
    %1 = arith.addi %0, %c2_i32_0 : i32
    %c0_i32 = arith.constant 0 : i32
    %c0_i32_1 = arith.constant 0 : i32
    %c0_i32_2 = arith.constant 0 : i32
    %c0_i32_3 = arith.constant 0 : i32
    return %c0_i32, %1, %c0_i32_1, %c0_i32_2 : i32, i32, i32, i32
  }
  func.func @transform_6(%arg0: i32) -> (i32, i32, i32, i32) {
    %c0_i32 = arith.constant 0 : i32
    %c0_i32_0 = arith.constant 0 : i32
    %c0_i32_1 = arith.constant 0 : i32
    %c0_i32_2 = arith.constant 0 : i32
    %c0_i32_3 = arith.constant 0 : i32
    return %c0_i32, %c0_i32_0, %c0_i32_1, %c0_i32_2 : i32, i32, i32, i32
  }
  func.func @transform_7(%arg0: i32) -> (i32, i32, i32, i32) {
    %c0_i32 = arith.constant 0 : i32
    %c0_i32_0 = arith.constant 0 : i32
    %c0_i32_1 = arith.constant 0 : i32
    %c0_i32_2 = arith.constant 0 : i32
    %c0_i32_3 = arith.constant 0 : i32
    return %c0_i32, %c0_i32_0, %c0_i32_1, %c0_i32_2 : i32, i32, i32, i32
  }
  func.func @transform_8(%arg0: i32) -> (i32, i32, i32, i32) {
    %c0_i32 = arith.constant 0 : i32
    %c0_i32_0 = arith.constant 0 : i32
    %c0_i32_1 = arith.constant 0 : i32
    %c0_i32_2 = arith.constant 0 : i32
    return %c0_i32, %arg0, %c0_i32_0, %c0_i32_1 : i32, i32, i32, i32
  }
  func.func @transform_9(%arg0: i32) -> (i32, i32, i32) {
    %c0_i32 = arith.constant 0 : i32
    %c0_i32_0 = arith.constant 0 : i32
    %c0_i32_1 = arith.constant 0 : i32
    return %arg0, %c0_i32, %c0_i32_0 : i32, i32, i32
  }
  func.func @transform_10(%arg0: i32) -> (i32, i32, i32) {
    %c0_i32 = arith.constant 0 : i32
    %c0_i32_0 = arith.constant 0 : i32
    %c0_i32_1 = arith.constant 0 : i32
    return %arg0, %c0_i32, %c0_i32_0 : i32, i32, i32
  }
}

module attributes {stable_mosaic.version = 11 : i64} {
  func.func @kernel(%arg0: i32, %arg1: memref<2x1x14x4xf32, #tpu.memory_space<vmem>>, %arg2: memref<2x1x14x4xf32, #tpu.memory_space<vmem>>, %arg3: memref<2x1x14x4xf32, #tpu.memory_space<vmem>>, %arg4: memref<1x4xf32, #tpu.memory_space<vmem>>, %arg5: memref<1x4xf32, #tpu.memory_space<vmem>>, %arg6: memref<3x3x4x4xbf16, #tpu.memory_space<vmem>>, %arg7: memref<2x1x12x4xf32, #tpu.memory_space<vmem>>, %arg8: memref<1x1x4xf32, #tpu.memory_space<vmem>>, %arg9: memref<1x1x4xf32, #tpu.memory_space<vmem>>) attributes {dimension_semantics = [#tpu.dimension_semantics<parallel>], iteration_bounds = array<i64: 12>, scalar_prefetch = 0 : i64, scratch_operands = 0 : i64, tpu.core_type = #tpu.core_type<tc>, window_params = [{transform_indices = @transform_0, window_bounds = array<i64: 2, 1, 14, 4>}, {transform_indices = @transform_1, window_bounds = array<i64: 2, 1, 14, 4>}, {transform_indices = @transform_2, window_bounds = array<i64: 2, 1, 14, 4>}, {pipeline_mode = #tpu.pipeline_mode<synchronous>, transform_indices = @transform_3, window_bounds = array<i64: 1, 4>}, {pipeline_mode = #tpu.pipeline_mode<synchronous>, transform_indices = @transform_4, window_bounds = array<i64: 1, 4>}, {pipeline_mode = #tpu.pipeline_mode<synchronous>, transform_indices = @transform_5, window_bounds = array<i64: 3, 3, 4, 4>}, {transform_indices = @transform_6, window_bounds = array<i64: 2, 1, 12, 4>}, {transform_indices = @transform_7, window_bounds = array<i64: 1, 1, 4>}, {transform_indices = @transform_8, window_bounds = array<i64: 1, 1, 4>}]} {
    %c0 = arith.constant 0 : index
    %c0_0 = arith.constant 0 : index
    %c0_1 = arith.constant 0 : index
    %c0_2 = arith.constant 0 : index
    %0 = vector.load %arg6[%c0, %c0_0, %c0_1, %c0_2] : memref<3x3x4x4xbf16, #tpu.memory_space<vmem>>, vector<3x3x4x4xbf16>
    %c0_3 = arith.constant 0 : index
    %c0_4 = arith.constant 0 : index
    %1 = vector.load %arg4[%c0_3, %c0_4] : memref<1x4xf32, #tpu.memory_space<vmem>>, vector<1x4xf32>
    %c0_5 = arith.constant 0 : index
    %c0_6 = arith.constant 0 : index
    %2 = vector.load %arg5[%c0_5, %c0_6] : memref<1x4xf32, #tpu.memory_space<vmem>>, vector<1x4xf32>
    %c0_7 = arith.constant 0 : index
    %c0_8 = arith.constant 0 : index
    %c0_9 = arith.constant 0 : index
    %c0_10 = arith.constant 0 : index
    %3 = vector.load %arg1[%c0_7, %c0_8, %c0_9, %c0_10] : memref<2x1x14x4xf32, #tpu.memory_space<vmem>>, vector<2x1x14x4xf32>
    %c0_11 = arith.constant 0 : index
    %c0_12 = arith.constant 0 : index
    %c0_13 = arith.constant 0 : index
    %c0_14 = arith.constant 0 : index
    %4 = vector.load %arg2[%c0_11, %c0_12, %c0_13, %c0_14] : memref<2x1x14x4xf32, #tpu.memory_space<vmem>>, vector<2x1x14x4xf32>
    %c0_15 = arith.constant 0 : index
    %c0_16 = arith.constant 0 : index
    %c0_17 = arith.constant 0 : index
    %c0_18 = arith.constant 0 : index
    %5 = vector.load %arg3[%c0_15, %c0_16, %c0_17, %c0_18] : memref<2x1x14x4xf32, #tpu.memory_space<vmem>>, vector<2x1x14x4xf32>
    %cst = arith.constant 0.000000e+00 : f32
    %6 = vector.broadcast %cst : f32 to vector<12x4xf32>
    %cst_19 = arith.constant 0.000000e+00 : f32
    %7 = vector.broadcast %cst_19 : f32 to vector<12x4xf32>
    %8 = vector.shape_cast %1 : vector<1x4xf32> to vector<1x1x1x4xf32>
    %9 = vector.broadcast %8 : vector<1x1x1x4xf32> to vector<2x1x14x4xf32>
    %10 = arith.mulf %3, %9 : vector<2x1x14x4xf32>
    %11 = vector.shape_cast %2 : vector<1x4xf32> to vector<1x1x1x4xf32>
    %12 = vector.broadcast %11 : vector<1x1x1x4xf32> to vector<2x1x14x4xf32>
    %13 = arith.addf %10, %12 : vector<2x1x14x4xf32>
    %cst_20 = arith.constant 0.000000e+00 : f32
    %14 = vector.broadcast %cst_20 : f32 to vector<2x1x14x4xf32>
    %15 = arith.maximumf %13, %14 : vector<2x1x14x4xf32>
    %16 = arith.truncf %15 : vector<2x1x14x4xf32> to vector<2x1x14x4xbf16>
    %17 = vector.extract_strided_slice %16 {offsets = [0, 0, 0, 0], sizes = [1, 1, 14, 4], strides = [1, 1, 1, 1]} : vector<2x1x14x4xbf16> to vector<1x1x14x4xbf16>
    %18 = vector.shape_cast %17 : vector<1x1x14x4xbf16> to vector<14x4xbf16>
    %19 = vector.extract_strided_slice %18 {offsets = [0, 0], sizes = [12, 4], strides = [1, 1]} : vector<14x4xbf16> to vector<12x4xbf16>
    %20 = vector.extract_strided_slice %0 {offsets = [0, 0, 0, 0], sizes = [1, 1, 4, 4], strides = [1, 1, 1, 1]} : vector<3x3x4x4xbf16> to vector<1x1x4x4xbf16>
    %21 = vector.shape_cast %20 : vector<1x1x4x4xbf16> to vector<4x4xbf16>
    %cst_21 = arith.constant dense<0.000000e+00> : vector<12x4xf32>
    %22 = tpu.matmul %19, %21, %cst_21 {dimension_numbers = #tpu.dot_dimension_numbers<[1], [0], [0], [1], [0, 0, 1, 1], [], []>} : vector<12x4xbf16>, vector<4x4xbf16>, vector<12x4xf32> -> vector<12x4xf32>
    %23 = arith.addf %6, %22 : vector<12x4xf32>
    %24 = vector.extract_strided_slice %18 {offsets = [1, 0], sizes = [12, 4], strides = [1, 1]} : vector<14x4xbf16> to vector<12x4xbf16>
    %25 = vector.extract_strided_slice %0 {offsets = [0, 1, 0, 0], sizes = [1, 1, 4, 4], strides = [1, 1, 1, 1]} : vector<3x3x4x4xbf16> to vector<1x1x4x4xbf16>
    %26 = vector.shape_cast %25 : vector<1x1x4x4xbf16> to vector<4x4xbf16>
    %cst_22 = arith.constant dense<0.000000e+00> : vector<12x4xf32>
    %27 = tpu.matmul %24, %26, %cst_22 {dimension_numbers = #tpu.dot_dimension_numbers<[1], [0], [0], [1], [0, 0, 1, 1], [], []>} : vector<12x4xbf16>, vector<4x4xbf16>, vector<12x4xf32> -> vector<12x4xf32>
    %28 = arith.addf %23, %27 : vector<12x4xf32>
    %29 = vector.extract_strided_slice %18 {offsets = [2, 0], sizes = [12, 4], strides = [1, 1]} : vector<14x4xbf16> to vector<12x4xbf16>
    %30 = vector.extract_strided_slice %0 {offsets = [0, 2, 0, 0], sizes = [1, 1, 4, 4], strides = [1, 1, 1, 1]} : vector<3x3x4x4xbf16> to vector<1x1x4x4xbf16>
    %31 = vector.shape_cast %30 : vector<1x1x4x4xbf16> to vector<4x4xbf16>
    %cst_23 = arith.constant dense<0.000000e+00> : vector<12x4xf32>
    %32 = tpu.matmul %29, %31, %cst_23 {dimension_numbers = #tpu.dot_dimension_numbers<[1], [0], [0], [1], [0, 0, 1, 1], [], []>} : vector<12x4xbf16>, vector<4x4xbf16>, vector<12x4xf32> -> vector<12x4xf32>
    %33 = arith.addf %28, %32 : vector<12x4xf32>
    %34 = vector.extract_strided_slice %16 {offsets = [1, 0, 0, 0], sizes = [1, 1, 14, 4], strides = [1, 1, 1, 1]} : vector<2x1x14x4xbf16> to vector<1x1x14x4xbf16>
    %35 = vector.shape_cast %34 : vector<1x1x14x4xbf16> to vector<14x4xbf16>
    %36 = vector.extract_strided_slice %35 {offsets = [0, 0], sizes = [12, 4], strides = [1, 1]} : vector<14x4xbf16> to vector<12x4xbf16>
    %37 = vector.extract_strided_slice %0 {offsets = [0, 0, 0, 0], sizes = [1, 1, 4, 4], strides = [1, 1, 1, 1]} : vector<3x3x4x4xbf16> to vector<1x1x4x4xbf16>
    %38 = vector.shape_cast %37 : vector<1x1x4x4xbf16> to vector<4x4xbf16>
    %cst_24 = arith.constant dense<0.000000e+00> : vector<12x4xf32>
    %39 = tpu.matmul %36, %38, %cst_24 {dimension_numbers = #tpu.dot_dimension_numbers<[1], [0], [0], [1], [0, 0, 1, 1], [], []>} : vector<12x4xbf16>, vector<4x4xbf16>, vector<12x4xf32> -> vector<12x4xf32>
    %40 = arith.addf %7, %39 : vector<12x4xf32>
    %41 = vector.extract_strided_slice %35 {offsets = [1, 0], sizes = [12, 4], strides = [1, 1]} : vector<14x4xbf16> to vector<12x4xbf16>
    %42 = vector.extract_strided_slice %0 {offsets = [0, 1, 0, 0], sizes = [1, 1, 4, 4], strides = [1, 1, 1, 1]} : vector<3x3x4x4xbf16> to vector<1x1x4x4xbf16>
    %43 = vector.shape_cast %42 : vector<1x1x4x4xbf16> to vector<4x4xbf16>
    %cst_25 = arith.constant dense<0.000000e+00> : vector<12x4xf32>
    %44 = tpu.matmul %41, %43, %cst_25 {dimension_numbers = #tpu.dot_dimension_numbers<[1], [0], [0], [1], [0, 0, 1, 1], [], []>} : vector<12x4xbf16>, vector<4x4xbf16>, vector<12x4xf32> -> vector<12x4xf32>
    %45 = arith.addf %40, %44 : vector<12x4xf32>
    %46 = vector.extract_strided_slice %35 {offsets = [2, 0], sizes = [12, 4], strides = [1, 1]} : vector<14x4xbf16> to vector<12x4xbf16>
    %47 = vector.extract_strided_slice %0 {offsets = [0, 2, 0, 0], sizes = [1, 1, 4, 4], strides = [1, 1, 1, 1]} : vector<3x3x4x4xbf16> to vector<1x1x4x4xbf16>
    %48 = vector.shape_cast %47 : vector<1x1x4x4xbf16> to vector<4x4xbf16>
    %cst_26 = arith.constant dense<0.000000e+00> : vector<12x4xf32>
    %49 = tpu.matmul %46, %48, %cst_26 {dimension_numbers = #tpu.dot_dimension_numbers<[1], [0], [0], [1], [0, 0, 1, 1], [], []>} : vector<12x4xbf16>, vector<4x4xbf16>, vector<12x4xf32> -> vector<12x4xf32>
    %50 = arith.addf %45, %49 : vector<12x4xf32>
    %51 = vector.shape_cast %1 : vector<1x4xf32> to vector<1x1x1x4xf32>
    %52 = vector.broadcast %51 : vector<1x1x1x4xf32> to vector<2x1x14x4xf32>
    %53 = arith.mulf %4, %52 : vector<2x1x14x4xf32>
    %54 = vector.shape_cast %2 : vector<1x4xf32> to vector<1x1x1x4xf32>
    %55 = vector.broadcast %54 : vector<1x1x1x4xf32> to vector<2x1x14x4xf32>
    %56 = arith.addf %53, %55 : vector<2x1x14x4xf32>
    %cst_27 = arith.constant 0.000000e+00 : f32
    %57 = vector.broadcast %cst_27 : f32 to vector<2x1x14x4xf32>
    %58 = arith.maximumf %56, %57 : vector<2x1x14x4xf32>
    %59 = arith.truncf %58 : vector<2x1x14x4xf32> to vector<2x1x14x4xbf16>
    %60 = vector.extract_strided_slice %59 {offsets = [0, 0, 0, 0], sizes = [1, 1, 14, 4], strides = [1, 1, 1, 1]} : vector<2x1x14x4xbf16> to vector<1x1x14x4xbf16>
    %61 = vector.shape_cast %60 : vector<1x1x14x4xbf16> to vector<14x4xbf16>
    %62 = vector.extract_strided_slice %61 {offsets = [0, 0], sizes = [12, 4], strides = [1, 1]} : vector<14x4xbf16> to vector<12x4xbf16>
    %63 = vector.extract_strided_slice %0 {offsets = [1, 0, 0, 0], sizes = [1, 1, 4, 4], strides = [1, 1, 1, 1]} : vector<3x3x4x4xbf16> to vector<1x1x4x4xbf16>
    %64 = vector.shape_cast %63 : vector<1x1x4x4xbf16> to vector<4x4xbf16>
    %cst_28 = arith.constant dense<0.000000e+00> : vector<12x4xf32>
    %65 = tpu.matmul %62, %64, %cst_28 {dimension_numbers = #tpu.dot_dimension_numbers<[1], [0], [0], [1], [0, 0, 1, 1], [], []>} : vector<12x4xbf16>, vector<4x4xbf16>, vector<12x4xf32> -> vector<12x4xf32>
    %66 = arith.addf %33, %65 : vector<12x4xf32>
    %67 = vector.extract_strided_slice %61 {offsets = [1, 0], sizes = [12, 4], strides = [1, 1]} : vector<14x4xbf16> to vector<12x4xbf16>
    %68 = vector.extract_strided_slice %0 {offsets = [1, 1, 0, 0], sizes = [1, 1, 4, 4], strides = [1, 1, 1, 1]} : vector<3x3x4x4xbf16> to vector<1x1x4x4xbf16>
    %69 = vector.shape_cast %68 : vector<1x1x4x4xbf16> to vector<4x4xbf16>
    %cst_29 = arith.constant dense<0.000000e+00> : vector<12x4xf32>
    %70 = tpu.matmul %67, %69, %cst_29 {dimension_numbers = #tpu.dot_dimension_numbers<[1], [0], [0], [1], [0, 0, 1, 1], [], []>} : vector<12x4xbf16>, vector<4x4xbf16>, vector<12x4xf32> -> vector<12x4xf32>
    %71 = arith.addf %66, %70 : vector<12x4xf32>
    %72 = vector.extract_strided_slice %61 {offsets = [2, 0], sizes = [12, 4], strides = [1, 1]} : vector<14x4xbf16> to vector<12x4xbf16>
    %73 = vector.extract_strided_slice %0 {offsets = [1, 2, 0, 0], sizes = [1, 1, 4, 4], strides = [1, 1, 1, 1]} : vector<3x3x4x4xbf16> to vector<1x1x4x4xbf16>
    %74 = vector.shape_cast %73 : vector<1x1x4x4xbf16> to vector<4x4xbf16>
    %cst_30 = arith.constant dense<0.000000e+00> : vector<12x4xf32>
    %75 = tpu.matmul %72, %74, %cst_30 {dimension_numbers = #tpu.dot_dimension_numbers<[1], [0], [0], [1], [0, 0, 1, 1], [], []>} : vector<12x4xbf16>, vector<4x4xbf16>, vector<12x4xf32> -> vector<12x4xf32>
    %76 = arith.addf %71, %75 : vector<12x4xf32>
    %77 = vector.extract_strided_slice %59 {offsets = [1, 0, 0, 0], sizes = [1, 1, 14, 4], strides = [1, 1, 1, 1]} : vector<2x1x14x4xbf16> to vector<1x1x14x4xbf16>
    %78 = vector.shape_cast %77 : vector<1x1x14x4xbf16> to vector<14x4xbf16>
    %79 = vector.extract_strided_slice %78 {offsets = [0, 0], sizes = [12, 4], strides = [1, 1]} : vector<14x4xbf16> to vector<12x4xbf16>
    %80 = vector.extract_strided_slice %0 {offsets = [1, 0, 0, 0], sizes = [1, 1, 4, 4], strides = [1, 1, 1, 1]} : vector<3x3x4x4xbf16> to vector<1x1x4x4xbf16>
    %81 = vector.shape_cast %80 : vector<1x1x4x4xbf16> to vector<4x4xbf16>
    %cst_31 = arith.constant dense<0.000000e+00> : vector<12x4xf32>
    %82 = tpu.matmul %79, %81, %cst_31 {dimension_numbers = #tpu.dot_dimension_numbers<[1], [0], [0], [1], [0, 0, 1, 1], [], []>} : vector<12x4xbf16>, vector<4x4xbf16>, vector<12x4xf32> -> vector<12x4xf32>
    %83 = arith.addf %50, %82 : vector<12x4xf32>
    %84 = vector.extract_strided_slice %78 {offsets = [1, 0], sizes = [12, 4], strides = [1, 1]} : vector<14x4xbf16> to vector<12x4xbf16>
    %85 = vector.extract_strided_slice %0 {offsets = [1, 1, 0, 0], sizes = [1, 1, 4, 4], strides = [1, 1, 1, 1]} : vector<3x3x4x4xbf16> to vector<1x1x4x4xbf16>
    %86 = vector.shape_cast %85 : vector<1x1x4x4xbf16> to vector<4x4xbf16>
    %cst_32 = arith.constant dense<0.000000e+00> : vector<12x4xf32>
    %87 = tpu.matmul %84, %86, %cst_32 {dimension_numbers = #tpu.dot_dimension_numbers<[1], [0], [0], [1], [0, 0, 1, 1], [], []>} : vector<12x4xbf16>, vector<4x4xbf16>, vector<12x4xf32> -> vector<12x4xf32>
    %88 = arith.addf %83, %87 : vector<12x4xf32>
    %89 = vector.extract_strided_slice %78 {offsets = [2, 0], sizes = [12, 4], strides = [1, 1]} : vector<14x4xbf16> to vector<12x4xbf16>
    %90 = vector.extract_strided_slice %0 {offsets = [1, 2, 0, 0], sizes = [1, 1, 4, 4], strides = [1, 1, 1, 1]} : vector<3x3x4x4xbf16> to vector<1x1x4x4xbf16>
    %91 = vector.shape_cast %90 : vector<1x1x4x4xbf16> to vector<4x4xbf16>
    %cst_33 = arith.constant dense<0.000000e+00> : vector<12x4xf32>
    %92 = tpu.matmul %89, %91, %cst_33 {dimension_numbers = #tpu.dot_dimension_numbers<[1], [0], [0], [1], [0, 0, 1, 1], [], []>} : vector<12x4xbf16>, vector<4x4xbf16>, vector<12x4xf32> -> vector<12x4xf32>
    %93 = arith.addf %88, %92 : vector<12x4xf32>
    %94 = vector.shape_cast %1 : vector<1x4xf32> to vector<1x1x1x4xf32>
    %95 = vector.broadcast %94 : vector<1x1x1x4xf32> to vector<2x1x14x4xf32>
    %96 = arith.mulf %5, %95 : vector<2x1x14x4xf32>
    %97 = vector.shape_cast %2 : vector<1x4xf32> to vector<1x1x1x4xf32>
    %98 = vector.broadcast %97 : vector<1x1x1x4xf32> to vector<2x1x14x4xf32>
    %99 = arith.addf %96, %98 : vector<2x1x14x4xf32>
    %cst_34 = arith.constant 0.000000e+00 : f32
    %100 = vector.broadcast %cst_34 : f32 to vector<2x1x14x4xf32>
    %101 = arith.maximumf %99, %100 : vector<2x1x14x4xf32>
    %102 = arith.truncf %101 : vector<2x1x14x4xf32> to vector<2x1x14x4xbf16>
    %103 = vector.extract_strided_slice %102 {offsets = [0, 0, 0, 0], sizes = [1, 1, 14, 4], strides = [1, 1, 1, 1]} : vector<2x1x14x4xbf16> to vector<1x1x14x4xbf16>
    %104 = vector.shape_cast %103 : vector<1x1x14x4xbf16> to vector<14x4xbf16>
    %105 = vector.extract_strided_slice %104 {offsets = [0, 0], sizes = [12, 4], strides = [1, 1]} : vector<14x4xbf16> to vector<12x4xbf16>
    %106 = vector.extract_strided_slice %0 {offsets = [2, 0, 0, 0], sizes = [1, 1, 4, 4], strides = [1, 1, 1, 1]} : vector<3x3x4x4xbf16> to vector<1x1x4x4xbf16>
    %107 = vector.shape_cast %106 : vector<1x1x4x4xbf16> to vector<4x4xbf16>
    %cst_35 = arith.constant dense<0.000000e+00> : vector<12x4xf32>
    %108 = tpu.matmul %105, %107, %cst_35 {dimension_numbers = #tpu.dot_dimension_numbers<[1], [0], [0], [1], [0, 0, 1, 1], [], []>} : vector<12x4xbf16>, vector<4x4xbf16>, vector<12x4xf32> -> vector<12x4xf32>
    %109 = arith.addf %76, %108 : vector<12x4xf32>
    %110 = vector.extract_strided_slice %104 {offsets = [1, 0], sizes = [12, 4], strides = [1, 1]} : vector<14x4xbf16> to vector<12x4xbf16>
    %111 = vector.extract_strided_slice %0 {offsets = [2, 1, 0, 0], sizes = [1, 1, 4, 4], strides = [1, 1, 1, 1]} : vector<3x3x4x4xbf16> to vector<1x1x4x4xbf16>
    %112 = vector.shape_cast %111 : vector<1x1x4x4xbf16> to vector<4x4xbf16>
    %cst_36 = arith.constant dense<0.000000e+00> : vector<12x4xf32>
    %113 = tpu.matmul %110, %112, %cst_36 {dimension_numbers = #tpu.dot_dimension_numbers<[1], [0], [0], [1], [0, 0, 1, 1], [], []>} : vector<12x4xbf16>, vector<4x4xbf16>, vector<12x4xf32> -> vector<12x4xf32>
    %114 = arith.addf %109, %113 : vector<12x4xf32>
    %115 = vector.extract_strided_slice %104 {offsets = [2, 0], sizes = [12, 4], strides = [1, 1]} : vector<14x4xbf16> to vector<12x4xbf16>
    %116 = vector.extract_strided_slice %0 {offsets = [2, 2, 0, 0], sizes = [1, 1, 4, 4], strides = [1, 1, 1, 1]} : vector<3x3x4x4xbf16> to vector<1x1x4x4xbf16>
    %117 = vector.shape_cast %116 : vector<1x1x4x4xbf16> to vector<4x4xbf16>
    %cst_37 = arith.constant dense<0.000000e+00> : vector<12x4xf32>
    %118 = tpu.matmul %115, %117, %cst_37 {dimension_numbers = #tpu.dot_dimension_numbers<[1], [0], [0], [1], [0, 0, 1, 1], [], []>} : vector<12x4xbf16>, vector<4x4xbf16>, vector<12x4xf32> -> vector<12x4xf32>
    %119 = arith.addf %114, %118 : vector<12x4xf32>
    %120 = vector.extract_strided_slice %102 {offsets = [1, 0, 0, 0], sizes = [1, 1, 14, 4], strides = [1, 1, 1, 1]} : vector<2x1x14x4xbf16> to vector<1x1x14x4xbf16>
    %121 = vector.shape_cast %120 : vector<1x1x14x4xbf16> to vector<14x4xbf16>
    %122 = vector.extract_strided_slice %121 {offsets = [0, 0], sizes = [12, 4], strides = [1, 1]} : vector<14x4xbf16> to vector<12x4xbf16>
    %123 = vector.extract_strided_slice %0 {offsets = [2, 0, 0, 0], sizes = [1, 1, 4, 4], strides = [1, 1, 1, 1]} : vector<3x3x4x4xbf16> to vector<1x1x4x4xbf16>
    %124 = vector.shape_cast %123 : vector<1x1x4x4xbf16> to vector<4x4xbf16>
    %cst_38 = arith.constant dense<0.000000e+00> : vector<12x4xf32>
    %125 = tpu.matmul %122, %124, %cst_38 {dimension_numbers = #tpu.dot_dimension_numbers<[1], [0], [0], [1], [0, 0, 1, 1], [], []>} : vector<12x4xbf16>, vector<4x4xbf16>, vector<12x4xf32> -> vector<12x4xf32>
    %126 = arith.addf %93, %125 : vector<12x4xf32>
    %127 = vector.extract_strided_slice %121 {offsets = [1, 0], sizes = [12, 4], strides = [1, 1]} : vector<14x4xbf16> to vector<12x4xbf16>
    %128 = vector.extract_strided_slice %0 {offsets = [2, 1, 0, 0], sizes = [1, 1, 4, 4], strides = [1, 1, 1, 1]} : vector<3x3x4x4xbf16> to vector<1x1x4x4xbf16>
    %129 = vector.shape_cast %128 : vector<1x1x4x4xbf16> to vector<4x4xbf16>
    %cst_39 = arith.constant dense<0.000000e+00> : vector<12x4xf32>
    %130 = tpu.matmul %127, %129, %cst_39 {dimension_numbers = #tpu.dot_dimension_numbers<[1], [0], [0], [1], [0, 0, 1, 1], [], []>} : vector<12x4xbf16>, vector<4x4xbf16>, vector<12x4xf32> -> vector<12x4xf32>
    %131 = arith.addf %126, %130 : vector<12x4xf32>
    %132 = vector.extract_strided_slice %121 {offsets = [2, 0], sizes = [12, 4], strides = [1, 1]} : vector<14x4xbf16> to vector<12x4xbf16>
    %133 = vector.extract_strided_slice %0 {offsets = [2, 2, 0, 0], sizes = [1, 1, 4, 4], strides = [1, 1, 1, 1]} : vector<3x3x4x4xbf16> to vector<1x1x4x4xbf16>
    %134 = vector.shape_cast %133 : vector<1x1x4x4xbf16> to vector<4x4xbf16>
    %cst_40 = arith.constant dense<0.000000e+00> : vector<12x4xf32>
    %135 = tpu.matmul %132, %134, %cst_40 {dimension_numbers = #tpu.dot_dimension_numbers<[1], [0], [0], [1], [0, 0, 1, 1], [], []>} : vector<12x4xbf16>, vector<4x4xbf16>, vector<12x4xf32> -> vector<12x4xf32>
    %136 = arith.addf %131, %135 : vector<12x4xf32>
    %137 = vector.shape_cast %119 : vector<12x4xf32> to vector<1x12x4xf32>
    %138 = vector.shape_cast %136 : vector<12x4xf32> to vector<1x12x4xf32>
    %139 = tpu.concatenate %137, %138 in 0 : vector<1x12x4xf32>, vector<1x12x4xf32> -> vector<2x12x4xf32>
    %140 = vector.shape_cast %139 : vector<2x12x4xf32> to vector<2x1x12x4xf32>
    %c0_41 = arith.constant 0 : index
    %c0_42 = arith.constant 0 : index
    %c0_43 = arith.constant 0 : index
    %c0_44 = arith.constant 0 : index
    %141 = vector.load %arg7[%c0_41, %c0_42, %c0_43, %c0_44] : memref<2x1x12x4xf32, #tpu.memory_space<vmem>>, vector<2x1x12x4xf32>
    tpu.vector_store %arg7[%c0_41, %c0_42, %c0_43, %c0_44], %140 {strides = array<i32>} : memref<2x1x12x4xf32, #tpu.memory_space<vmem>>, vector<2x1x12x4xf32>,
    %cst_45 = arith.constant dense<0.000000e+00> : vector<4xf32>
    %142 = vector.multi_reduction <add>, %139, %cst_45 [0, 1] : vector<2x12x4xf32> to vector<4xf32>
    %143 = vector.shape_cast %142 : vector<4xf32> to vector<1x1x4xf32>
    %c0_46 = arith.constant 0 : index
    %c0_47 = arith.constant 0 : index
    %c0_48 = arith.constant 0 : index
    %144 = vector.load %arg8[%c0_46, %c0_47, %c0_48] : memref<1x1x4xf32, #tpu.memory_space<vmem>>, vector<1x1x4xf32>
    tpu.vector_store %arg8[%c0_46, %c0_47, %c0_48], %143 {strides = array<i32>} : memref<1x1x4xf32, #tpu.memory_space<vmem>>, vector<1x1x4xf32>,
    %145 = arith.mulf %139, %139 : vector<2x12x4xf32>
    %cst_49 = arith.constant dense<0.000000e+00> : vector<4xf32>
    %146 = vector.multi_reduction <add>, %145, %cst_49 [0, 1] : vector<2x12x4xf32> to vector<4xf32>
    %147 = vector.shape_cast %146 : vector<4xf32> to vector<1x1x4xf32>
    %c0_50 = arith.constant 0 : index
    %c0_51 = arith.constant 0 : index
    %c0_52 = arith.constant 0 : index
    %148 = vector.load %arg9[%c0_50, %c0_51, %c0_52] : memref<1x1x4xf32, #tpu.memory_space<vmem>>, vector<1x1x4xf32>
    tpu.vector_store %arg9[%c0_50, %c0_51, %c0_52], %147 {strides = array<i32>} : memref<1x1x4xf32, #tpu.memory_space<vmem>>, vector<1x1x4xf32>,
    return
  }
  func.func @transform_0(%arg0: i32) -> (i32, i32, i32, i32) {
    %c0_i32 = arith.constant 0 : i32
    %0 = arith.addi %arg0, %c0_i32 : i32
    %c0_i32_0 = arith.constant 0 : i32
    %c0_i32_1 = arith.constant 0 : i32
    %c0_i32_2 = arith.constant 0 : i32
    %c0_i32_3 = arith.constant 0 : i32
    return %c0_i32_0, %0, %c0_i32_1, %c0_i32_2 : i32, i32, i32, i32
  }
  func.func @transform_1(%arg0: i32) -> (i32, i32, i32, i32) {
    %c1_i32 = arith.constant 1 : i32
    %0 = arith.addi %arg0, %c1_i32 : i32
    %c0_i32 = arith.constant 0 : i32
    %c0_i32_0 = arith.constant 0 : i32
    %c0_i32_1 = arith.constant 0 : i32
    %c0_i32_2 = arith.constant 0 : i32
    return %c0_i32, %0, %c0_i32_0, %c0_i32_1 : i32, i32, i32, i32
  }
  func.func @transform_2(%arg0: i32) -> (i32, i32, i32, i32) {
    %c2_i32 = arith.constant 2 : i32
    %0 = arith.addi %arg0, %c2_i32 : i32
    %c0_i32 = arith.constant 0 : i32
    %c0_i32_0 = arith.constant 0 : i32
    %c0_i32_1 = arith.constant 0 : i32
    %c0_i32_2 = arith.constant 0 : i32
    return %c0_i32, %0, %c0_i32_0, %c0_i32_1 : i32, i32, i32, i32
  }
  func.func @transform_3(%arg0: i32) -> (i32, i32) {
    %c0_i32 = arith.constant 0 : i32
    %c0_i32_0 = arith.constant 0 : i32
    %c0_i32_1 = arith.constant 0 : i32
    return %c0_i32, %c0_i32_0 : i32, i32
  }
  func.func @transform_4(%arg0: i32) -> (i32, i32) {
    %c0_i32 = arith.constant 0 : i32
    %c0_i32_0 = arith.constant 0 : i32
    %c0_i32_1 = arith.constant 0 : i32
    return %c0_i32, %c0_i32_0 : i32, i32
  }
  func.func @transform_5(%arg0: i32) -> (i32, i32, i32, i32) {
    %c0_i32 = arith.constant 0 : i32
    %c0_i32_0 = arith.constant 0 : i32
    %c0_i32_1 = arith.constant 0 : i32
    %c0_i32_2 = arith.constant 0 : i32
    %c0_i32_3 = arith.constant 0 : i32
    return %c0_i32, %c0_i32_0, %c0_i32_1, %c0_i32_2 : i32, i32, i32, i32
  }
  func.func @transform_6(%arg0: i32) -> (i32, i32, i32, i32) {
    %c0_i32 = arith.constant 0 : i32
    %c0_i32_0 = arith.constant 0 : i32
    %c0_i32_1 = arith.constant 0 : i32
    %c0_i32_2 = arith.constant 0 : i32
    return %c0_i32, %arg0, %c0_i32_0, %c0_i32_1 : i32, i32, i32, i32
  }
  func.func @transform_7(%arg0: i32) -> (i32, i32, i32) {
    %c0_i32 = arith.constant 0 : i32
    %c0_i32_0 = arith.constant 0 : i32
    %c0_i32_1 = arith.constant 0 : i32
    return %arg0, %c0_i32, %c0_i32_0 : i32, i32, i32
  }
  func.func @transform_8(%arg0: i32) -> (i32, i32, i32) {
    %c0_i32 = arith.constant 0 : i32
    %c0_i32_0 = arith.constant 0 : i32
    %c0_i32_1 = arith.constant 0 : i32
    return %arg0, %c0_i32, %c0_i32_0 : i32, i32, i32
  }
}

module attributes {stable_mosaic.version = 11 : i64} {
  func.func @kernel(%arg0: i32, %arg1: memref<2x1x12x4xf32, #tpu.memory_space<vmem>>, %arg2: memref<1x4xf32, #tpu.memory_space<vmem>>, %arg3: memref<1x4xf32, #tpu.memory_space<vmem>>, %arg4: memref<2x1x12x4xf32, #tpu.memory_space<vmem>>) attributes {dimension_semantics = [#tpu.dimension_semantics<parallel>], iteration_bounds = array<i64: 12>, scalar_prefetch = 0 : i64, scratch_operands = 0 : i64, tpu.core_type = #tpu.core_type<tc>, window_params = [{transform_indices = @transform_0, window_bounds = array<i64: 2, 1, 12, 4>}, {pipeline_mode = #tpu.pipeline_mode<synchronous>, transform_indices = @transform_1, window_bounds = array<i64: 1, 4>}, {pipeline_mode = #tpu.pipeline_mode<synchronous>, transform_indices = @transform_2, window_bounds = array<i64: 1, 4>}, {transform_indices = @transform_3, window_bounds = array<i64: 2, 1, 12, 4>}]} {
    %c0 = arith.constant 0 : index
    %c0_0 = arith.constant 0 : index
    %c0_1 = arith.constant 0 : index
    %c0_2 = arith.constant 0 : index
    %0 = vector.load %arg1[%c0, %c0_0, %c0_1, %c0_2] : memref<2x1x12x4xf32, #tpu.memory_space<vmem>>, vector<2x1x12x4xf32>
    %c0_3 = arith.constant 0 : index
    %c0_4 = arith.constant 0 : index
    %1 = vector.load %arg2[%c0_3, %c0_4] : memref<1x4xf32, #tpu.memory_space<vmem>>, vector<1x4xf32>
    %2 = vector.shape_cast %1 : vector<1x4xf32> to vector<1x1x1x4xf32>
    %3 = vector.broadcast %2 : vector<1x1x1x4xf32> to vector<2x1x12x4xf32>
    %4 = arith.mulf %0, %3 : vector<2x1x12x4xf32>
    %c0_5 = arith.constant 0 : index
    %c0_6 = arith.constant 0 : index
    %5 = vector.load %arg3[%c0_5, %c0_6] : memref<1x4xf32, #tpu.memory_space<vmem>>, vector<1x4xf32>
    %6 = vector.shape_cast %5 : vector<1x4xf32> to vector<1x1x1x4xf32>
    %7 = vector.broadcast %6 : vector<1x1x1x4xf32> to vector<2x1x12x4xf32>
    %8 = arith.addf %4, %7 : vector<2x1x12x4xf32>
    %cst = arith.constant 0.000000e+00 : f32
    %9 = vector.broadcast %cst : f32 to vector<2x1x12x4xf32>
    %10 = arith.maximumf %8, %9 : vector<2x1x12x4xf32>
    %c0_7 = arith.constant 0 : index
    %c0_8 = arith.constant 0 : index
    %c0_9 = arith.constant 0 : index
    %c0_10 = arith.constant 0 : index
    %11 = vector.load %arg4[%c0_7, %c0_8, %c0_9, %c0_10] : memref<2x1x12x4xf32, #tpu.memory_space<vmem>>, vector<2x1x12x4xf32>
    tpu.vector_store %arg4[%c0_7, %c0_8, %c0_9, %c0_10], %10 {strides = array<i32>} : memref<2x1x12x4xf32, #tpu.memory_space<vmem>>, vector<2x1x12x4xf32>,
    return
  }
  func.func @transform_0(%arg0: i32) -> (i32, i32, i32, i32) {
    %c0_i32 = arith.constant 0 : i32
    %c0_i32_0 = arith.constant 0 : i32
    %c0_i32_1 = arith.constant 0 : i32
    %c0_i32_2 = arith.constant 0 : i32
    return %c0_i32, %arg0, %c0_i32_0, %c0_i32_1 : i32, i32, i32, i32
  }
  func.func @transform_1(%arg0: i32) -> (i32, i32) {
    %c0_i32 = arith.constant 0 : i32
    %c0_i32_0 = arith.constant 0 : i32
    %c0_i32_1 = arith.constant 0 : i32
    return %c0_i32, %c0_i32_0 : i32, i32
  }
  func.func @transform_2(%arg0: i32) -> (i32, i32) {
    %c0_i32 = arith.constant 0 : i32
    %c0_i32_0 = arith.constant 0 : i32
    %c0_i32_1 = arith.constant 0 : i32
    return %c0_i32, %c0_i32_0 : i32, i32
  }
  func.func @transform_3(%arg0: i32) -> (i32, i32, i32, i32) {
    %c0_i32 = arith.constant 0 : i32
    %c0_i32_0 = arith.constant 0 : i32
    %c0_i32_1 = arith.constant 0 : i32
    %c0_i32_2 = arith.constant 0 : i32
    return %c0_i32, %arg0, %c0_i32_0, %c0_i32_1 : i32, i32, i32, i32
  }
}

</mosaic_0001>

<llo_original>
// kernel: tile.8
$region0: #{tile.8}
  #allocation0 [shape = 's32[1]{0}', space=sflag, size = 0x4, scoped, tag = 'scoped memory for tile.8']
  %s0 = inlined_call_operand.vmem [shape: f32[4], index: 0, kind: input, shape index: {}]
  %s1 = inlined_call_operand.vmem [shape: f32[4,4], index: 1, kind: output, shape index: {}]
  // Predicated region
  $region2: #{tile.8} parent=0 // pred_check
    _
  $region3: #{tile.8} parent=0 // pred_check_branch
    %3 = sbr.rel (0) target = $region5
  $region4: #{tile.8} parent=0 // pred_region
    _
  $region5: #{tile.8} parent=0 // pred_fallthru
    _
  %v4 = vld [vmem:[%s0] ss:$0 sm:$0xff]
  %5 = vst [vmem:[%s1] sm:$0xf] %v4

// kernel: tile.9
$region0: #{tile.9}
  %s0 = inlined_call_operand.vmem [shape: f32[4,4], index: 0, kind: input, shape index: {}]
  %s1 = inlined_call_operand.vmem [shape: f32[1,16], index: 1, kind: output, shape index: {}]
  $region1: #{tile.9} parent=0
    #allocation0 [shape = 'u8[4096]{0}', space=vmem, size = 0x1000, scoped, tag = 'scoped mem for output reshape']
    #allocation1 [shape = 'u8[4096]{0}', space=vmem, size = 0x1000, scoped, tag = 'scoped mem for input reshape']
    %s3 = ssub.s32 16, 1
    %v4 = vld [vmem:[%s0] sm:%s3]
    %5 = vst [vmem:[#allocation1] sm:%s3] %v4
    %v6 = vld [vmem:[#allocation1] sm:$0x1]
    %vm7 = vcmask 31744
    %8 = vst.msk [vmem:[#allocation0] sm:$0x1] %vm7, %v6
    %s9 = scalar_lea.vmem [#allocation1], 3
    %v10 = vld [vmem:[%s9] sm:$0x1]
    %11 = vrot.lane.b32.xlu0 %v10, 12
    %v12 = vpop.permute.xlu0 %11
    %vm13 = vcmask 130144
    %14 = vst.msk [vmem:[#allocation0] sm:$0x1] %vm13, %v12
    %s15 = scalar_lea.vmem [#allocation1], 2
    %v16 = vld [vmem:[%s15] sm:$0x1]
    %17 = vrot.lane.b32.xlu0 %v16, 8
    %v18 = vpop.permute.xlu0 %17
    %vm19 = vcmask 97344
    %20 = vst.msk [vmem:[#allocation0] sm:$0x1] %vm19, %v18
    %s21 = scalar_lea.vmem [#allocation1], 1
    %v22 = vld [vmem:[%s21] sm:$0x1]
    %23 = vrot.lane.b32.xlu0 %v22, 4
    %v24 = vpop.permute.xlu0 %23
    %vm25 = vcmask 64544
    %26 = vst.msk [vmem:[#allocation0] sm:$0x1] %vm25, %v24
    %s28 = ssub.s32 2, 1
    %v29 = vld [vmem:[#allocation0] sm:%s28]
    %s31 = ssub.s32 2, 1
    %32 = vst [vmem:[%s1] sm:%s31] %v29

// kernel: up_forward.4
$region0: #{up_forward.4}
  #allocation0 [shape = 'u32[]', space=smem, size = 0x4, offset = 0x4, fixed_abs, tag = 'smem constant byte address 0x4 - core index']
  #allocation1 [shape = 'u32[72,128]{1,0:T(1,128)}', space=vmem, size = 0x9000, scoped, tag = 'internal scratch']
  %s0 = inlined_call_operand.vmem [shape: f32[2,8,8,8], index: 0, kind: input, shape index: {}]
  %s1 = inlined_call_operand.vmem [shape: bf16[8,16], index: 1, kind: input, shape index: {}]
  %s2 = inlined_call_operand.vmem [shape: f32[1,16], index: 2, kind: input, shape index: {}]
  %s3 = inlined_call_operand.vmem [shape: f32[2,8,8,16], index: 3, kind: output, shape index: {}]
  %s4 = sld [smem:[#allocation0]]
  $region117: #{up_forward.4} parent=0
    _
  %s6 = ssub.s32 1, %s4
  %s7 = scalar_select 0, %s6, %s4
  $region1: #{up_forward.4} parent=0
    #allocation2 [shape = 'u8[16384]{0}', space=vmem, size = 0x4000, scoped, tag = 'input window, operand 0']
    #allocation3 [shape = 'u8[16384]{0}', space=vmem, size = 0x4000, scoped, tag = 'output window, operand 0']
    loop: start=0, step=1, limit=10
    $region2: #{up_forward.4} parent=1 // loop_pre_header
      _
    $region3: #{up_forward.4} parent=1 // loop_header
      %s9 = sphi 0, %s13
      %p10 = scmp.ge.s32.totalorder %s9, 10
      %s19 = sphi 0, %s21
      %s22 = sphi 0, %s19
      %s23 = sphi 0, %s22
      %s39 = sphi 0, %s23
      %s43 = sphi 0, %s43
      %s45 = sphi 0, %s43
      %s46 = sphi 0, %s45
      %s60 = sphi 0, %s46
      %s64 = sphi 0, %s64
      %s66 = sphi 0, %s64
      %s67 = sphi 0, %s66
      %s81 = sphi 0, %s67
      %s87 = sphi 0, %s89
      %s90 = sphi 0, %s87
      %s91 = sphi 0, %s90
      %s107 = sphi 0, %s91
    $region4: #{up_forward.4} parent=1 // loop_header_branch
      %12 = sbr.rel (%p10) target = $region8
    $region5: #{up_forward.4} parent=1 // loop_body
      %s14 = ssub.s32 %s9, 1
      %s15 = ssub.s32 %s9, 2
      %s16 = sadd.s32 %s9, 1
      %s17 = ssub.s32 %s9, %s16
      %p18 = scmp.eq.s32.totalorder %s17, 0
      %s20 = sadd.s32 %s19, 1
      %s21 = scalar_select %p18, %s19, %s20
      %p24 = pneg %p18
      %p25 = scmp.eq.s32.totalorder %s9, 7
      %p26 = por %p24, %p25
      %p27 = scmp.ne.s32.totalorder %s19, %s22
      %p28 = scmp.eq.s32.totalorder %s9, 0
      %p29 = por %p27, %p28
      %p30 = scmp.ne.s32.totalorder %s19, %s22
      %p31 = scmp.eq.s32.totalorder %s14, 7
      %p32 = por %p30, %p31
      %p33 = scmp.ne.s32.totalorder %s22, %s23
      %p34 = scmp.eq.s32.totalorder %s14, 0
      %p35 = por %p33, %p34
      %p36 = scmp.ne.s32.totalorder %s22, %s23
      %p37 = scmp.eq.s32.totalorder %s15, 7
      %p38 = por %p36, %p37
      %p40 = scmp.ne.s32.totalorder %s23, %s39
      %p41 = scmp.eq.s32.totalorder %s15, 0
      %p42 = por %p40, %p41
      %s44 = sadd.s32 %s43, 1
      %p47 = scmp.eq.s32.totalorder %s9, 7
      %p48 = scmp.ne.s32.totalorder %s43, %s45
      %p49 = scmp.eq.s32.totalorder %s9, 0
      %p50 = por %p48, %p49
      %p51 = scmp.ne.s32.totalorder %s43, %s45
      %p52 = scmp.eq.s32.totalorder %s14, 7
      %p53 = por %p51, %p52
      %p54 = scmp.ne.s32.totalorder %s45, %s46
      %p55 = scmp.eq.s32.totalorder %s14, 0
      %p56 = por %p54, %p55
      %p57 = scmp.ne.s32.totalorder %s45, %s46
      %p58 = scmp.eq.s32.totalorder %s15, 7
      %p59 = por %p57, %p58
      %p61 = scmp.ne.s32.totalorder %s46, %s60
      %p62 = scmp.eq.s32.totalorder %s15, 0
      %p63 = por %p61, %p62
      %s65 = sadd.s32 %s64, 1
      %p68 = scmp.eq.s32.totalorder %s9, 7
      %p69 = scmp.ne.s32.totalorder %s64, %s66
      %p70 = scmp.eq.s32.totalorder %s9, 0
      %p71 = por %p69, %p70
      %p72 = scmp.ne.s32.totalorder %s64, %s66
      %p73 = scmp.eq.s32.totalorder %s14, 7
      %p74 = por %p72, %p73
      %p75 = scmp.ne.s32.totalorder %s66, %s67
      %p76 = scmp.eq.s32.totalorder %s14, 0
      %p77 = por %p75, %p76
      %p78 = scmp.ne.s32.totalorder %s66, %s67
      %p79 = scmp.eq.s32.totalorder %s15, 7
      %p80 = por %p78, %p79
      %p82 = scmp.ne.s32.totalorder %s67, %s81
      %p83 = scmp.eq.s32.totalorder %s15, 0
      %p84 = por %p82, %p83
      %s85 = ssub.s32 %s9, %s16
      %p86 = scmp.eq.s32.totalorder %s85, 0
      %s88 = sadd.s32 %s87, 1
      %s89 = scalar_select %p86, %s87, %s88
      %p92 = pneg %p86
      %p93 = scmp.eq.s32.totalorder %s9, 7
      %p94 = por %p92, %p93
      %p95 = scmp.ne.s32.totalorder %s87, %s90
      %p96 = scmp.eq.s32.totalorder %s9, 0
      %p97 = por %p95, %p96
      %p98 = scmp.ne.s32.totalorder %s87, %s90
      %p99 = scmp.eq.s32.totalorder %s14, 7
      %p100 = por %p98, %p99
      %p101 = scmp.ne.s32.totalorder %s90, %s91
      %p102 = scmp.eq.s32.totalorder %s14, 0
      %p103 = por %p101, %p102
      %p104 = scmp.ne.s32.totalorder %s90, %s91
      %p105 = scmp.eq.s32.totalorder %s15, 7
      %p106 = por %p104, %p105
      %p108 = scmp.ne.s32.totalorder %s91, %s107
      %p109 = scmp.eq.s32.totalorder %s15, 0
      %p110 = por %p108, %p109
      %p111 = scmp.le.s32.totalorder 1, %s9
      %p112 = scmp.lt.s32.totalorder %s9, 9
      %p113 = pnand %p111, %p112
      %p114 = pneg %p113
      // Predicated region
      $region9: #{up_forward.4} parent=5 // pred_check
        _
      $region10: #{up_forward.4} parent=5 // pred_check_branch
        %116 = sbr.rel (%p113) target = $region12
      $region11: #{up_forward.4} parent=5 // pred_region
        %s117 = ssub.s32 %s9, 1
        // Predicated region
        $region13: #{up_forward.4} parent=11 // pred_check
          %p118 = pneg %p56
        $region14: #{up_forward.4} parent=11 // pred_check_branch
          %120 = sbr.rel (%p118) target = $region16
        $region15: #{up_forward.4} parent=11 // pred_region
          _
        $region16: #{up_forward.4} parent=11 // pred_fallthru
          _
        // Predicated region
        $region17: #{up_forward.4} parent=11 // pred_check
          %p121 = pneg %p77
        $region18: #{up_forward.4} parent=11 // pred_check_branch
          %123 = sbr.rel (%p121) target = $region20
        $region19: #{up_forward.4} parent=11 // pred_region
          _
        $region20: #{up_forward.4} parent=11 // pred_fallthru
          _
      $region12: #{up_forward.4} parent=5 // pred_fallthru
        _
      %p124 = scmp.lt.s32.totalorder %s9, 8
      // Predicated region
      $region21: #{up_forward.4} parent=5 // pred_check
        %p125 = pneg %p124
      $region22: #{up_forward.4} parent=5 // pred_check_branch
        %127 = sbr.rel (%p125) target = $region24
      $region23: #{up_forward.4} parent=5 // pred_region
        // Predicated region
        $region25: #{up_forward.4} parent=23 // pred_check
          %p128 = pneg %p29
        $region26: #{up_forward.4} parent=23 // pred_check_branch
          %130 = sbr.rel (%p128) target = $region28
        $region27: #{up_forward.4} parent=23 // pred_region
          %s131 = sand.u32 %s19, 1
          %s132 = sand.u32 %s19, 1
          %s133 = smul.addr %s132, 16
          %s134 = scalar_lea.vmem [#allocation2], %s133
          %s135 = smul.addr %s9, 8
          %s136 = scalar_lea.vmem %s0, %s135
          // Predicated region
          $region29: #{up_forward.4} parent=27 // pred_check
            _
          $region30: #{up_forward.4} parent=27 // pred_check_branch
            %138 = sbr.rel (0) target = $region32
          $region31: #{up_forward.4} parent=27 // pred_region
            // Predicated region
            $region33: #{up_forward.4} parent=31 // pred_check
              _
            $region34: #{up_forward.4} parent=31 // pred_check_branch
              %140 = sbr.rel (0) target = $region36
            $region35: #{up_forward.4} parent=31 // pred_region
              // Predicated region
              $region48: #{up_forward.4} parent=35 // pred_check
                _
              $region49: #{up_forward.4} parent=35 // pred_check_branch
                %158 = sbr.rel (0) target = $region51
              $region50: #{up_forward.4} parent=35 // pred_region
                loop: start=0, step=1, limit=1
                $region52: #{up_forward.4} parent=50 // loop_pre_header
                  _
                $region53: #{up_forward.4} parent=50 // loop_header
                  %s160 = sphi 0, %s164
                  %p161 = scmp.ge.s32.totalorder %s160, 1
                  %s165 = sphi %s136, %s136
                  %s166 = sphi %s134, %s134
                $region54: #{up_forward.4} parent=50 // loop_header_branch
                  %163 = sbr.rel (%p161) target = $region58
                $region55: #{up_forward.4} parent=50 // loop_body
                  %v167 = vld [vmem:[%s165] sm:$0xff]
                  %168 = vst [vmem:[%s166] sm:$0xff] %v167
                  %v169 = vld [vmem:[%s165 + $0x40] sm:$0xff]
                  %170 = vst [vmem:[%s166 + $0x8] sm:$0xff] %v169
                $region56: #{up_forward.4} parent=50 // loop_footer
                  %s164 = sadd.s32 1, %s160
                $region57: #{up_forward.4} parent=50 // loop_footer_branch
                  %159 = sbr.rel target = $region53
                $region58: #{up_forward.4} parent=50 // loop_exit
                  _
              $region51: #{up_forward.4} parent=35 // pred_fallthru
                _
              // Predicated region
              $region59: #{up_forward.4} parent=35 // pred_check
                _
              $region60: #{up_forward.4} parent=35 // pred_check_branch
                %172 = sbr.rel target = $region62
              $region61: #{up_forward.4} parent=35 // pred_region
                _
              $region62: #{up_forward.4} parent=35 // pred_fallthru
                _
            $region36: #{up_forward.4} parent=31 // pred_fallthru
              _
            // Predicated region
            $region37: #{up_forward.4} parent=31 // pred_check
              _
            $region38: #{up_forward.4} parent=31 // pred_check_branch
              %142 = sbr.rel target = $region40
            $region39: #{up_forward.4} parent=31 // pred_region
              %s144 = ssub.s32 256, 1
              loop: start=0, step=1, limit=1
              $region41: #{up_forward.4} parent=39 // loop_pre_header
                _
              $region42: #{up_forward.4} parent=39 // loop_header
                %s146 = sphi 0, %s150
                %p147 = scmp.ge.s32.totalorder %s146, 1
                %s151 = sphi %s136, %s136
                %s152 = sphi %s134, %s134
              $region43: #{up_forward.4} parent=39 // loop_header_branch
                %149 = sbr.rel (%p147) target = $region47
              $region44: #{up_forward.4} parent=39 // loop_body
                %v153 = vld [vmem:[%s151] sm:%s144]
                %154 = vst [vmem:[%s152] sm:%s144] %v153
                %v155 = vld [vmem:[%s151 + $0x40] sm:%s144]
                %156 = vst [vmem:[%s152 + $0x8] sm:%s144] %v155
              $region45: #{up_forward.4} parent=39 // loop_footer
                %s150 = sadd.s32 1, %s146
              $region46: #{up_forward.4} parent=39 // loop_footer_branch
                %145 = sbr.rel target = $region42
              $region47: #{up_forward.4} parent=39 // loop_exit
                _
            $region40: #{up_forward.4} parent=31 // pred_fallthru
              _
          $region32: #{up_forward.4} parent=27 // pred_fallthru
            _
          %173 = vnop
        $region28: #{up_forward.4} parent=23 // pred_fallthru
          _
      $region24: #{up_forward.4} parent=5 // pred_fallthru
        _
      %p174 = scmp.le.s32.totalorder 1, %s9
      %p175 = scmp.lt.s32.totalorder %s9, 9
      %p176 = pnand %p174, %p175
      %p177 = pneg %p176
      // Predicated region
      $region63: #{up_forward.4} parent=5 // pred_check
        _
      $region64: #{up_forward.4} parent=5 // pred_check_branch
        %179 = sbr.rel (%p176) target = $region66
      $region65: #{up_forward.4} parent=5 // pred_region
        %s180 = ssub.s32 %s9, 1
        %s181 = sand.u32 %s22, 1
        %s182 = sand.u32 %s22, 1
        %s183 = smul.addr %s182, 16
        %s184 = scalar_lea.vmem [#allocation2], %s183
        // Predicated region
        $region67: #{up_forward.4} parent=65 // pred_check
          %p185 = pneg %p35
        $region68: #{up_forward.4} parent=65 // pred_check_branch
          %187 = sbr.rel (%p185) target = $region70
        $region69: #{up_forward.4} parent=65 // pred_region
          _
        $region70: #{up_forward.4} parent=65 // pred_fallthru
          _
        %s188 = sand.u32 %s22, 1
        %s189 = sand.u32 %s22, 1
        %s190 = smul.addr %s189, 16
        %s191 = scalar_lea.vmem [#allocation2], %s190
        %p192 = pneg %p35
        %p193 = pneg %p32
        %p194 = pneg %p56
        %p195 = pneg %p53
        %p196 = pneg %p77
        %p197 = pneg %p74
        %p198 = pneg %p103
        %p199 = pneg %p100
        %s200 = sand.u32 %s90, 1
        %s201 = sand.u32 %s90, 1
        %s202 = smul.addr %s201, 16
        %s203 = scalar_lea.vmem [#allocation3], %s202
        %v205 = vld [vmem:[%s1] sm:$0xf]
        %v206 = vld [vmem:[%s2] sm:$0x1]
        %v207 = vld [vmem:[%s184] sm:$0xff]
        %v208 = vld [vmem:[%s184 + $0x8] sm:$0xff]
        %v209 = vpack.c.bf16 %v207, %v207
        %v211 = vperm.slane %v206, 0
        %vm213 = vcmask 64512
        %v215 = vsel %vm213, %v209, 0
        %vm217 = vcmask 1043456
        %v219 = vsel %vm217, %v205, 0
        %221 = vmatpush.bf16.msra.mxu0 0
        %222 = vmatpush.bf16.msra.mxu0 0
        %223 = vmatpush.bf16.msra.mxu0 0
        %224 = vmatpush.bf16.msra.mxu0 0
        %225 = vmatpush.bf16.msra.mxu0 0
        %226 = vmatpush.bf16.msra.mxu0 0
        %227 = vmatpush.bf16.msra.mxu0 0
        %228 = vmatpush.bf16.msra.mxu0 %v219
        %229 = vmatmul.bf16.gmra.mxu0 %v215
        %v230 = vpop.f32.mrf.mxu0
        %v231 = vadd.f32 %v211, %v230
        %v232 = vpop.f32.mrf.mxu0
        %233 = vdwg.mxu0
        %v234 = vpack.c.bf16 %v208, %v208
        %v236 = vsel %vm213, %v234, 0
        %238 = vmatpush.bf16.msra.mxu0 0
        %239 = vmatpush.bf16.msra.mxu0 0
        %240 = vmatpush.bf16.msra.mxu0 0
        %241 = vmatpush.bf16.msra.mxu0 0
        %242 = vmatpush.bf16.msra.mxu0 0
        %243 = vmatpush.bf16.msra.mxu0 0
        %244 = vmatpush.bf16.msra.mxu0 0
        %245 = vmatpush.bf16.msra.mxu0 %v219
        %246 = vmatmul.bf16.gmra.mxu0 %v236
        %v247 = vpop.f32.mrf.mxu0
        %v248 = vadd.f32 %v211, %v247
        %v249 = vpop.f32.mrf.mxu0
        %250 = vdwg.mxu0
        %vm251 = vcmask 130048
        %252 = vst.msk [vmem:[%s203] sm:$0xff] %vm251, %v231
        %253 = vst.msk [vmem:[%s203 + $0x8] sm:$0xff] %vm251, %v248
        %s254 = sand.u32 %s90, 1
        %s255 = sand.u32 %s90, 1
        %s256 = smul.addr %s255, 16
        %s257 = scalar_lea.vmem [#allocation3], %s256
        // Predicated region
        $region71: #{up_forward.4} parent=65 // pred_check
          %p258 = pneg %p100
        $region72: #{up_forward.4} parent=65 // pred_check_branch
          %260 = sbr.rel (%p258) target = $region74
        $region73: #{up_forward.4} parent=65 // pred_region
          %s261 = smul.addr %s14, 8
          %s262 = scalar_lea.vmem %s3, %s261
          // Predicated region
          $region75: #{up_forward.4} parent=73 // pred_check
            _
          $region76: #{up_forward.4} parent=73 // pred_check_branch
            %264 = sbr.rel (0) target = $region78
          $region77: #{up_forward.4} parent=73 // pred_region
            // Predicated region
            $region79: #{up_forward.4} parent=77 // pred_check
              _
            $region80: #{up_forward.4} parent=77 // pred_check_branch
              %266 = sbr.rel (0) target = $region82
            $region81: #{up_forward.4} parent=77 // pred_region
              // Predicated region
              $region94: #{up_forward.4} parent=81 // pred_check
                _
              $region95: #{up_forward.4} parent=81 // pred_check_branch
                %284 = sbr.rel (0) target = $region97
              $region96: #{up_forward.4} parent=81 // pred_region
                loop: start=0, step=1, limit=1
                $region98: #{up_forward.4} parent=96 // loop_pre_header
                  _
                $region99: #{up_forward.4} parent=96 // loop_header
                  %s286 = sphi 0, %s290
                  %p287 = scmp.ge.s32.totalorder %s286, 1
                  %s291 = sphi %s257, %s257
                  %s292 = sphi %s262, %s262
                $region100: #{up_forward.4} parent=96 // loop_header_branch
                  %289 = sbr.rel (%p287) target = $region104
                $region101: #{up_forward.4} parent=96 // loop_body
                  %v293 = vld [vmem:[%s291] sm:$0xff]
                  %294 = vst [vmem:[%s292] sm:$0xff] %v293
                  %v295 = vld [vmem:[%s291 + $0x8] sm:$0xff]
                  %296 = vst [vmem:[%s292 + $0x40] sm:$0xff] %v295
                $region102: #{up_forward.4} parent=96 // loop_footer
                  %s290 = sadd.s32 1, %s286
                $region103: #{up_forward.4} parent=96 // loop_footer_branch
                  %285 = sbr.rel target = $region99
                $region104: #{up_forward.4} parent=96 // loop_exit
                  _
              $region97: #{up_forward.4} parent=81 // pred_fallthru
                _
              // Predicated region
              $region105: #{up_forward.4} parent=81 // pred_check
                _
              $region106: #{up_forward.4} parent=81 // pred_check_branch
                %298 = sbr.rel target = $region108
              $region107: #{up_forward.4} parent=81 // pred_region
                _
              $region108: #{up_forward.4} parent=81 // pred_fallthru
                _
            $region82: #{up_forward.4} parent=77 // pred_fallthru
              _
            // Predicated region
            $region83: #{up_forward.4} parent=77 // pred_check
              _
            $region84: #{up_forward.4} parent=77 // pred_check_branch
              %268 = sbr.rel target = $region86
            $region85: #{up_forward.4} parent=77 // pred_region
              %s270 = ssub.s32 256, 1
              loop: start=0, step=1, limit=1
              $region87: #{up_forward.4} parent=85 // loop_pre_header
                _
              $region88: #{up_forward.4} parent=85 // loop_header
                %s272 = sphi 0, %s276
                %p273 = scmp.ge.s32.totalorder %s272, 1
                %s277 = sphi %s257, %s257
                %s278 = sphi %s262, %s262
              $region89: #{up_forward.4} parent=85 // loop_header_branch
                %275 = sbr.rel (%p273) target = $region93
              $region90: #{up_forward.4} parent=85 // loop_body
                %v279 = vld [vmem:[%s277] sm:%s270]
                %280 = vst [vmem:[%s278] sm:%s270] %v279
                %v281 = vld [vmem:[%s277 + $0x8] sm:%s270]
                %282 = vst [vmem:[%s278 + $0x40] sm:%s270] %v281
              $region91: #{up_forward.4} parent=85 // loop_footer
                %s276 = sadd.s32 1, %s272
              $region92: #{up_forward.4} parent=85 // loop_footer_branch
                %271 = sbr.rel target = $region88
              $region93: #{up_forward.4} parent=85 // loop_exit
                _
            $region86: #{up_forward.4} parent=77 // pred_fallthru
              _
          $region78: #{up_forward.4} parent=73 // pred_fallthru
            _
          %299 = vnop
        $region74: #{up_forward.4} parent=65 // pred_fallthru
          _
      $region66: #{up_forward.4} parent=5 // pred_fallthru
        _
      %p300 = scmp.le.s32.totalorder 2, %s9
      // Predicated region
      $region109: #{up_forward.4} parent=5 // pred_check
        %p301 = pneg %p300
      $region110: #{up_forward.4} parent=5 // pred_check_branch
        %303 = sbr.rel (%p301) target = $region112
      $region111: #{up_forward.4} parent=5 // pred_region
        %s304 = ssub.s32 %s9, 2
        // Predicated region
        $region113: #{up_forward.4} parent=111 // pred_check
          %p305 = pneg %p106
        $region114: #{up_forward.4} parent=111 // pred_check_branch
          %307 = sbr.rel (%p305) target = $region116
        $region115: #{up_forward.4} parent=111 // pred_region
          %s308 = sand.u32 %s91, 1
          %s309 = sand.u32 %s91, 1
          %s310 = smul.addr %s309, 16
          %s311 = scalar_lea.vmem [#allocation3], %s310
        $region116: #{up_forward.4} parent=111 // pred_fallthru
          _
      $region112: #{up_forward.4} parent=5 // pred_fallthru
        _
    $region6: #{up_forward.4} parent=1 // loop_footer
      %s13 = sadd.s32 1, %s9
    $region7: #{up_forward.4} parent=1 // loop_footer_branch
      %8 = sbr.rel target = $region3
    $region8: #{up_forward.4} parent=1 // loop_exit
      _

// kernel: up_forward.7
$region0: #{up_forward.7}
  #allocation0 [shape = 'u32[]', space=smem, size = 0x4, offset = 0x4, fixed_abs, tag = 'smem constant byte address 0x4 - core index']
  #allocation1 [shape = 'u32[72,128]{1,0:T(1,128)}', space=vmem, size = 0x9000, scoped, tag = 'internal scratch']
  %s0 = inlined_call_operand.vmem [shape: f32[2,12,12,4], index: 0, kind: input, shape index: {}]
  %s1 = inlined_call_operand.vmem [shape: f32[1,4], index: 1, kind: input, shape index: {}]
  %s2 = inlined_call_operand.vmem [shape: f32[1,4], index: 2, kind: input, shape index: {}]
  %s3 = inlined_call_operand.vmem [shape: f32[2,12,12,4], index: 3, kind: output, shape index: {}]
  %s4 = sld [smem:[#allocation0]]
  $region117: #{up_forward.7} parent=0
    _
  %s6 = ssub.s32 1, %s4
  %s7 = scalar_select 0, %s6, %s4
  $region1: #{up_forward.7} parent=0
    #allocation2 [shape = 'u8[32768]{0}', space=vmem, size = 0x8000, scoped, tag = 'input window, operand 0']
    #allocation3 [shape = 'u8[32768]{0}', space=vmem, size = 0x8000, scoped, tag = 'output window, operand 0']
    loop: start=0, step=1, limit=14
    $region2: #{up_forward.7} parent=1 // loop_pre_header
      _
    $region3: #{up_forward.7} parent=1 // loop_header
      %s9 = sphi 0, %s13
      %p10 = scmp.ge.s32.totalorder %s9, 14
      %s19 = sphi 0, %s21
      %s22 = sphi 0, %s19
      %s23 = sphi 0, %s22
      %s39 = sphi 0, %s23
      %s43 = sphi 0, %s43
      %s45 = sphi 0, %s43
      %s46 = sphi 0, %s45
      %s60 = sphi 0, %s46
      %s64 = sphi 0, %s64
      %s66 = sphi 0, %s64
      %s67 = sphi 0, %s66
      %s81 = sphi 0, %s67
      %s87 = sphi 0, %s89
      %s90 = sphi 0, %s87
      %s91 = sphi 0, %s90
      %s107 = sphi 0, %s91
    $region4: #{up_forward.7} parent=1 // loop_header_branch
      %12 = sbr.rel (%p10) target = $region8
    $region5: #{up_forward.7} parent=1 // loop_body
      %s14 = ssub.s32 %s9, 1
      %s15 = ssub.s32 %s9, 2
      %s16 = sadd.s32 %s9, 1
      %s17 = ssub.s32 %s9, %s16
      %p18 = scmp.eq.s32.totalorder %s17, 0
      %s20 = sadd.s32 %s19, 1
      %s21 = scalar_select %p18, %s19, %s20
      %p24 = pneg %p18
      %p25 = scmp.eq.s32.totalorder %s9, 11
      %p26 = por %p24, %p25
      %p27 = scmp.ne.s32.totalorder %s19, %s22
      %p28 = scmp.eq.s32.totalorder %s9, 0
      %p29 = por %p27, %p28
      %p30 = scmp.ne.s32.totalorder %s19, %s22
      %p31 = scmp.eq.s32.totalorder %s14, 11
      %p32 = por %p30, %p31
      %p33 = scmp.ne.s32.totalorder %s22, %s23
      %p34 = scmp.eq.s32.totalorder %s14, 0
      %p35 = por %p33, %p34
      %p36 = scmp.ne.s32.totalorder %s22, %s23
      %p37 = scmp.eq.s32.totalorder %s15, 11
      %p38 = por %p36, %p37
      %p40 = scmp.ne.s32.totalorder %s23, %s39
      %p41 = scmp.eq.s32.totalorder %s15, 0
      %p42 = por %p40, %p41
      %s44 = sadd.s32 %s43, 1
      %p47 = scmp.eq.s32.totalorder %s9, 11
      %p48 = scmp.ne.s32.totalorder %s43, %s45
      %p49 = scmp.eq.s32.totalorder %s9, 0
      %p50 = por %p48, %p49
      %p51 = scmp.ne.s32.totalorder %s43, %s45
      %p52 = scmp.eq.s32.totalorder %s14, 11
      %p53 = por %p51, %p52
      %p54 = scmp.ne.s32.totalorder %s45, %s46
      %p55 = scmp.eq.s32.totalorder %s14, 0
      %p56 = por %p54, %p55
      %p57 = scmp.ne.s32.totalorder %s45, %s46
      %p58 = scmp.eq.s32.totalorder %s15, 11
      %p59 = por %p57, %p58
      %p61 = scmp.ne.s32.totalorder %s46, %s60
      %p62 = scmp.eq.s32.totalorder %s15, 0
      %p63 = por %p61, %p62
      %s65 = sadd.s32 %s64, 1
      %p68 = scmp.eq.s32.totalorder %s9, 11
      %p69 = scmp.ne.s32.totalorder %s64, %s66
      %p70 = scmp.eq.s32.totalorder %s9, 0
      %p71 = por %p69, %p70
      %p72 = scmp.ne.s32.totalorder %s64, %s66
      %p73 = scmp.eq.s32.totalorder %s14, 11
      %p74 = por %p72, %p73
      %p75 = scmp.ne.s32.totalorder %s66, %s67
      %p76 = scmp.eq.s32.totalorder %s14, 0
      %p77 = por %p75, %p76
      %p78 = scmp.ne.s32.totalorder %s66, %s67
      %p79 = scmp.eq.s32.totalorder %s15, 11
      %p80 = por %p78, %p79
      %p82 = scmp.ne.s32.totalorder %s67, %s81
      %p83 = scmp.eq.s32.totalorder %s15, 0
      %p84 = por %p82, %p83
      %s85 = ssub.s32 %s9, %s16
      %p86 = scmp.eq.s32.totalorder %s85, 0
      %s88 = sadd.s32 %s87, 1
      %s89 = scalar_select %p86, %s87, %s88
      %p92 = pneg %p86
      %p93 = scmp.eq.s32.totalorder %s9, 11
      %p94 = por %p92, %p93
      %p95 = scmp.ne.s32.totalorder %s87, %s90
      %p96 = scmp.eq.s32.totalorder %s9, 0
      %p97 = por %p95, %p96
      %p98 = scmp.ne.s32.totalorder %s87, %s90
      %p99 = scmp.eq.s32.totalorder %s14, 11
      %p100 = por %p98, %p99
      %p101 = scmp.ne.s32.totalorder %s90, %s91
      %p102 = scmp.eq.s32.totalorder %s14, 0
      %p103 = por %p101, %p102
      %p104 = scmp.ne.s32.totalorder %s90, %s91
      %p105 = scmp.eq.s32.totalorder %s15, 11
      %p106 = por %p104, %p105
      %p108 = scmp.ne.s32.totalorder %s91, %s107
      %p109 = scmp.eq.s32.totalorder %s15, 0
      %p110 = por %p108, %p109
      %p111 = scmp.le.s32.totalorder 1, %s9
      %p112 = scmp.lt.s32.totalorder %s9, 13
      %p113 = pnand %p111, %p112
      %p114 = pneg %p113
      // Predicated region
      $region9: #{up_forward.7} parent=5 // pred_check
        _
      $region10: #{up_forward.7} parent=5 // pred_check_branch
        %116 = sbr.rel (%p113) target = $region12
      $region11: #{up_forward.7} parent=5 // pred_region
        %s117 = ssub.s32 %s9, 1
        // Predicated region
        $region13: #{up_forward.7} parent=11 // pred_check
          %p118 = pneg %p56
        $region14: #{up_forward.7} parent=11 // pred_check_branch
          %120 = sbr.rel (%p118) target = $region16
        $region15: #{up_forward.7} parent=11 // pred_region
          _
        $region16: #{up_forward.7} parent=11 // pred_fallthru
          _
        // Predicated region
        $region17: #{up_forward.7} parent=11 // pred_check
          %p121 = pneg %p77
        $region18: #{up_forward.7} parent=11 // pred_check_branch
          %123 = sbr.rel (%p121) target = $region20
        $region19: #{up_forward.7} parent=11 // pred_region
          _
        $region20: #{up_forward.7} parent=11 // pred_fallthru
          _
      $region12: #{up_forward.7} parent=5 // pred_fallthru
        _
      %p124 = scmp.lt.s32.totalorder %s9, 12
      // Predicated region
      $region21: #{up_forward.7} parent=5 // pred_check
        %p125 = pneg %p124
      $region22: #{up_forward.7} parent=5 // pred_check_branch
        %127 = sbr.rel (%p125) target = $region24
      $region23: #{up_forward.7} parent=5 // pred_region
        // Predicated region
        $region25: #{up_forward.7} parent=23 // pred_check
          %p128 = pneg %p29
        $region26: #{up_forward.7} parent=23 // pred_check_branch
          %130 = sbr.rel (%p128) target = $region28
        $region27: #{up_forward.7} parent=23 // pred_region
          %s131 = sand.u32 %s19, 1
          %s132 = sand.u32 %s19, 1
          %s133 = smul.addr %s132, 32
          %s134 = scalar_lea.vmem [#allocation2], %s133
          %s135 = smul.addr %s9, 2
          %s136 = smul.addr %s135, 8
          %s137 = scalar_lea.vmem %s0, %s136
          // Predicated region
          $region29: #{up_forward.7} parent=27 // pred_check
            _
          $region30: #{up_forward.7} parent=27 // pred_check_branch
            %139 = sbr.rel (0) target = $region32
          $region31: #{up_forward.7} parent=27 // pred_region
            // Predicated region
            $region33: #{up_forward.7} parent=31 // pred_check
              _
            $region34: #{up_forward.7} parent=31 // pred_check_branch
              %141 = sbr.rel (0) target = $region36
            $region35: #{up_forward.7} parent=31 // pred_region
              // Predicated region
              $region48: #{up_forward.7} parent=35 // pred_check
                _
              $region49: #{up_forward.7} parent=35 // pred_check_branch
                %163 = sbr.rel (0) target = $region51
              $region50: #{up_forward.7} parent=35 // pred_region
                loop: start=0, step=1, limit=1
                $region52: #{up_forward.7} parent=50 // loop_pre_header
                  _
                $region53: #{up_forward.7} parent=50 // loop_header
                  %s165 = sphi 0, %s169
                  %p166 = scmp.ge.s32.totalorder %s165, 1
                  %s170 = sphi %s137, %s137
                  %s171 = sphi %s134, %s134
                $region54: #{up_forward.7} parent=50 // loop_header_branch
                  %168 = sbr.rel (%p166) target = $region58
                $region55: #{up_forward.7} parent=50 // loop_body
                  %v172 = vld [vmem:[%s170] sm:$0xff]
                  %173 = vst [vmem:[%s171] sm:$0xff] %v172
                  %v174 = vld [vmem:[%s170 + $0x8] sm:$0xff]
                  %175 = vst [vmem:[%s171 + $0x8] sm:$0xff] %v174
                  %v176 = vld [vmem:[%s170 + $0xc0] sm:$0xff]
                  %177 = vst [vmem:[%s171 + $0x10] sm:$0xff] %v176
                  %v178 = vld [vmem:[%s170 + $0xc8] sm:$0xff]
                  %179 = vst [vmem:[%s171 + $0x18] sm:$0xff] %v178
                $region56: #{up_forward.7} parent=50 // loop_footer
                  %s169 = sadd.s32 1, %s165
                $region57: #{up_forward.7} parent=50 // loop_footer_branch
                  %164 = sbr.rel target = $region53
                $region58: #{up_forward.7} parent=50 // loop_exit
                  _
              $region51: #{up_forward.7} parent=35 // pred_fallthru
                _
              // Predicated region
              $region59: #{up_forward.7} parent=35 // pred_check
                _
              $region60: #{up_forward.7} parent=35 // pred_check_branch
                %181 = sbr.rel target = $region62
              $region61: #{up_forward.7} parent=35 // pred_region
                _
              $region62: #{up_forward.7} parent=35 // pred_fallthru
                _
            $region36: #{up_forward.7} parent=31 // pred_fallthru
              _
            // Predicated region
            $region37: #{up_forward.7} parent=31 // pred_check
              _
            $region38: #{up_forward.7} parent=31 // pred_check_branch
              %143 = sbr.rel target = $region40
            $region39: #{up_forward.7} parent=31 // pred_region
              %s145 = ssub.s32 256, 1
              loop: start=0, step=1, limit=1
              $region41: #{up_forward.7} parent=39 // loop_pre_header
                _
              $region42: #{up_forward.7} parent=39 // loop_header
                %s147 = sphi 0, %s151
                %p148 = scmp.ge.s32.totalorder %s147, 1
                %s152 = sphi %s137, %s137
                %s153 = sphi %s134, %s134
              $region43: #{up_forward.7} parent=39 // loop_header_branch
                %150 = sbr.rel (%p148) target = $region47
              $region44: #{up_forward.7} parent=39 // loop_body
                %v154 = vld [vmem:[%s152] sm:%s145]
                %155 = vst [vmem:[%s153] sm:%s145] %v154
                %v156 = vld [vmem:[%s152 + $0x8] sm:%s145]
                %157 = vst [vmem:[%s153 + $0x8] sm:%s145] %v156
                %v158 = vld [vmem:[%s152 + $0xc0] sm:%s145]
                %159 = vst [vmem:[%s153 + $0x10] sm:%s145] %v158
                %v160 = vld [vmem:[%s152 + $0xc8] sm:%s145]
                %161 = vst [vmem:[%s153 + $0x18] sm:%s145] %v160
              $region45: #{up_forward.7} parent=39 // loop_footer
                %s151 = sadd.s32 1, %s147
              $region46: #{up_forward.7} parent=39 // loop_footer_branch
                %146 = sbr.rel target = $region42
              $region47: #{up_forward.7} parent=39 // loop_exit
                _
            $region40: #{up_forward.7} parent=31 // pred_fallthru
              _
          $region32: #{up_forward.7} parent=27 // pred_fallthru
            _
          %182 = vnop
        $region28: #{up_forward.7} parent=23 // pred_fallthru
          _
      $region24: #{up_forward.7} parent=5 // pred_fallthru
        _
      %p183 = scmp.le.s32.totalorder 1, %s9
      %p184 = scmp.lt.s32.totalorder %s9, 13
      %p185 = pnand %p183, %p184
      %p186 = pneg %p185
      // Predicated region
      $region63: #{up_forward.7} parent=5 // pred_check
        _
      $region64: #{up_forward.7} parent=5 // pred_check_branch
        %188 = sbr.rel (%p185) target = $region66
      $region65: #{up_forward.7} parent=5 // pred_region
        %s189 = ssub.s32 %s9, 1
        %s190 = sand.u32 %s22, 1
        %s191 = sand.u32 %s22, 1
        %s192 = smul.addr %s191, 32
        %s193 = scalar_lea.vmem [#allocation2], %s192
        // Predicated region
        $region67: #{up_forward.7} parent=65 // pred_check
          %p194 = pneg %p35
        $region68: #{up_forward.7} parent=65 // pred_check_branch
          %196 = sbr.rel (%p194) target = $region70
        $region69: #{up_forward.7} parent=65 // pred_region
          _
        $region70: #{up_forward.7} parent=65 // pred_fallthru
          _
        %s197 = sand.u32 %s22, 1
        %s198 = sand.u32 %s22, 1
        %s199 = smul.addr %s198, 32
        %s200 = scalar_lea.vmem [#allocation2], %s199
        %p201 = pneg %p35
        %p202 = pneg %p32
        %p203 = pneg %p56
        %p204 = pneg %p53
        %p205 = pneg %p77
        %p206 = pneg %p74
        %p207 = pneg %p103
        %p208 = pneg %p100
        %s209 = sand.u32 %s90, 1
        %s210 = sand.u32 %s90, 1
        %s211 = smul.addr %s210, 32
        %s212 = scalar_lea.vmem [#allocation3], %s211
        %v213 = vld [vmem:[%s193] sm:$0xff]
        %v214 = vld [vmem:[%s193 + $0x8] sm:$0xf]
        %v215 = vld [vmem:[%s193 + $0x10] sm:$0xff]
        %v216 = vld [vmem:[%s193 + $0x18] sm:$0xf]
        %v217 = vld [vmem:[%s1] sm:$0x1]
        %v219 = vperm.slane %v217, 0
        %v221 = vmul.f32 %v213, %v219
        %v222 = vmul.f32 %v214, %v219
        %v223 = vmul.f32 %v215, %v219
        %v224 = vmul.f32 %v216, %v219
        %v225 = vld [vmem:[%s2] sm:$0x1]
        %v227 = vperm.slane %v225, 0
        %v229 = vadd.f32 %v221, %v227
        %v230 = vadd.f32 %v222, %v227
        %v231 = vadd.f32 %v223, %v227
        %v232 = vadd.f32 %v224, %v227
        %v233 = vmax.f32 %v229, 0.0
        %v234 = vmax.f32 %v230, 0.0
        %v235 = vmax.f32 %v231, 0.0
        %v236 = vmax.f32 %v232, 0.0
        %vm237 = vcmask 31744
        %238 = vst.msk [vmem:[%s212] sm:$0xff] %vm237, %v233
        %vm239 = vcmask 27648
        %240 = vst.msk [vmem:[%s212 + $0x8] sm:$0xf] %vm239, %v234
        %241 = vst.msk [vmem:[%s212 + $0x10] sm:$0xff] %vm237, %v235
        %242 = vst.msk [vmem:[%s212 + $0x18] sm:$0xf] %vm239, %v236
        %s243 = sand.u32 %s90, 1
        %s244 = sand.u32 %s90, 1
        %s245 = smul.addr %s244, 32
        %s246 = scalar_lea.vmem [#allocation3], %s245
        // Predicated region
        $region71: #{up_forward.7} parent=65 // pred_check
          %p247 = pneg %p100
        $region72: #{up_forward.7} parent=65 // pred_check_branch
          %249 = sbr.rel (%p247) target = $region74
        $region73: #{up_forward.7} parent=65 // pred_region
          %s250 = smul.addr %s14, 2
          %s251 = smul.addr %s250, 8
          %s252 = scalar_lea.vmem %s3, %s251
          // Predicated region
          $region75: #{up_forward.7} parent=73 // pred_check
            _
          $region76: #{up_forward.7} parent=73 // pred_check_branch
            %254 = sbr.rel (0) target = $region78
          $region77: #{up_forward.7} parent=73 // pred_region
            // Predicated region
            $region79: #{up_forward.7} parent=77 // pred_check
              _
            $region80: #{up_forward.7} parent=77 // pred_check_branch
              %256 = sbr.rel (0) target = $region82
            $region81: #{up_forward.7} parent=77 // pred_region
              // Predicated region
              $region94: #{up_forward.7} parent=81 // pred_check
                _
              $region95: #{up_forward.7} parent=81 // pred_check_branch
                %278 = sbr.rel (0) target = $region97
              $region96: #{up_forward.7} parent=81 // pred_region
                loop: start=0, step=1, limit=1
                $region98: #{up_forward.7} parent=96 // loop_pre_header
                  _
                $region99: #{up_forward.7} parent=96 // loop_header
                  %s280 = sphi 0, %s284
                  %p281 = scmp.ge.s32.totalorder %s280, 1
                  %s285 = sphi %s246, %s246
                  %s286 = sphi %s252, %s252
                $region100: #{up_forward.7} parent=96 // loop_header_branch
                  %283 = sbr.rel (%p281) target = $region104
                $region101: #{up_forward.7} parent=96 // loop_body
                  %v287 = vld [vmem:[%s285] sm:$0xff]
                  %288 = vst [vmem:[%s286] sm:$0xff] %v287
                  %v289 = vld [vmem:[%s285 + $0x8] sm:$0xff]
                  %290 = vst [vmem:[%s286 + $0x8] sm:$0xff] %v289
                  %v291 = vld [vmem:[%s285 + $0x10] sm:$0xff]
                  %292 = vst [vmem:[%s286 + $0xc0] sm:$0xff] %v291
                  %v293 = vld [vmem:[%s285 + $0x18] sm:$0xff]
                  %294 = vst [vmem:[%s286 + $0xc8] sm:$0xff] %v293
                $region102: #{up_forward.7} parent=96 // loop_footer
                  %s284 = sadd.s32 1, %s280
                $region103: #{up_forward.7} parent=96 // loop_footer_branch
                  %279 = sbr.rel target = $region99
                $region104: #{up_forward.7} parent=96 // loop_exit
                  _
              $region97: #{up_forward.7} parent=81 // pred_fallthru
                _
              // Predicated region
              $region105: #{up_forward.7} parent=81 // pred_check
                _
              $region106: #{up_forward.7} parent=81 // pred_check_branch
                %296 = sbr.rel target = $region108
              $region107: #{up_forward.7} parent=81 // pred_region
                _
              $region108: #{up_forward.7} parent=81 // pred_fallthru
                _
            $region82: #{up_forward.7} parent=77 // pred_fallthru
              _
            // Predicated region
            $region83: #{up_forward.7} parent=77 // pred_check
              _
            $region84: #{up_forward.7} parent=77 // pred_check_branch
              %258 = sbr.rel target = $region86
            $region85: #{up_forward.7} parent=77 // pred_region
              %s260 = ssub.s32 256, 1
              loop: start=0, step=1, limit=1
              $region87: #{up_forward.7} parent=85 // loop_pre_header
                _
              $region88: #{up_forward.7} parent=85 // loop_header
                %s262 = sphi 0, %s266
                %p263 = scmp.ge.s32.totalorder %s262, 1
                %s267 = sphi %s246, %s246
                %s268 = sphi %s252, %s252
              $region89: #{up_forward.7} parent=85 // loop_header_branch
                %265 = sbr.rel (%p263) target = $region93
              $region90: #{up_forward.7} parent=85 // loop_body
                %v269 = vld [vmem:[%s267] sm:%s260]
                %270 = vst [vmem:[%s268] sm:%s260] %v269
                %v271 = vld [vmem:[%s267 + $0x8] sm:%s260]
                %272 = vst [vmem:[%s268 + $0x8] sm:%s260] %v271
                %v273 = vld [vmem:[%s267 + $0x10] sm:%s260]
                %274 = vst [vmem:[%s268 + $0xc0] sm:%s260] %v273
                %v275 = vld [vmem:[%s267 + $0x18] sm:%s260]
                %276 = vst [vmem:[%s268 + $0xc8] sm:%s260] %v275
              $region91: #{up_forward.7} parent=85 // loop_footer
                %s266 = sadd.s32 1, %s262
              $region92: #{up_forward.7} parent=85 // loop_footer_branch
                %261 = sbr.rel target = $region88
              $region93: #{up_forward.7} parent=85 // loop_exit
                _
            $region86: #{up_forward.7} parent=77 // pred_fallthru
              _
          $region78: #{up_forward.7} parent=73 // pred_fallthru
            _
          %297 = vnop
        $region74: #{up_forward.7} parent=65 // pred_fallthru
          _
      $region66: #{up_forward.7} parent=5 // pred_fallthru
        _
      %p298 = scmp.le.s32.totalorder 2, %s9
      // Predicated region
      $region109: #{up_forward.7} parent=5 // pred_check
        %p299 = pneg %p298
      $region110: #{up_forward.7} parent=5 // pred_check_branch
        %301 = sbr.rel (%p299) target = $region112
      $region111: #{up_forward.7} parent=5 // pred_region
        %s302 = ssub.s32 %s9, 2
        // Predicated region
        $region113: #{up_forward.7} parent=111 // pred_check
          %p303 = pneg %p106
        $region114: #{up_forward.7} parent=111 // pred_check_branch
          %305 = sbr.rel (%p303) target = $region116
        $region115: #{up_forward.7} parent=111 // pred_region
          %s306 = sand.u32 %s91, 1
          %s307 = sand.u32 %s91, 1
          %s308 = smul.addr %s307, 32
          %s309 = scalar_lea.vmem [#allocation3], %s308
        $region116: #{up_forward.7} parent=111 // pred_fallthru
          _
      $region112: #{up_forward.7} parent=5 // pred_fallthru
        _
    $region6: #{up_forward.7} parent=1 // loop_footer
      %s13 = sadd.s32 1, %s9
    $region7: #{up_forward.7} parent=1 // loop_footer_branch
      %8 = sbr.rel target = $region3
    $region8: #{up_forward.7} parent=1 // loop_exit
      _

// kernel: up_forward.5
$region0: #{up_forward.5}
  #allocation0 [shape = 'u32[]', space=smem, size = 0x4, offset = 0x4, fixed_abs, tag = 'smem constant byte address 0x4 - core index']
  #allocation1 [shape = 'u32[72,128]{1,0:T(1,128)}', space=vmem, size = 0x9000, scoped, tag = 'internal scratch']
  %s0 = inlined_call_operand.vmem [shape: f32[2,16,16,4], index: 0, kind: input, shape index: {}, may-alias: {0,1,2}]
  %s1 = inlined_call_operand.vmem [shape: f32[2,16,16,4], index: 1, kind: input, shape index: {}, may-alias: {0,1,2}]
  %s2 = inlined_call_operand.vmem [shape: f32[2,16,16,4], index: 2, kind: input, shape index: {}, may-alias: {0,1,2}]
  %s3 = inlined_call_operand.vmem [shape: f32[2,20,20,4], index: 3, kind: input, shape index: {}, may-alias: {3,4,5}]
  %s4 = inlined_call_operand.vmem [shape: f32[2,20,20,4], index: 4, kind: input, shape index: {}, may-alias: {3,4,5}]
  %s5 = inlined_call_operand.vmem [shape: f32[2,20,20,4], index: 5, kind: input, shape index: {}, may-alias: {3,4,5}]
  %s6 = inlined_call_operand.vmem [shape: bf16[3,3,4,4], index: 6, kind: input, shape index: {}]
  %s7 = inlined_call_operand.vmem [shape: bf16[3,3,4,4], index: 7, kind: input, shape index: {}]
  %s8 = inlined_call_operand.vmem [shape: f32[2,14,14,4], index: 8, kind: output, shape index: {0}]
  %s9 = inlined_call_operand.vmem [shape: f32[14,1,4], index: 9, kind: output, shape index: {1}]
  %s10 = inlined_call_operand.vmem [shape: f32[14,1,4], index: 10, kind: output, shape index: {2}]
  %11 = xla_tuple %s8, %s9, %s10
  %s12 = sld [smem:[#allocation0]]
  $region343: #{up_forward.5} parent=0
    _
  %s14 = ssub.s32 1, %s12
  %s15 = scalar_select 0, %s14, %s12
  $region1: #{up_forward.5} parent=0
    #allocation2 [shape = 'u8[32768]{0}', space=vmem, size = 0x8000, scoped, tag = 'input window, operand 0']
    #allocation3 [shape = 'u8[32768]{0}', space=vmem, size = 0x8000, scoped, tag = 'input window, operand 1']
    #allocation4 [shape = 'u8[32768]{0}', space=vmem, size = 0x8000, scoped, tag = 'input window, operand 2']
    #allocation5 [shape = 'u8[49152]{0}', space=vmem, size = 0xc000, scoped, tag = 'input window, operand 3']
    #allocation6 [shape = 'u8[49152]{0}', space=vmem, size = 0xc000, scoped, tag = 'input window, operand 4']
    #allocation7 [shape = 'u8[49152]{0}', space=vmem, size = 0xc000, scoped, tag = 'input window, operand 5']
    #allocation8 [shape = 'u8[32768]{0}', space=vmem, size = 0x8000, scoped, tag = 'output window, operand 0']
    loop: start=0, step=1, limit=16
    $region2: #{up_forward.5} parent=1 // loop_pre_header
      _
    $region3: #{up_forward.5} parent=1 // loop_header
      %s17 = sphi 0, %s21
      %p18 = scmp.ge.s32.totalorder %s17, 16
      %s27 = sphi 0, %s29
      %s30 = sphi 0, %s27
      %s31 = sphi 0, %s30
      %s47 = sphi 0, %s31
      %s55 = sphi 0, %s57
      %s58 = sphi 0, %s55
      %s59 = sphi 0, %s58
      %s75 = sphi 0, %s59
      %s83 = sphi 0, %s85
      %s86 = sphi 0, %s83
      %s87 = sphi 0, %s86
      %s103 = sphi 0, %s87
      %s111 = sphi 0, %s113
      %s114 = sphi 0, %s111
      %s115 = sphi 0, %s114
      %s131 = sphi 0, %s115
      %s139 = sphi 0, %s141
      %s142 = sphi 0, %s139
      %s143 = sphi 0, %s142
      %s159 = sphi 0, %s143
      %s167 = sphi 0, %s169
      %s170 = sphi 0, %s167
      %s171 = sphi 0, %s170
      %s187 = sphi 0, %s171
      %s191 = sphi 0, %s191
      %s193 = sphi 0, %s191
      %s194 = sphi 0, %s193
      %s208 = sphi 0, %s194
      %s212 = sphi 0, %s212
      %s214 = sphi 0, %s212
      %s215 = sphi 0, %s214
      %s229 = sphi 0, %s215
      %s235 = sphi 0, %s237
      %s238 = sphi 0, %s235
      %s239 = sphi 0, %s238
      %s255 = sphi 0, %s239
      %s261 = sphi 0, %s263
      %s264 = sphi 0, %s261
      %s265 = sphi 0, %s264
      %s281 = sphi 0, %s265
      %s287 = sphi 0, %s289
      %s290 = sphi 0, %s287
      %s291 = sphi 0, %s290
      %s307 = sphi 0, %s291
    $region4: #{up_forward.5} parent=1 // loop_header_branch
      %20 = sbr.rel (%p18) target = $region8
    $region5: #{up_forward.5} parent=1 // loop_body
      %s22 = ssub.s32 %s17, 1
      %s23 = ssub.s32 %s17, 2
      %s24 = sadd.s32 %s17, 1
      %s25 = ssub.s32 %s17, %s24
      %p26 = scmp.eq.s32.totalorder %s25, 0
      %s28 = sadd.s32 %s27, 1
      %s29 = scalar_select %p26, %s27, %s28
      %p32 = pneg %p26
      %p33 = scmp.eq.s32.totalorder %s17, 13
      %p34 = por %p32, %p33
      %p35 = scmp.ne.s32.totalorder %s27, %s30
      %p36 = scmp.eq.s32.totalorder %s17, 0
      %p37 = por %p35, %p36
      %p38 = scmp.ne.s32.totalorder %s27, %s30
      %p39 = scmp.eq.s32.totalorder %s22, 13
      %p40 = por %p38, %p39
      %p41 = scmp.ne.s32.totalorder %s30, %s31
      %p42 = scmp.eq.s32.totalorder %s22, 0
      %p43 = por %p41, %p42
      %p44 = scmp.ne.s32.totalorder %s30, %s31
      %p45 = scmp.eq.s32.totalorder %s23, 13
      %p46 = por %p44, %p45
      %p48 = scmp.ne.s32.totalorder %s31, %s47
      %p49 = scmp.eq.s32.totalorder %s23, 0
      %p50 = por %p48, %p49
      %s51 = sadd.s32 %s17, 1
      %s52 = sadd.s32 %s24, 1
      %s53 = ssub.s32 %s51, %s52
      %p54 = scmp.eq.s32.totalorder %s53, 0
      %s56 = sadd.s32 %s55, 1
      %s57 = scalar_select %p54, %s55, %s56
      %p60 = pneg %p54
      %p61 = scmp.eq.s32.totalorder %s17, 13
      %p62 = por %p60, %p61
      %p63 = scmp.ne.s32.totalorder %s55, %s58
      %p64 = scmp.eq.s32.totalorder %s17, 0
      %p65 = por %p63, %p64
      %p66 = scmp.ne.s32.totalorder %s55, %s58
      %p67 = scmp.eq.s32.totalorder %s22, 13
      %p68 = por %p66, %p67
      %p69 = scmp.ne.s32.totalorder %s58, %s59
      %p70 = scmp.eq.s32.totalorder %s22, 0
      %p71 = por %p69, %p70
      %p72 = scmp.ne.s32.totalorder %s58, %s59
      %p73 = scmp.eq.s32.totalorder %s23, 13
      %p74 = por %p72, %p73
      %p76 = scmp.ne.s32.totalorder %s59, %s75
      %p77 = scmp.eq.s32.totalorder %s23, 0
      %p78 = por %p76, %p77
      %s79 = sadd.s32 %s17, 2
      %s80 = sadd.s32 %s24, 2
      %s81 = ssub.s32 %s79, %s80
      %p82 = scmp.eq.s32.totalorder %s81, 0
      %s84 = sadd.s32 %s83, 1
      %s85 = scalar_select %p82, %s83, %s84
      %p88 = pneg %p82
      %p89 = scmp.eq.s32.totalorder %s17, 13
      %p90 = por %p88, %p89
      %p91 = scmp.ne.s32.totalorder %s83, %s86
      %p92 = scmp.eq.s32.totalorder %s17, 0
      %p93 = por %p91, %p92
      %p94 = scmp.ne.s32.totalorder %s83, %s86
      %p95 = scmp.eq.s32.totalorder %s22, 13
      %p96 = por %p94, %p95
      %p97 = scmp.ne.s32.totalorder %s86, %s87
      %p98 = scmp.eq.s32.totalorder %s22, 0
      %p99 = por %p97, %p98
      %p100 = scmp.ne.s32.totalorder %s86, %s87
      %p101 = scmp.eq.s32.totalorder %s23, 13
      %p102 = por %p100, %p101
      %p104 = scmp.ne.s32.totalorder %s87, %s103
      %p105 = scmp.eq.s32.totalorder %s23, 0
      %p106 = por %p104, %p105
      %s107 = sadd.s32 %s17, 2
      %s108 = sadd.s32 %s24, 2
      %s109 = ssub.s32 %s107, %s108
      %p110 = scmp.eq.s32.totalorder %s109, 0
      %s112 = sadd.s32 %s111, 1
      %s113 = scalar_select %p110, %s111, %s112
      %p116 = pneg %p110
      %p117 = scmp.eq.s32.totalorder %s17, 13
      %p118 = por %p116, %p117
      %p119 = scmp.ne.s32.totalorder %s111, %s114
      %p120 = scmp.eq.s32.totalorder %s17, 0
      %p121 = por %p119, %p120
      %p122 = scmp.ne.s32.totalorder %s111, %s114
      %p123 = scmp.eq.s32.totalorder %s22, 13
      %p124 = por %p122, %p123
      %p125 = scmp.ne.s32.totalorder %s114, %s115
      %p126 = scmp.eq.s32.totalorder %s22, 0
      %p127 = por %p125, %p126
      %p128 = scmp.ne.s32.totalorder %s114, %s115
      %p129 = scmp.eq.s32.totalorder %s23, 13
      %p130 = por %p128, %p129
      %p132 = scmp.ne.s32.totalorder %s115, %s131
      %p133 = scmp.eq.s32.totalorder %s23, 0
      %p134 = por %p132, %p133
      %s135 = sadd.s32 %s17, 3
      %s136 = sadd.s32 %s24, 3
      %s137 = ssub.s32 %s135, %s136
      %p138 = scmp.eq.s32.totalorder %s137, 0
      %s140 = sadd.s32 %s139, 1
      %s141 = scalar_select %p138, %s139, %s140
      %p144 = pneg %p138
      %p145 = scmp.eq.s32.totalorder %s17, 13
      %p146 = por %p144, %p145
      %p147 = scmp.ne.s32.totalorder %s139, %s142
      %p148 = scmp.eq.s32.totalorder %s17, 0
      %p149 = por %p147, %p148
      %p150 = scmp.ne.s32.totalorder %s139, %s142
      %p151 = scmp.eq.s32.totalorder %s22, 13
      %p152 = por %p150, %p151
      %p153 = scmp.ne.s32.totalorder %s142, %s143
      %p154 = scmp.eq.s32.totalorder %s22, 0
      %p155 = por %p153, %p154
      %p156 = scmp.ne.s32.totalorder %s142, %s143
      %p157 = scmp.eq.s32.totalorder %s23, 13
      %p158 = por %p156, %p157
      %p160 = scmp.ne.s32.totalorder %s143, %s159
      %p161 = scmp.eq.s32.totalorder %s23, 0
      %p162 = por %p160, %p161
      %s163 = sadd.s32 %s17, 4
      %s164 = sadd.s32 %s24, 4
      %s165 = ssub.s32 %s163, %s164
      %p166 = scmp.eq.s32.totalorder %s165, 0
      %s168 = sadd.s32 %s167, 1
      %s169 = scalar_select %p166, %s167, %s168
      %p172 = pneg %p166
      %p173 = scmp.eq.s32.totalorder %s17, 13
      %p174 = por %p172, %p173
      %p175 = scmp.ne.s32.totalorder %s167, %s170
      %p176 = scmp.eq.s32.totalorder %s17, 0
      %p177 = por %p175, %p176
      %p178 = scmp.ne.s32.totalorder %s167, %s170
      %p179 = scmp.eq.s32.totalorder %s22, 13
      %p180 = por %p178, %p179
      %p181 = scmp.ne.s32.totalorder %s170, %s171
      %p182 = scmp.eq.s32.totalorder %s22, 0
      %p183 = por %p181, %p182
      %p184 = scmp.ne.s32.totalorder %s170, %s171
      %p185 = scmp.eq.s32.totalorder %s23, 13
      %p186 = por %p184, %p185
      %p188 = scmp.ne.s32.totalorder %s171, %s187
      %p189 = scmp.eq.s32.totalorder %s23, 0
      %p190 = por %p188, %p189
      %s192 = sadd.s32 %s191, 1
      %p195 = scmp.eq.s32.totalorder %s17, 13
      %p196 = scmp.ne.s32.totalorder %s191, %s193
      %p197 = scmp.eq.s32.totalorder %s17, 0
      %p198 = por %p196, %p197
      %p199 = scmp.ne.s32.totalorder %s191, %s193
      %p200 = scmp.eq.s32.totalorder %s22, 13
      %p201 = por %p199, %p200
      %p202 = scmp.ne.s32.totalorder %s193, %s194
      %p203 = scmp.eq.s32.totalorder %s22, 0
      %p204 = por %p202, %p203
      %p205 = scmp.ne.s32.totalorder %s193, %s194
      %p206 = scmp.eq.s32.totalorder %s23, 13
      %p207 = por %p205, %p206
      %p209 = scmp.ne.s32.totalorder %s194, %s208
      %p210 = scmp.eq.s32.totalorder %s23, 0
      %p211 = por %p209, %p210
      %s213 = sadd.s32 %s212, 1
      %p216 = scmp.eq.s32.totalorder %s17, 13
      %p217 = scmp.ne.s32.totalorder %s212, %s214
      %p218 = scmp.eq.s32.totalorder %s17, 0
      %p219 = por %p217, %p218
      %p220 = scmp.ne.s32.totalorder %s212, %s214
      %p221 = scmp.eq.s32.totalorder %s22, 13
      %p222 = por %p220, %p221
      %p223 = scmp.ne.s32.totalorder %s214, %s215
      %p224 = scmp.eq.s32.totalorder %s22, 0
      %p225 = por %p223, %p224
      %p226 = scmp.ne.s32.totalorder %s214, %s215
      %p227 = scmp.eq.s32.totalorder %s23, 13
      %p228 = por %p226, %p227
      %p230 = scmp.ne.s32.totalorder %s215, %s229
      %p231 = scmp.eq.s32.totalorder %s23, 0
      %p232 = por %p230, %p231
      %s233 = ssub.s32 %s17, %s24
      %p234 = scmp.eq.s32.totalorder %s233, 0
      %s236 = sadd.s32 %s235, 1
      %s237 = scalar_select %p234, %s235, %s236
      %p240 = pneg %p234
      %p241 = scmp.eq.s32.totalorder %s17, 13
      %p242 = por %p240, %p241
      %p243 = scmp.ne.s32.totalorder %s235, %s238
      %p244 = scmp.eq.s32.totalorder %s17, 0
      %p245 = por %p243, %p244
      %p246 = scmp.ne.s32.totalorder %s235, %s238
      %p247 = scmp.eq.s32.totalorder %s22, 13
      %p248 = por %p246, %p247
      %p249 = scmp.ne.s32.totalorder %s238, %s239
      %p250 = scmp.eq.s32.totalorder %s22, 0
      %p251 = por %p249, %p250
      %p252 = scmp.ne.s32.totalorder %s238, %s239
      %p253 = scmp.eq.s32.totalorder %s23, 13
      %p254 = por %p252, %p253
      %p256 = scmp.ne.s32.totalorder %s239, %s255
      %p257 = scmp.eq.s32.totalorder %s23, 0
      %p258 = por %p256, %p257
      %s259 = ssub.s32 %s17, %s24
      %p260 = scmp.eq.s32.totalorder %s259, 0
      %s262 = sadd.s32 %s261, 1
      %s263 = scalar_select %p260, %s261, %s262
      %p266 = pneg %p260
      %p267 = scmp.eq.s32.totalorder %s17, 13
      %p268 = por %p266, %p267
      %p269 = scmp.ne.s32.totalorder %s261, %s264
      %p270 = scmp.eq.s32.totalorder %s17, 0
      %p271 = por %p269, %p270
      %p272 = scmp.ne.s32.totalorder %s261, %s264
      %p273 = scmp.eq.s32.totalorder %s22, 13
      %p274 = por %p272, %p273
      %p275 = scmp.ne.s32.totalorder %s264, %s265
      %p276 = scmp.eq.s32.totalorder %s22, 0
      %p277 = por %p275, %p276
      %p278 = scmp.ne.s32.totalorder %s264, %s265
      %p279 = scmp.eq.s32.totalorder %s23, 13
      %p280 = por %p278, %p279
      %p282 = scmp.ne.s32.totalorder %s265, %s281
      %p283 = scmp.eq.s32.totalorder %s23, 0
      %p284 = por %p282, %p283
      %s285 = ssub.s32 %s17, %s24
      %p286 = scmp.eq.s32.totalorder %s285, 0
      %s288 = sadd.s32 %s287, 1
      %s289 = scalar_select %p286, %s287, %s288
      %p292 = pneg %p286
      %p293 = scmp.eq.s32.totalorder %s17, 13
      %p294 = por %p292, %p293
      %p295 = scmp.ne.s32.totalorder %s287, %s290
      %p296 = scmp.eq.s32.totalorder %s17, 0
      %p297 = por %p295, %p296
      %p298 = scmp.ne.s32.totalorder %s287, %s290
      %p299 = scmp.eq.s32.totalorder %s22, 13
      %p300 = por %p298, %p299
      %p301 = scmp.ne.s32.totalorder %s290, %s291
      %p302 = scmp.eq.s32.totalorder %s22, 0
      %p303 = por %p301, %p302
      %p304 = scmp.ne.s32.totalorder %s290, %s291
      %p305 = scmp.eq.s32.totalorder %s23, 13
      %p306 = por %p304, %p305
      %p308 = scmp.ne.s32.totalorder %s291, %s307
      %p309 = scmp.eq.s32.totalorder %s23, 0
      %p310 = por %p308, %p309
      %p311 = scmp.le.s32.totalorder 1, %s17
      %p312 = scmp.lt.s32.totalorder %s17, 15
      %p313 = pnand %p311, %p312
      %p314 = pneg %p313
      // Predicated region
      $region9: #{up_forward.5} parent=5 // pred_check
        _
      $region10: #{up_forward.5} parent=5 // pred_check_branch
        %316 = sbr.rel (%p313) target = $region12
      $region11: #{up_forward.5} parent=5 // pred_region
        %s317 = ssub.s32 %s17, 1
        // Predicated region
        $region13: #{up_forward.5} parent=11 // pred_check
          %p318 = pneg %p204
        $region14: #{up_forward.5} parent=11 // pred_check_branch
          %320 = sbr.rel (%p318) target = $region16
        $region15: #{up_forward.5} parent=11 // pred_region
          _
        $region16: #{up_forward.5} parent=11 // pred_fallthru
          _
        // Predicated region
        $region17: #{up_forward.5} parent=11 // pred_check
          %p321 = pneg %p225
        $region18: #{up_forward.5} parent=11 // pred_check_branch
          %323 = sbr.rel (%p321) target = $region20
        $region19: #{up_forward.5} parent=11 // pred_region
          _
        $region20: #{up_forward.5} parent=11 // pred_fallthru
          _
      $region12: #{up_forward.5} parent=5 // pred_fallthru
        _
      %p324 = scmp.lt.s32.totalorder %s17, 14
      // Predicated region
      $region21: #{up_forward.5} parent=5 // pred_check
        %p325 = pneg %p324
      $region22: #{up_forward.5} parent=5 // pred_check_branch
        %327 = sbr.rel (%p325) target = $region24
      $region23: #{up_forward.5} parent=5 // pred_region
        // Predicated region
        $region25: #{up_forward.5} parent=23 // pred_check
          %p328 = pneg %p37
        $region26: #{up_forward.5} parent=23 // pred_check_branch
          %330 = sbr.rel (%p328) target = $region28
        $region27: #{up_forward.5} parent=23 // pred_region
          %s331 = sand.u32 %s27, 1
          %s332 = sand.u32 %s27, 1
          %s333 = smul.addr %s332, 32
          %s334 = scalar_lea.vmem [#allocation2], %s333
          %s335 = smul.addr %s17, 2
          %s336 = smul.addr %s335, 8
          %s337 = scalar_lea.vmem %s0, %s336
          // Predicated region
          $region29: #{up_forward.5} parent=27 // pred_check
            _
          $region30: #{up_forward.5} parent=27 // pred_check_branch
            %339 = sbr.rel (0) target = $region32
          $region31: #{up_forward.5} parent=27 // pred_region
            // Predicated region
            $region33: #{up_forward.5} parent=31 // pred_check
              _
            $region34: #{up_forward.5} parent=31 // pred_check_branch
              %341 = sbr.rel (0) target = $region36
            $region35: #{up_forward.5} parent=31 // pred_region
              // Predicated region
              $region48: #{up_forward.5} parent=35 // pred_check
                _
              $region49: #{up_forward.5} parent=35 // pred_check_branch
                %363 = sbr.rel (0) target = $region51
              $region50: #{up_forward.5} parent=35 // pred_region
                loop: start=0, step=1, limit=1
                $region52: #{up_forward.5} parent=50 // loop_pre_header
                  _
                $region53: #{up_forward.5} parent=50 // loop_header
                  %s365 = sphi 0, %s369
                  %p366 = scmp.ge.s32.totalorder %s365, 1
                  %s370 = sphi %s337, %s337
                  %s371 = sphi %s334, %s334
                $region54: #{up_forward.5} parent=50 // loop_header_branch
                  %368 = sbr.rel (%p366) target = $region58
                $region55: #{up_forward.5} parent=50 // loop_body
                  %v372 = vld [vmem:[%s370] sm:$0xff]
                  %373 = vst [vmem:[%s371] sm:$0xff] %v372
                  %v374 = vld [vmem:[%s370 + $0x8] sm:$0xff]
                  %375 = vst [vmem:[%s371 + $0x8] sm:$0xff] %v374
                  %v376 = vld [vmem:[%s370 + $0x100] sm:$0xff]
                  %377 = vst [vmem:[%s371 + $0x10] sm:$0xff] %v376
                  %v378 = vld [vmem:[%s370 + $0x108] sm:$0xff]
                  %379 = vst [vmem:[%s371 + $0x18] sm:$0xff] %v378
                $region56: #{up_forward.5} parent=50 // loop_footer
                  %s369 = sadd.s32 1, %s365
                $region57: #{up_forward.5} parent=50 // loop_footer_branch
                  %364 = sbr.rel target = $region53
                $region58: #{up_forward.5} parent=50 // loop_exit
                  _
              $region51: #{up_forward.5} parent=35 // pred_fallthru
                _
              // Predicated region
              $region59: #{up_forward.5} parent=35 // pred_check
                _
              $region60: #{up_forward.5} parent=35 // pred_check_branch
                %381 = sbr.rel target = $region62
              $region61: #{up_forward.5} parent=35 // pred_region
                _
              $region62: #{up_forward.5} parent=35 // pred_fallthru
                _
            $region36: #{up_forward.5} parent=31 // pred_fallthru
              _
            // Predicated region
            $region37: #{up_forward.5} parent=31 // pred_check
              _
            $region38: #{up_forward.5} parent=31 // pred_check_branch
              %343 = sbr.rel target = $region40
            $region39: #{up_forward.5} parent=31 // pred_region
              %s345 = ssub.s32 256, 1
              loop: start=0, step=1, limit=1
              $region41: #{up_forward.5} parent=39 // loop_pre_header
                _
              $region42: #{up_forward.5} parent=39 // loop_header
                %s347 = sphi 0, %s351
                %p348 = scmp.ge.s32.totalorder %s347, 1
                %s352 = sphi %s337, %s337
                %s353 = sphi %s334, %s334
              $region43: #{up_forward.5} parent=39 // loop_header_branch
                %350 = sbr.rel (%p348) target = $region47
              $region44: #{up_forward.5} parent=39 // loop_body
                %v354 = vld [vmem:[%s352] sm:%s345]
                %355 = vst [vmem:[%s353] sm:%s345] %v354
                %v356 = vld [vmem:[%s352 + $0x8] sm:%s345]
                %357 = vst [vmem:[%s353 + $0x8] sm:%s345] %v356
                %v358 = vld [vmem:[%s352 + $0x100] sm:%s345]
                %359 = vst [vmem:[%s353 + $0x10] sm:%s345] %v358
                %v360 = vld [vmem:[%s352 + $0x108] sm:%s345]
                %361 = vst [vmem:[%s353 + $0x18] sm:%s345] %v360
              $region45: #{up_forward.5} parent=39 // loop_footer
                %s351 = sadd.s32 1, %s347
              $region46: #{up_forward.5} parent=39 // loop_footer_branch
                %346 = sbr.rel target = $region42
              $region47: #{up_forward.5} parent=39 // loop_exit
                _
            $region40: #{up_forward.5} parent=31 // pred_fallthru
              _
          $region32: #{up_forward.5} parent=27 // pred_fallthru
            _
          %382 = vnop
        $region28: #{up_forward.5} parent=23 // pred_fallthru
          _
        // Predicated region
        $region63: #{up_forward.5} parent=23 // pred_check
          %p383 = pneg %p65
        $region64: #{up_forward.5} parent=23 // pred_check_branch
          %385 = sbr.rel (%p383) target = $region66
        $region65: #{up_forward.5} parent=23 // pred_region
          %s386 = sand.u32 %s55, 1
          %s387 = sand.u32 %s55, 1
          %s388 = smul.addr %s387, 32
          %s389 = scalar_lea.vmem [#allocation3], %s388
          %s390 = sadd.s32 %s17, 1
          %s391 = smul.addr %s390, 2
          %s392 = smul.addr %s391, 8
          %s393 = scalar_lea.vmem %s1, %s392
          // Predicated region
          $region67: #{up_forward.5} parent=65 // pred_check
            _
          $region68: #{up_forward.5} parent=65 // pred_check_branch
            %395 = sbr.rel (0) target = $region70
          $region69: #{up_forward.5} parent=65 // pred_region
            // Predicated region
            $region71: #{up_forward.5} parent=69 // pred_check
              _
            $region72: #{up_forward.5} parent=69 // pred_check_branch
              %397 = sbr.rel (0) target = $region74
            $region73: #{up_forward.5} parent=69 // pred_region
              // Predicated region
              $region86: #{up_forward.5} parent=73 // pred_check
                _
              $region87: #{up_forward.5} parent=73 // pred_check_branch
                %419 = sbr.rel (0) target = $region89
              $region88: #{up_forward.5} parent=73 // pred_region
                loop: start=0, step=1, limit=1
                $region90: #{up_forward.5} parent=88 // loop_pre_header
                  _
                $region91: #{up_forward.5} parent=88 // loop_header
                  %s421 = sphi 0, %s425
                  %p422 = scmp.ge.s32.totalorder %s421, 1
                  %s426 = sphi %s393, %s393
                  %s427 = sphi %s389, %s389
                $region92: #{up_forward.5} parent=88 // loop_header_branch
                  %424 = sbr.rel (%p422) target = $region96
                $region93: #{up_forward.5} parent=88 // loop_body
                  %v428 = vld [vmem:[%s426] sm:$0xff]
                  %429 = vst [vmem:[%s427] sm:$0xff] %v428
                  %v430 = vld [vmem:[%s426 + $0x8] sm:$0xff]
                  %431 = vst [vmem:[%s427 + $0x8] sm:$0xff] %v430
                  %v432 = vld [vmem:[%s426 + $0x100] sm:$0xff]
                  %433 = vst [vmem:[%s427 + $0x10] sm:$0xff] %v432
                  %v434 = vld [vmem:[%s426 + $0x108] sm:$0xff]
                  %435 = vst [vmem:[%s427 + $0x18] sm:$0xff] %v434
                $region94: #{up_forward.5} parent=88 // loop_footer
                  %s425 = sadd.s32 1, %s421
                $region95: #{up_forward.5} parent=88 // loop_footer_branch
                  %420 = sbr.rel target = $region91
                $region96: #{up_forward.5} parent=88 // loop_exit
                  _
              $region89: #{up_forward.5} parent=73 // pred_fallthru
                _
              // Predicated region
              $region97: #{up_forward.5} parent=73 // pred_check
                _
              $region98: #{up_forward.5} parent=73 // pred_check_branch
                %437 = sbr.rel target = $region100
              $region99: #{up_forward.5} parent=73 // pred_region
                _
              $region100: #{up_forward.5} parent=73 // pred_fallthru
                _
            $region74: #{up_forward.5} parent=69 // pred_fallthru
              _
            // Predicated region
            $region75: #{up_forward.5} parent=69 // pred_check
              _
            $region76: #{up_forward.5} parent=69 // pred_check_branch
              %399 = sbr.rel target = $region78
            $region77: #{up_forward.5} parent=69 // pred_region
              %s401 = ssub.s32 256, 1
              loop: start=0, step=1, limit=1
              $region79: #{up_forward.5} parent=77 // loop_pre_header
                _
              $region80: #{up_forward.5} parent=77 // loop_header
                %s403 = sphi 0, %s407
                %p404 = scmp.ge.s32.totalorder %s403, 1
                %s408 = sphi %s393, %s393
                %s409 = sphi %s389, %s389
              $region81: #{up_forward.5} parent=77 // loop_header_branch
                %406 = sbr.rel (%p404) target = $region85
              $region82: #{up_forward.5} parent=77 // loop_body
                %v410 = vld [vmem:[%s408] sm:%s401]
                %411 = vst [vmem:[%s409] sm:%s401] %v410
                %v412 = vld [vmem:[%s408 + $0x8] sm:%s401]
                %413 = vst [vmem:[%s409 + $0x8] sm:%s401] %v412
                %v414 = vld [vmem:[%s408 + $0x100] sm:%s401]
                %415 = vst [vmem:[%s409 + $0x10] sm:%s401] %v414
                %v416 = vld [vmem:[%s408 + $0x108] sm:%s401]
                %417 = vst [vmem:[%s409 + $0x18] sm:%s401] %v416
              $region83: #{up_forward.5} parent=77 // loop_footer
                %s407 = sadd.s32 1, %s403
              $region84: #{up_forward.5} parent=77 // loop_footer_branch
                %402 = sbr.rel target = $region80
              $region85: #{up_forward.5} parent=77 // loop_exit
                _
            $region78: #{up_forward.5} parent=69 // pred_fallthru
              _
          $region70: #{up_forward.5} parent=65 // pred_fallthru
            _
          %438 = vnop
        $region66: #{up_forward.5} parent=23 // pred_fallthru
          _
        // Predicated region
        $region101: #{up_forward.5} parent=23 // pred_check
          %p439 = pneg %p93
        $region102: #{up_forward.5} parent=23 // pred_check_branch
          %441 = sbr.rel (%p439) target = $region104
        $region103: #{up_forward.5} parent=23 // pred_region
          %s442 = sand.u32 %s83, 1
          %s443 = sand.u32 %s83, 1
          %s444 = smul.addr %s443, 32
          %s445 = scalar_lea.vmem [#allocation4], %s444
          %s446 = sadd.s32 %s17, 2
          %s447 = smul.addr %s446, 2
          %s448 = smul.addr %s447, 8
          %s449 = scalar_lea.vmem %s2, %s448
          // Predicated region
          $region105: #{up_forward.5} parent=103 // pred_check
            _
          $region106: #{up_forward.5} parent=103 // pred_check_branch
            %451 = sbr.rel (0) target = $region108
          $region107: #{up_forward.5} parent=103 // pred_region
            // Predicated region
            $region109: #{up_forward.5} parent=107 // pred_check
              _
            $region110: #{up_forward.5} parent=107 // pred_check_branch
              %453 = sbr.rel (0) target = $region112
            $region111: #{up_forward.5} parent=107 // pred_region
              // Predicated region
              $region124: #{up_forward.5} parent=111 // pred_check
                _
              $region125: #{up_forward.5} parent=111 // pred_check_branch
                %475 = sbr.rel (0) target = $region127
              $region126: #{up_forward.5} parent=111 // pred_region
                loop: start=0, step=1, limit=1
                $region128: #{up_forward.5} parent=126 // loop_pre_header
                  _
                $region129: #{up_forward.5} parent=126 // loop_header
                  %s477 = sphi 0, %s481
                  %p478 = scmp.ge.s32.totalorder %s477, 1
                  %s482 = sphi %s449, %s449
                  %s483 = sphi %s445, %s445
                $region130: #{up_forward.5} parent=126 // loop_header_branch
                  %480 = sbr.rel (%p478) target = $region134
                $region131: #{up_forward.5} parent=126 // loop_body
                  %v484 = vld [vmem:[%s482] sm:$0xff]
                  %485 = vst [vmem:[%s483] sm:$0xff] %v484
                  %v486 = vld [vmem:[%s482 + $0x8] sm:$0xff]
                  %487 = vst [vmem:[%s483 + $0x8] sm:$0xff] %v486
                  %v488 = vld [vmem:[%s482 + $0x100] sm:$0xff]
                  %489 = vst [vmem:[%s483 + $0x10] sm:$0xff] %v488
                  %v490 = vld [vmem:[%s482 + $0x108] sm:$0xff]
                  %491 = vst [vmem:[%s483 + $0x18] sm:$0xff] %v490
                $region132: #{up_forward.5} parent=126 // loop_footer
                  %s481 = sadd.s32 1, %s477
                $region133: #{up_forward.5} parent=126 // loop_footer_branch
                  %476 = sbr.rel target = $region129
                $region134: #{up_forward.5} parent=126 // loop_exit
                  _
              $region127: #{up_forward.5} parent=111 // pred_fallthru
                _
              // Predicated region
              $region135: #{up_forward.5} parent=111 // pred_check
                _
              $region136: #{up_forward.5} parent=111 // pred_check_branch
                %493 = sbr.rel target = $region138
              $region137: #{up_forward.5} parent=111 // pred_region
                _
              $region138: #{up_forward.5} parent=111 // pred_fallthru
                _
            $region112: #{up_forward.5} parent=107 // pred_fallthru
              _
            // Predicated region
            $region113: #{up_forward.5} parent=107 // pred_check
              _
            $region114: #{up_forward.5} parent=107 // pred_check_branch
              %455 = sbr.rel target = $region116
            $region115: #{up_forward.5} parent=107 // pred_region
              %s457 = ssub.s32 256, 1
              loop: start=0, step=1, limit=1
              $region117: #{up_forward.5} parent=115 // loop_pre_header
                _
              $region118: #{up_forward.5} parent=115 // loop_header
                %s459 = sphi 0, %s463
                %p460 = scmp.ge.s32.totalorder %s459, 1
                %s464 = sphi %s449, %s449
                %s465 = sphi %s445, %s445
              $region119: #{up_forward.5} parent=115 // loop_header_branch
                %462 = sbr.rel (%p460) target = $region123
              $region120: #{up_forward.5} parent=115 // loop_body
                %v466 = vld [vmem:[%s464] sm:%s457]
                %467 = vst [vmem:[%s465] sm:%s457] %v466
                %v468 = vld [vmem:[%s464 + $0x8] sm:%s457]
                %469 = vst [vmem:[%s465 + $0x8] sm:%s457] %v468
                %v470 = vld [vmem:[%s464 + $0x100] sm:%s457]
                %471 = vst [vmem:[%s465 + $0x10] sm:%s457] %v470
                %v472 = vld [vmem:[%s464 + $0x108] sm:%s457]
                %473 = vst [vmem:[%s465 + $0x18] sm:%s457] %v472
              $region121: #{up_forward.5} parent=115 // loop_footer
                %s463 = sadd.s32 1, %s459
              $region122: #{up_forward.5} parent=115 // loop_footer_branch
                %458 = sbr.rel target = $region118
              $region123: #{up_forward.5} parent=115 // loop_exit
                _
            $region116: #{up_forward.5} parent=107 // pred_fallthru
              _
          $region108: #{up_forward.5} parent=103 // pred_fallthru
            _
          %494 = vnop
        $region104: #{up_forward.5} parent=23 // pred_fallthru
          _
        // Predicated region
        $region139: #{up_forward.5} parent=23 // pred_check
          %p495 = pneg %p121
        $region140: #{up_forward.5} parent=23 // pred_check_branch
          %497 = sbr.rel (%p495) target = $region142
        $region141: #{up_forward.5} parent=23 // pred_region
          %s498 = sand.u32 %s111, 1
          %s499 = sand.u32 %s111, 1
          %s500 = smul.addr %s499, 48
          %s501 = scalar_lea.vmem [#allocation5], %s500
          %s502 = sadd.s32 %s17, 2
          %s503 = smul.addr %s502, 3
          %s504 = smul.addr %s503, 8
          %s505 = scalar_lea.vmem %s3, %s504
          // Predicated region
          $region143: #{up_forward.5} parent=141 // pred_check
            _
          $region144: #{up_forward.5} parent=141 // pred_check_branch
            %507 = sbr.rel (0) target = $region146
          $region145: #{up_forward.5} parent=141 // pred_region
            // Predicated region
            $region147: #{up_forward.5} parent=145 // pred_check
              _
            $region148: #{up_forward.5} parent=145 // pred_check_branch
              %509 = sbr.rel (0) target = $region150
            $region149: #{up_forward.5} parent=145 // pred_region
              // Predicated region
              $region162: #{up_forward.5} parent=149 // pred_check
                _
              $region163: #{up_forward.5} parent=149 // pred_check_branch
                %535 = sbr.rel (0) target = $region165
              $region164: #{up_forward.5} parent=149 // pred_region
                loop: start=0, step=1, limit=1
                $region166: #{up_forward.5} parent=164 // loop_pre_header
                  _
                $region167: #{up_forward.5} parent=164 // loop_header
                  %s537 = sphi 0, %s541
                  %p538 = scmp.ge.s32.totalorder %s537, 1
                  %s542 = sphi %s505, %s505
                  %s543 = sphi %s501, %s501
                $region168: #{up_forward.5} parent=164 // loop_header_branch
                  %540 = sbr.rel (%p538) target = $region172
                $region169: #{up_forward.5} parent=164 // loop_body
                  %v544 = vld [vmem:[%s542] sm:$0xff]
                  %545 = vst [vmem:[%s543] sm:$0xff] %v544
                  %v546 = vld [vmem:[%s542 + $0x8] sm:$0xff]
                  %547 = vst [vmem:[%s543 + $0x8] sm:$0xff] %v546
                  %v548 = vld [vmem:[%s542 + $0x10] sm:$0xff]
                  %549 = vst [vmem:[%s543 + $0x10] sm:$0xff] %v548
                  %v550 = vld [vmem:[%s542 + $0x1e0] sm:$0xff]
                  %551 = vst [vmem:[%s543 + $0x18] sm:$0xff] %v550
                  %v552 = vld [vmem:[%s542 + $0x1e8] sm:$0xff]
                  %553 = vst [vmem:[%s543 + $0x20] sm:$0xff] %v552
                  %v554 = vld [vmem:[%s542 + $0x1f0] sm:$0xff]
                  %555 = vst [vmem:[%s543 + $0x28] sm:$0xff] %v554
                $region170: #{up_forward.5} parent=164 // loop_footer
                  %s541 = sadd.s32 1, %s537
                $region171: #{up_forward.5} parent=164 // loop_footer_branch
                  %536 = sbr.rel target = $region167
                $region172: #{up_forward.5} parent=164 // loop_exit
                  _
              $region165: #{up_forward.5} parent=149 // pred_fallthru
                _
              // Predicated region
              $region173: #{up_forward.5} parent=149 // pred_check
                _
              $region174: #{up_forward.5} parent=149 // pred_check_branch
                %557 = sbr.rel target = $region176
              $region175: #{up_forward.5} parent=149 // pred_region
                _
              $region176: #{up_forward.5} parent=149 // pred_fallthru
                _
            $region150: #{up_forward.5} parent=145 // pred_fallthru
              _
            // Predicated region
            $region151: #{up_forward.5} parent=145 // pred_check
              _
            $region152: #{up_forward.5} parent=145 // pred_check_branch
              %511 = sbr.rel target = $region154
            $region153: #{up_forward.5} parent=145 // pred_region
              %s513 = ssub.s32 256, 1
              loop: start=0, step=1, limit=1
              $region155: #{up_forward.5} parent=153 // loop_pre_header
                _
              $region156: #{up_forward.5} parent=153 // loop_header
                %s515 = sphi 0, %s519
                %p516 = scmp.ge.s32.totalorder %s515, 1
                %s520 = sphi %s505, %s505
                %s521 = sphi %s501, %s501
              $region157: #{up_forward.5} parent=153 // loop_header_branch
                %518 = sbr.rel (%p516) target = $region161
              $region158: #{up_forward.5} parent=153 // loop_body
                %v522 = vld [vmem:[%s520] sm:%s513]
                %523 = vst [vmem:[%s521] sm:%s513] %v522
                %v524 = vld [vmem:[%s520 + $0x8] sm:%s513]
                %525 = vst [vmem:[%s521 + $0x8] sm:%s513] %v524
                %v526 = vld [vmem:[%s520 + $0x10] sm:%s513]
                %527 = vst [vmem:[%s521 + $0x10] sm:%s513] %v526
                %v528 = vld [vmem:[%s520 + $0x1e0] sm:%s513]
                %529 = vst [vmem:[%s521 + $0x18] sm:%s513] %v528
                %v530 = vld [vmem:[%s520 + $0x1e8] sm:%s513]
                %531 = vst [vmem:[%s521 + $0x20] sm:%s513] %v530
                %v532 = vld [vmem:[%s520 + $0x1f0] sm:%s513]
                %533 = vst [vmem:[%s521 + $0x28] sm:%s513] %v532
              $region159: #{up_forward.5} parent=153 // loop_footer
                %s519 = sadd.s32 1, %s515
              $region160: #{up_forward.5} parent=153 // loop_footer_branch
                %514 = sbr.rel target = $region156
              $region161: #{up_forward.5} parent=153 // loop_exit
                _
            $region154: #{up_forward.5} parent=145 // pred_fallthru
              _
          $region146: #{up_forward.5} parent=141 // pred_fallthru
            _
          %558 = vnop
        $region142: #{up_forward.5} parent=23 // pred_fallthru
          _
        // Predicated region
        $region177: #{up_forward.5} parent=23 // pred_check
          %p559 = pneg %p149
        $region178: #{up_forward.5} parent=23 // pred_check_branch
          %561 = sbr.rel (%p559) target = $region180
        $region179: #{up_forward.5} parent=23 // pred_region
          %s562 = sand.u32 %s139, 1
          %s563 = sand.u32 %s139, 1
          %s564 = smul.addr %s563, 48
          %s565 = scalar_lea.vmem [#allocation6], %s564
          %s566 = sadd.s32 %s17, 3
          %s567 = smul.addr %s566, 3
          %s568 = smul.addr %s567, 8
          %s569 = scalar_lea.vmem %s4, %s568
          // Predicated region
          $region181: #{up_forward.5} parent=179 // pred_check
            _
          $region182: #{up_forward.5} parent=179 // pred_check_branch
            %571 = sbr.rel (0) target = $region184
          $region183: #{up_forward.5} parent=179 // pred_region
            // Predicated region
            $region185: #{up_forward.5} parent=183 // pred_check
              _
            $region186: #{up_forward.5} parent=183 // pred_check_branch
              %573 = sbr.rel (0) target = $region188
            $region187: #{up_forward.5} parent=183 // pred_region
              // Predicated region
              $region200: #{up_forward.5} parent=187 // pred_check
                _
              $region201: #{up_forward.5} parent=187 // pred_check_branch
                %599 = sbr.rel (0) target = $region203
              $region202: #{up_forward.5} parent=187 // pred_region
                loop: start=0, step=1, limit=1
                $region204: #{up_forward.5} parent=202 // loop_pre_header
                  _
                $region205: #{up_forward.5} parent=202 // loop_header
                  %s601 = sphi 0, %s605
                  %p602 = scmp.ge.s32.totalorder %s601, 1
                  %s606 = sphi %s569, %s569
                  %s607 = sphi %s565, %s565
                $region206: #{up_forward.5} parent=202 // loop_header_branch
                  %604 = sbr.rel (%p602) target = $region210
                $region207: #{up_forward.5} parent=202 // loop_body
                  %v608 = vld [vmem:[%s606] sm:$0xff]
                  %609 = vst [vmem:[%s607] sm:$0xff] %v608
                  %v610 = vld [vmem:[%s606 + $0x8] sm:$0xff]
                  %611 = vst [vmem:[%s607 + $0x8] sm:$0xff] %v610
                  %v612 = vld [vmem:[%s606 + $0x10] sm:$0xff]
                  %613 = vst [vmem:[%s607 + $0x10] sm:$0xff] %v612
                  %v614 = vld [vmem:[%s606 + $0x1e0] sm:$0xff]
                  %615 = vst [vmem:[%s607 + $0x18] sm:$0xff] %v614
                  %v616 = vld [vmem:[%s606 + $0x1e8] sm:$0xff]
                  %617 = vst [vmem:[%s607 + $0x20] sm:$0xff] %v616
                  %v618 = vld [vmem:[%s606 + $0x1f0] sm:$0xff]
                  %619 = vst [vmem:[%s607 + $0x28] sm:$0xff] %v618
                $region208: #{up_forward.5} parent=202 // loop_footer
                  %s605 = sadd.s32 1, %s601
                $region209: #{up_forward.5} parent=202 // loop_footer_branch
                  %600 = sbr.rel target = $region205
                $region210: #{up_forward.5} parent=202 // loop_exit
                  _
              $region203: #{up_forward.5} parent=187 // pred_fallthru
                _
              // Predicated region
              $region211: #{up_forward.5} parent=187 // pred_check
                _
              $region212: #{up_forward.5} parent=187 // pred_check_branch
                %621 = sbr.rel target = $region214
              $region213: #{up_forward.5} parent=187 // pred_region
                _
              $region214: #{up_forward.5} parent=187 // pred_fallthru
                _
            $region188: #{up_forward.5} parent=183 // pred_fallthru
              _
            // Predicated region
            $region189: #{up_forward.5} parent=183 // pred_check
              _
            $region190: #{up_forward.5} parent=183 // pred_check_branch
              %575 = sbr.rel target = $region192
            $region191: #{up_forward.5} parent=183 // pred_region
              %s577 = ssub.s32 256, 1
              loop: start=0, step=1, limit=1
              $region193: #{up_forward.5} parent=191 // loop_pre_header
                _
              $region194: #{up_forward.5} parent=191 // loop_header
                %s579 = sphi 0, %s583
                %p580 = scmp.ge.s32.totalorder %s579, 1
                %s584 = sphi %s569, %s569
                %s585 = sphi %s565, %s565
              $region195: #{up_forward.5} parent=191 // loop_header_branch
                %582 = sbr.rel (%p580) target = $region199
              $region196: #{up_forward.5} parent=191 // loop_body
                %v586 = vld [vmem:[%s584] sm:%s577]
                %587 = vst [vmem:[%s585] sm:%s577] %v586
                %v588 = vld [vmem:[%s584 + $0x8] sm:%s577]
                %589 = vst [vmem:[%s585 + $0x8] sm:%s577] %v588
                %v590 = vld [vmem:[%s584 + $0x10] sm:%s577]
                %591 = vst [vmem:[%s585 + $0x10] sm:%s577] %v590
                %v592 = vld [vmem:[%s584 + $0x1e0] sm:%s577]
                %593 = vst [vmem:[%s585 + $0x18] sm:%s577] %v592
                %v594 = vld [vmem:[%s584 + $0x1e8] sm:%s577]
                %595 = vst [vmem:[%s585 + $0x20] sm:%s577] %v594
                %v596 = vld [vmem:[%s584 + $0x1f0] sm:%s577]
                %597 = vst [vmem:[%s585 + $0x28] sm:%s577] %v596
              $region197: #{up_forward.5} parent=191 // loop_footer
                %s583 = sadd.s32 1, %s579
              $region198: #{up_forward.5} parent=191 // loop_footer_branch
                %578 = sbr.rel target = $region194
              $region199: #{up_forward.5} parent=191 // loop_exit
                _
            $region192: #{up_forward.5} parent=183 // pred_fallthru
              _
          $region184: #{up_forward.5} parent=179 // pred_fallthru
            _
          %622 = vnop
        $region180: #{up_forward.5} parent=23 // pred_fallthru
          _
        // Predicated region
        $region215: #{up_forward.5} parent=23 // pred_check
          %p623 = pneg %p177
        $region216: #{up_forward.5} parent=23 // pred_check_branch
          %625 = sbr.rel (%p623) target = $region218
        $region217: #{up_forward.5} parent=23 // pred_region
          %s626 = sand.u32 %s167, 1
          %s627 = sand.u32 %s167, 1
          %s628 = smul.addr %s627, 48
          %s629 = scalar_lea.vmem [#allocation7], %s628
          %s630 = sadd.s32 %s17, 4
          %s631 = smul.addr %s630, 3
          %s632 = smul.addr %s631, 8
          %s633 = scalar_lea.vmem %s5, %s632
          // Predicated region
          $region219: #{up_forward.5} parent=217 // pred_check
            _
          $region220: #{up_forward.5} parent=217 // pred_check_branch
            %635 = sbr.rel (0) target = $region222
          $region221: #{up_forward.5} parent=217 // pred_region
            // Predicated region
            $region223: #{up_forward.5} parent=221 // pred_check
              _
            $region224: #{up_forward.5} parent=221 // pred_check_branch
              %637 = sbr.rel (0) target = $region226
            $region225: #{up_forward.5} parent=221 // pred_region
              // Predicated region
              $region238: #{up_forward.5} parent=225 // pred_check
                _
              $region239: #{up_forward.5} parent=225 // pred_check_branch
                %663 = sbr.rel (0) target = $region241
              $region240: #{up_forward.5} parent=225 // pred_region
                loop: start=0, step=1, limit=1
                $region242: #{up_forward.5} parent=240 // loop_pre_header
                  _
                $region243: #{up_forward.5} parent=240 // loop_header
                  %s665 = sphi 0, %s669
                  %p666 = scmp.ge.s32.totalorder %s665, 1
                  %s670 = sphi %s633, %s633
                  %s671 = sphi %s629, %s629
                $region244: #{up_forward.5} parent=240 // loop_header_branch
                  %668 = sbr.rel (%p666) target = $region248
                $region245: #{up_forward.5} parent=240 // loop_body
                  %v672 = vld [vmem:[%s670] sm:$0xff]
                  %673 = vst [vmem:[%s671] sm:$0xff] %v672
                  %v674 = vld [vmem:[%s670 + $0x8] sm:$0xff]
                  %675 = vst [vmem:[%s671 + $0x8] sm:$0xff] %v674
                  %v676 = vld [vmem:[%s670 + $0x10] sm:$0xff]
                  %677 = vst [vmem:[%s671 + $0x10] sm:$0xff] %v676
                  %v678 = vld [vmem:[%s670 + $0x1e0] sm:$0xff]
                  %679 = vst [vmem:[%s671 + $0x18] sm:$0xff] %v678
                  %v680 = vld [vmem:[%s670 + $0x1e8] sm:$0xff]
                  %681 = vst [vmem:[%s671 + $0x20] sm:$0xff] %v680
                  %v682 = vld [vmem:[%s670 + $0x1f0] sm:$0xff]
                  %683 = vst [vmem:[%s671 + $0x28] sm:$0xff] %v682
                $region246: #{up_forward.5} parent=240 // loop_footer
                  %s669 = sadd.s32 1, %s665
                $region247: #{up_forward.5} parent=240 // loop_footer_branch
                  %664 = sbr.rel target = $region243
                $region248: #{up_forward.5} parent=240 // loop_exit
                  _
              $region241: #{up_forward.5} parent=225 // pred_fallthru
                _
              // Predicated region
              $region249: #{up_forward.5} parent=225 // pred_check
                _
              $region250: #{up_forward.5} parent=225 // pred_check_branch
                %685 = sbr.rel target = $region252
              $region251: #{up_forward.5} parent=225 // pred_region
                _
              $region252: #{up_forward.5} parent=225 // pred_fallthru
                _
            $region226: #{up_forward.5} parent=221 // pred_fallthru
              _
            // Predicated region
            $region227: #{up_forward.5} parent=221 // pred_check
              _
            $region228: #{up_forward.5} parent=221 // pred_check_branch
              %639 = sbr.rel target = $region230
            $region229: #{up_forward.5} parent=221 // pred_region
              %s641 = ssub.s32 256, 1
              loop: start=0, step=1, limit=1
              $region231: #{up_forward.5} parent=229 // loop_pre_header
                _
              $region232: #{up_forward.5} parent=229 // loop_header
                %s643 = sphi 0, %s647
                %p644 = scmp.ge.s32.totalorder %s643, 1
                %s648 = sphi %s633, %s633
                %s649 = sphi %s629, %s629
              $region233: #{up_forward.5} parent=229 // loop_header_branch
                %646 = sbr.rel (%p644) target = $region237
              $region234: #{up_forward.5} parent=229 // loop_body
                %v650 = vld [vmem:[%s648] sm:%s641]
                %651 = vst [vmem:[%s649] sm:%s641] %v650
                %v652 = vld [vmem:[%s648 + $0x8] sm:%s641]
                %653 = vst [vmem:[%s649 + $0x8] sm:%s641] %v652
                %v654 = vld [vmem:[%s648 + $0x10] sm:%s641]
                %655 = vst [vmem:[%s649 + $0x10] sm:%s641] %v654
                %v656 = vld [vmem:[%s648 + $0x1e0] sm:%s641]
                %657 = vst [vmem:[%s649 + $0x18] sm:%s641] %v656
                %v658 = vld [vmem:[%s648 + $0x1e8] sm:%s641]
                %659 = vst [vmem:[%s649 + $0x20] sm:%s641] %v658
                %v660 = vld [vmem:[%s648 + $0x1f0] sm:%s641]
                %661 = vst [vmem:[%s649 + $0x28] sm:%s641] %v660
              $region235: #{up_forward.5} parent=229 // loop_footer
                %s647 = sadd.s32 1, %s643
              $region236: #{up_forward.5} parent=229 // loop_footer_branch
                %642 = sbr.rel target = $region232
              $region237: #{up_forward.5} parent=229 // loop_exit
                _
            $region230: #{up_forward.5} parent=221 // pred_fallthru
              _
          $region222: #{up_forward.5} parent=217 // pred_fallthru
            _
          %686 = vnop
        $region218: #{up_forward.5} parent=23 // pred_fallthru
          _
      $region24: #{up_forward.5} parent=5 // pred_fallthru
        _
      %p687 = scmp.le.s32.totalorder 1, %s17
      %p688 = scmp.lt.s32.totalorder %s17, 15
      %p689 = pnand %p687, %p688
      %p690 = pneg %p689
      // Predicated region
      $region253: #{up_forward.5} parent=5 // pred_check
        _
      $region254: #{up_forward.5} parent=5 // pred_check_branch
        %692 = sbr.rel (%p689) target = $region256
      $region255: #{up_forward.5} parent=5 // pred_region
        %s693 = ssub.s32 %s17, 1
        %s694 = sand.u32 %s30, 1
        %s695 = sand.u32 %s30, 1
        %s696 = smul.addr %s695, 32
        %s697 = scalar_lea.vmem [#allocation2], %s696
        // Predicated region
        $region257: #{up_forward.5} parent=255 // pred_check
          %p698 = pneg %p43
        $region258: #{up_forward.5} parent=255 // pred_check_branch
          %700 = sbr.rel (%p698) target = $region260
        $region259: #{up_forward.5} parent=255 // pred_region
          _
        $region260: #{up_forward.5} parent=255 // pred_fallthru
          _
        %s701 = sand.u32 %s58, 1
        %s702 = sand.u32 %s58, 1
        %s703 = smul.addr %s702, 32
        %s704 = scalar_lea.vmem [#allocation3], %s703
        // Predicated region
        $region261: #{up_forward.5} parent=255 // pred_check
          %p705 = pneg %p71
        $region262: #{up_forward.5} parent=255 // pred_check_branch
          %707 = sbr.rel (%p705) target = $region264
        $region263: #{up_forward.5} parent=255 // pred_region
          _
        $region264: #{up_forward.5} parent=255 // pred_fallthru
          _
        %s708 = sand.u32 %s86, 1
        %s709 = sand.u32 %s86, 1
        %s710 = smul.addr %s709, 32
        %s711 = scalar_lea.vmem [#allocation4], %s710
        // Predicated region
        $region265: #{up_forward.5} parent=255 // pred_check
          %p712 = pneg %p99
        $region266: #{up_forward.5} parent=255 // pred_check_branch
          %714 = sbr.rel (%p712) target = $region268
        $region267: #{up_forward.5} parent=255 // pred_region
          _
        $region268: #{up_forward.5} parent=255 // pred_fallthru
          _
        %s715 = sand.u32 %s114, 1
        %s716 = sand.u32 %s114, 1
        %s717 = smul.addr %s716, 48
        %s718 = scalar_lea.vmem [#allocation5], %s717
        // Predicated region
        $region269: #{up_forward.5} parent=255 // pred_check
          %p719 = pneg %p127
        $region270: #{up_forward.5} parent=255 // pred_check_branch
          %721 = sbr.rel (%p719) target = $region272
        $region271: #{up_forward.5} parent=255 // pred_region
          _
        $region272: #{up_forward.5} parent=255 // pred_fallthru
          _
        %s722 = sand.u32 %s142, 1
        %s723 = sand.u32 %s142, 1
        %s724 = smul.addr %s723, 48
        %s725 = scalar_lea.vmem [#allocation6], %s724
        // Predicated region
        $region273: #{up_forward.5} parent=255 // pred_check
          %p726 = pneg %p155
        $region274: #{up_forward.5} parent=255 // pred_check_branch
          %728 = sbr.rel (%p726) target = $region276
        $region275: #{up_forward.5} parent=255 // pred_region
          _
        $region276: #{up_forward.5} parent=255 // pred_fallthru
          _
        %s729 = sand.u32 %s170, 1
        %s730 = sand.u32 %s170, 1
        %s731 = smul.addr %s730, 48
        %s732 = scalar_lea.vmem [#allocation7], %s731
        // Predicated region
        $region277: #{up_forward.5} parent=255 // pred_check
          %p733 = pneg %p183
        $region278: #{up_forward.5} parent=255 // pred_check_branch
          %735 = sbr.rel (%p733) target = $region280
        $region279: #{up_forward.5} parent=255 // pred_region
          _
        $region280: #{up_forward.5} parent=255 // pred_fallthru
          _
        %s736 = sand.u32 %s30, 1
        %s737 = sand.u32 %s30, 1
        %s738 = smul.addr %s737, 32
        %s739 = scalar_lea.vmem [#allocation2], %s738
        %p740 = pneg %p43
        %p741 = pneg %p40
        %s742 = sand.u32 %s58, 1
        %s743 = sand.u32 %s58, 1
        %s744 = smul.addr %s743, 32
        %s745 = scalar_lea.vmem [#allocation3], %s744
        %p746 = pneg %p71
        %p747 = pneg %p68
        %s748 = sand.u32 %s86, 1
        %s749 = sand.u32 %s86, 1
        %s750 = smul.addr %s749, 32
        %s751 = scalar_lea.vmem [#allocation4], %s750
        %p752 = pneg %p99
        %p753 = pneg %p96
        %s754 = sand.u32 %s114, 1
        %s755 = sand.u32 %s114, 1
        %s756 = smul.addr %s755, 48
        %s757 = scalar_lea.vmem [#allocation5], %s756
        %p758 = pneg %p127
        %p759 = pneg %p124
        %s760 = sand.u32 %s142, 1
        %s761 = sand.u32 %s142, 1
        %s762 = smul.addr %s761, 48
        %s763 = scalar_lea.vmem [#allocation6], %s762
        %p764 = pneg %p155
        %p765 = pneg %p152
        %s766 = sand.u32 %s170, 1
        %s767 = sand.u32 %s170, 1
        %s768 = smul.addr %s767, 48
        %s769 = scalar_lea.vmem [#allocation7], %s768
        %p770 = pneg %p183
        %p771 = pneg %p180
        %p772 = pneg %p204
        %p773 = pneg %p201
        %p774 = pneg %p225
        %p775 = pneg %p222
        %p776 = pneg %p251
        %p777 = pneg %p248
        %s778 = sand.u32 %s238, 1
        %s779 = sand.u32 %s238, 1
        %s780 = smul.addr %s779, 32
        %s781 = scalar_lea.vmem [#allocation8], %s780
        %p782 = pneg %p277
        %p783 = pneg %p274
        %p784 = scmp.lt.s32.totalorder %s22, 13
        %s785 = scalar_select %p784, %s22, 13
        %s786 = scalar_lea.vmem %s9, %s785
        %p787 = pneg %p303
        %p788 = pneg %p300
        %p789 = scmp.lt.s32.totalorder %s22, 13
        %s790 = scalar_select %p789, %s22, 13
        %s791 = scalar_lea.vmem %s10, %s790
        %s792 = sadd.s32 %s22, 1
        %s793 = sadd.s32 %s22, 2
        %s794 = sadd.s32 %s22, 2
        %s795 = sadd.s32 %s22, 3
        %s796 = sadd.s32 %s22, 4
        %p797 = scmp.lt.s32.totalorder %s22, 13
        %s798 = scalar_select %p797, %s22, 13
        %s799 = scalar_lea.vmem %s9, %s798
        %p800 = scmp.lt.s32.totalorder %s22, 13
        %s801 = scalar_select %p800, %s22, 13
        %s802 = scalar_lea.vmem %s10, %s801
        %v804 = vld [vmem:[%s6] sm:$0x3]
        %v805 = vld [vmem:[%s6 + $0x2] sm:$0x3]
        %v806 = vld [vmem:[%s6 + $0x4] sm:$0x3]
        %v807 = vld [vmem:[%s6 + $0x6] sm:$0x3]
        %v808 = vld [vmem:[%s6 + $0x8] sm:$0x3]
        %v809 = vld [vmem:[%s6 + $0xa] sm:$0x3]
        %v810 = vld [vmem:[%s6 + $0xc] sm:$0x3]
        %v811 = vld [vmem:[%s6 + $0xe] sm:$0x3]
        %v812 = vld [vmem:[%s6 + $0x10] sm:$0x3]
        %v813 = vld [vmem:[%s7] sm:$0x3]
        %v814 = vld [vmem:[%s7 + $0x2] sm:$0x3]
        %v815 = vld [vmem:[%s7 + $0x4] sm:$0x3]
        %v816 = vld [vmem:[%s7 + $0x6] sm:$0x3]
        %v817 = vld [vmem:[%s7 + $0x8] sm:$0x3]
        %v818 = vld [vmem:[%s7 + $0xa] sm:$0x3]
        %v819 = vld [vmem:[%s7 + $0xc] sm:$0x3]
        %v820 = vld [vmem:[%s7 + $0xe] sm:$0x3]
        %v821 = vld [vmem:[%s7 + $0x10] sm:$0x3]
        %v822 = vld [vmem:[%s697] sm:$0xff]
        %v823 = vld [vmem:[%s697 + $0x8] sm:$0xff]
        %v824 = vld [vmem:[%s697 + $0x10] sm:$0xff]
        %v825 = vld [vmem:[%s697 + $0x18] sm:$0xff]
        %v826 = vld [vmem:[%s704] sm:$0xff]
        %v827 = vld [vmem:[%s704 + $0x8] sm:$0xff]
        %v828 = vld [vmem:[%s704 + $0x10] sm:$0xff]
        %v829 = vld [vmem:[%s704 + $0x18] sm:$0xff]
        %v830 = vld [vmem:[%s711] sm:$0xff]
        %v831 = vld [vmem:[%s711 + $0x8] sm:$0xff]
        %v832 = vld [vmem:[%s711 + $0x10] sm:$0xff]
        %v833 = vld [vmem:[%s711 + $0x18] sm:$0xff]
        %v834 = vld [vmem:[%s718] sm:$0xff]
        %v835 = vld [vmem:[%s718 + $0x8] sm:$0xff]
        %v836 = vld [vmem:[%s718 + $0x10] sm:$0xf]
        %v837 = vld [vmem:[%s718 + $0x18] sm:$0xff]
        %v838 = vld [vmem:[%s718 + $0x20] sm:$0xff]
        %v839 = vld [vmem:[%s718 + $0x28] sm:$0xf]
        %v840 = vld [vmem:[%s725] sm:$0xff]
        %v841 = vld [vmem:[%s725 + $0x8] sm:$0xff]
        %v842 = vld [vmem:[%s725 + $0x10] sm:$0xf]
        %v843 = vld [vmem:[%s725 + $0x18] sm:$0xff]
        %v844 = vld [vmem:[%s725 + $0x20] sm:$0xff]
        %v845 = vld [vmem:[%s725 + $0x28] sm:$0xf]
        %v846 = vld [vmem:[%s732] sm:$0xff]
        %v847 = vld [vmem:[%s732 + $0x8] sm:$0xff]
        %v848 = vld [vmem:[%s732 + $0x10] sm:$0xf]
        %v849 = vld [vmem:[%s732 + $0x18] sm:$0xff]
        %v850 = vld [vmem:[%s732 + $0x20] sm:$0xff]
        %v851 = vld [vmem:[%s732 + $0x28] sm:$0xf]
        %v852 = vpack.c.bf16 %v822, %v822
        %v853 = vpack.c.bf16 %v823, %v823
        %v854 = vpack.c.bf16 %v824, %v824
        %v855 = vpack.c.bf16 %v825, %v825
        %v856 = vpack.c.bf16 %v834, %v834
        %v857 = vpack.c.bf16 %v835, %v835
        %v858 = vpack.c.bf16 %v836, %v836
        %v859 = vpack.c.bf16 %v837, %v837
        %v860 = vpack.c.bf16 %v838, %v838
        %v861 = vpack.c.bf16 %v839, %v839
        %v864 = vunpack.c.l.b16 %v856
        %v865 = vunpack.c.l.b16 %v857
        %v866 = vpack.c.b16 %v865, %v864
        %v867 = vrot.slane %v866, 1
        %vm868 = vcmask 31744
        %v870 = vsel %vm868, %v867, 0
        %vm872 = vcmask 1041408
        %v874 = vsel %vm872, %v813, 0
        %876 = vmatpush.bf16.msra.mxu0 0
        %877 = vmatpush.bf16.msra.mxu0 0
        %878 = vmatpush.bf16.msra.mxu0 0
        %879 = vmatpush.bf16.msra.mxu0 0
        %880 = vmatpush.bf16.msra.mxu0 0
        %881 = vmatpush.bf16.msra.mxu0 0
        %882 = vmatpush.bf16.msra.mxu0 0
        %883 = vmatpush.bf16.msra.mxu0 %v874
        %884 = vmatmul.bf16.gmra.mxu0 %v870
        %v885 = vpop.f32.mrf.mxu0
        %v886 = vadd.f32 0.0, %v885
        %v887 = vpop.f32.mrf.mxu0
        %v888 = vadd.f32 0.0, %v887
        %889 = vdwg.mxu0
        %v892 = vunpack.c.l.b16 %v852
        %v893 = vunpack.c.l.b16 %v853
        %v894 = vpack.c.b16 %v893, %v892
        %v896 = vsel %vm868, %v894, 0
        %v899 = vsel %vm872, %v804, 0
        %901 = vmatpush.bf16.msra.mxu0 0
        %902 = vmatpush.bf16.msra.mxu0 0
        %903 = vmatpush.bf16.msra.mxu0 0
        %904 = vmatpush.bf16.msra.mxu0 0
        %905 = vmatpush.bf16.msra.mxu0 0
        %906 = vmatpush.bf16.msra.mxu0 0
        %907 = vmatpush.bf16.msra.mxu0 0
        %908 = vmatpush.bf16.msra.mxu0 %v899
        %909 = vmatmul.bf16.gmra.mxu0 %v896
        %v910 = vpop.f32.mrf.mxu0
        %v911 = vadd.f32 %v886, %v910
        %v912 = vpop.f32.mrf.mxu0
        %v913 = vadd.f32 %v888, %v912
        %914 = vdwg.mxu0
        %v915 = vshrl.u32 %v894, 16
        %v917 = vshll.u32 %v894, 16
        %v919 = vrot.slane %v917, 1
        %v920 = vor.u32 %v915, %v919
        %v922 = vsel %vm868, %v920, 0
        %v925 = vsel %vm872, %v805, 0
        %927 = vmatpush.bf16.msra.mxu0 0
        %928 = vmatpush.bf16.msra.mxu0 0
        %929 = vmatpush.bf16.msra.mxu0 0
        %930 = vmatpush.bf16.msra.mxu0 0
        %931 = vmatpush.bf16.msra.mxu0 0
        %932 = vmatpush.bf16.msra.mxu0 0
        %933 = vmatpush.bf16.msra.mxu0 0
        %934 = vmatpush.bf16.msra.mxu0 %v925
        %935 = vmatmul.bf16.gmra.mxu0 %v922
        %v936 = vpop.f32.mrf.mxu0
        %v937 = vadd.f32 0.0, %v936
        %v938 = vpop.f32.mrf.mxu0
        %v939 = vadd.f32 0.0, %v938
        %940 = vdwg.mxu0
        %v941 = vadd.f32 %v911, %v937
        %v942 = vadd.f32 %v913, %v939
        %v944 = vunpack.c.l.b16 %v858
        %v945 = vpack.c.b16 %v944, %v944
        %vm946 = vsmask.f32 6400
        %v948 = vshrl.u32 %v866, 16
        %v950 = vrot.slane %v948, 1
        %v951 = vshll.u32 %v866, 16
        %v953 = vrot.slane %v951, 2
        %v954 = vor.u32 %v950, %v953
        %v956 = vshll.u32 %v945, 16
        %v958 = vrot.slane %v956, 2
        %v959 = vsel %vm946, %v954, %v958
        %v961 = vsel %vm868, %v959, 0
        %v964 = vsel %vm872, %v814, 0
        %966 = vmatpush.bf16.msra.mxu0 0
        %967 = vmatpush.bf16.msra.mxu0 0
        %968 = vmatpush.bf16.msra.mxu0 0
        %969 = vmatpush.bf16.msra.mxu0 0
        %970 = vmatpush.bf16.msra.mxu0 0
        %971 = vmatpush.bf16.msra.mxu0 0
        %972 = vmatpush.bf16.msra.mxu0 0
        %973 = vmatpush.bf16.msra.mxu0 %v964
        %974 = vmatmul.bf16.gmra.mxu0 %v961
        %v975 = vpop.f32.mrf.mxu0
        %v976 = vadd.f32 0.0, %v975
        %v977 = vpop.f32.mrf.mxu0
        %v978 = vadd.f32 0.0, %v977
        %979 = vdwg.mxu0
        %v980 = vadd.f32 %v941, %v976
        %v981 = vadd.f32 %v942, %v978
        %v982 = vrot.slane %v894, 1
        %v984 = vsel %vm868, %v982, 0
        %v987 = vsel %vm872, %v806, 0
        %989 = vmatpush.bf16.msra.mxu0 0
        %990 = vmatpush.bf16.msra.mxu0 0
        %991 = vmatpush.bf16.msra.mxu0 0
        %992 = vmatpush.bf16.msra.mxu0 0
        %993 = vmatpush.bf16.msra.mxu0 0
        %994 = vmatpush.bf16.msra.mxu0 0
        %995 = vmatpush.bf16.msra.mxu0 0
        %996 = vmatpush.bf16.msra.mxu0 %v987
        %997 = vmatmul.bf16.gmra.mxu0 %v984
        %v998 = vpop.f32.mrf.mxu0
        %v999 = vadd.f32 0.0, %v998
        %v1000 = vpop.f32.mrf.mxu0
        %v1001 = vadd.f32 0.0, %v1000
        %1002 = vdwg.mxu0
        %v1003 = vadd.f32 %v980, %v999
        %v1004 = vadd.f32 %v981, %v1001
        %vm1005 = vcmask 1045504
        %v1006 = vrot.slane %v866, 2
        %v1007 = vrot.slane %v945, 2
        %v1008 = vsel %vm1005, %v1006, %v1007
        %v1010 = vsel %vm868, %v1008, 0
        %v1013 = vsel %vm872, %v815, 0
        %1015 = vmatpush.bf16.msra.mxu0 0
        %1016 = vmatpush.bf16.msra.mxu0 0
        %1017 = vmatpush.bf16.msra.mxu0 0
        %1018 = vmatpush.bf16.msra.mxu0 0
        %1019 = vmatpush.bf16.msra.mxu0 0
        %1020 = vmatpush.bf16.msra.mxu0 0
        %1021 = vmatpush.bf16.msra.mxu0 0
        %1022 = vmatpush.bf16.msra.mxu0 %v1013
        %1023 = vmatmul.bf16.gmra.mxu0 %v1010
        %v1024 = vpop.f32.mrf.mxu0
        %v1025 = vadd.f32 0.0, %v1024
        %v1026 = vpop.f32.mrf.mxu0
        %v1027 = vadd.f32 0.0, %v1026
        %1028 = vdwg.mxu0
        %v1029 = vadd.f32 %v1003, %v1025
        %v1030 = vadd.f32 %v1004, %v1027
        %v1033 = vunpack.c.l.b16 %v859
        %v1034 = vunpack.c.l.b16 %v860
        %v1035 = vpack.c.b16 %v1034, %v1033
        %v1036 = vrot.slane %v1035, 1
        %v1038 = vsel %vm868, %v1036, 0
        %1040 = vmatpush.bf16.msra.mxu0 0
        %1041 = vmatpush.bf16.msra.mxu0 0
        %1042 = vmatpush.bf16.msra.mxu0 0
        %1043 = vmatpush.bf16.msra.mxu0 0
        %1044 = vmatpush.bf16.msra.mxu0 0
        %1045 = vmatpush.bf16.msra.mxu0 0
        %1046 = vmatpush.bf16.msra.mxu0 0
        %1047 = vmatpush.bf16.msra.mxu0 %v874
        %1048 = vmatmul.bf16.gmra.mxu0 %v1038
        %v1049 = vpop.f32.mrf.mxu0
        %v1050 = vadd.f32 0.0, %v1049
        %v1051 = vpop.f32.mrf.mxu0
        %v1052 = vadd.f32 0.0, %v1051
        %1053 = vdwg.mxu0
        %v1056 = vunpack.c.l.b16 %v854
        %v1057 = vunpack.c.l.b16 %v855
        %v1058 = vpack.c.b16 %v1057, %v1056
        %v1060 = vsel %vm868, %v1058, 0
        %1062 = vmatpush.bf16.msra.mxu0 0
        %1063 = vmatpush.bf16.msra.mxu0 0
        %1064 = vmatpush.bf16.msra.mxu0 0
        %1065 = vmatpush.bf16.msra.mxu0 0
        %1066 = vmatpush.bf16.msra.mxu0 0
        %1067 = vmatpush.bf16.msra.mxu0 0
        %1068 = vmatpush.bf16.msra.mxu0 0
        %1069 = vmatpush.bf16.msra.mxu0 %v899
        %1070 = vmatmul.bf16.gmra.mxu0 %v1060
        %v1071 = vpop.f32.mrf.mxu0
        %v1072 = vadd.f32 %v1050, %v1071
        %v1073 = vpop.f32.mrf.mxu0
        %v1074 = vadd.f32 %v1052, %v1073
        %1075 = vdwg.mxu0
        %v1076 = vshrl.u32 %v1058, 16
        %v1078 = vshll.u32 %v1058, 16
        %v1080 = vrot.slane %v1078, 1
        %v1081 = vor.u32 %v1076, %v1080
        %v1083 = vsel %vm868, %v1081, 0
        %1085 = vmatpush.bf16.msra.mxu0 0
        %1086 = vmatpush.bf16.msra.mxu0 0
        %1087 = vmatpush.bf16.msra.mxu0 0
        %1088 = vmatpush.bf16.msra.mxu0 0
        %1089 = vmatpush.bf16.msra.mxu0 0
        %1090 = vmatpush.bf16.msra.mxu0 0
        %1091 = vmatpush.bf16.msra.mxu0 0
        %1092 = vmatpush.bf16.msra.mxu0 %v925
        %1093 = vmatmul.bf16.gmra.mxu0 %v1083
        %v1094 = vpop.f32.mrf.mxu0
        %v1095 = vadd.f32 0.0, %v1094
        %v1096 = vpop.f32.mrf.mxu0
        %v1097 = vadd.f32 0.0, %v1096
        %1098 = vdwg.mxu0
        %v1099 = vadd.f32 %v1072, %v1095
        %v1100 = vadd.f32 %v1074, %v1097
        %v1102 = vunpack.c.l.b16 %v861
        %v1103 = vpack.c.b16 %v1102, %v1102
        %v1105 = vshrl.u32 %v1035, 16
        %v1107 = vrot.slane %v1105, 1
        %v1108 = vshll.u32 %v1035, 16
        %v1110 = vrot.slane %v1108, 2
        %v1111 = vor.u32 %v1107, %v1110
        %v1113 = vshll.u32 %v1103, 16
        %v1115 = vrot.slane %v1113, 2
        %v1116 = vsel %vm946, %v1111, %v1115
        %v1118 = vsel %vm868, %v1116, 0
        %1120 = vmatpush.bf16.msra.mxu0 0
        %1121 = vmatpush.bf16.msra.mxu0 0
        %1122 = vmatpush.bf16.msra.mxu0 0
        %1123 = vmatpush.bf16.msra.mxu0 0
        %1124 = vmatpush.bf16.msra.mxu0 0
        %1125 = vmatpush.bf16.msra.mxu0 0
        %1126 = vmatpush.bf16.msra.mxu0 0
        %1127 = vmatpush.bf16.msra.mxu0 %v964
        %1128 = vmatmul.bf16.gmra.mxu0 %v1118
        %v1129 = vpop.f32.mrf.mxu0
        %v1130 = vadd.f32 0.0, %v1129
        %v1131 = vpop.f32.mrf.mxu0
        %v1132 = vadd.f32 0.0, %v1131
        %1133 = vdwg.mxu0
        %v1134 = vadd.f32 %v1099, %v1130
        %v1135 = vadd.f32 %v1100, %v1132
        %v1136 = vrot.slane %v1058, 1
        %v1138 = vsel %vm868, %v1136, 0
        %1140 = vmatpush.bf16.msra.mxu0 0
        %1141 = vmatpush.bf16.msra.mxu0 0
        %1142 = vmatpush.bf16.msra.mxu0 0
        %1143 = vmatpush.bf16.msra.mxu0 0
        %1144 = vmatpush.bf16.msra.mxu0 0
        %1145 = vmatpush.bf16.msra.mxu0 0
        %1146 = vmatpush.bf16.msra.mxu0 0
        %1147 = vmatpush.bf16.msra.mxu0 %v987
        %1148 = vmatmul.bf16.gmra.mxu0 %v1138
        %v1149 = vpop.f32.mrf.mxu0
        %v1150 = vadd.f32 0.0, %v1149
        %v1151 = vpop.f32.mrf.mxu0
        %v1152 = vadd.f32 0.0, %v1151
        %1153 = vdwg.mxu0
        %v1154 = vadd.f32 %v1134, %v1150
        %v1155 = vadd.f32 %v1135, %v1152
        %v1156 = vrot.slane %v1035, 2
        %v1157 = vrot.slane %v1103, 2
        %v1158 = vsel %vm1005, %v1156, %v1157
        %v1160 = vsel %vm868, %v1158, 0
        %1162 = vmatpush.bf16.msra.mxu0 0
        %1163 = vmatpush.bf16.msra.mxu0 0
        %1164 = vmatpush.bf16.msra.mxu0 0
        %1165 = vmatpush.bf16.msra.mxu0 0
        %1166 = vmatpush.bf16.msra.mxu0 0
        %1167 = vmatpush.bf16.msra.mxu0 0
        %1168 = vmatpush.bf16.msra.mxu0 0
        %1169 = vmatpush.bf16.msra.mxu0 %v1013
        %1170 = vmatmul.bf16.gmra.mxu0 %v1160
        %v1171 = vpop.f32.mrf.mxu0
        %v1172 = vadd.f32 0.0, %v1171
        %v1173 = vpop.f32.mrf.mxu0
        %v1174 = vadd.f32 0.0, %v1173
        %1175 = vdwg.mxu0
        %v1176 = vadd.f32 %v1154, %v1172
        %v1177 = vadd.f32 %v1155, %v1174
        %v1178 = vpack.c.bf16 %v826, %v826
        %v1179 = vpack.c.bf16 %v827, %v827
        %v1180 = vpack.c.bf16 %v828, %v828
        %v1181 = vpack.c.bf16 %v829, %v829
        %v1182 = vpack.c.bf16 %v840, %v840
        %v1183 = vpack.c.bf16 %v841, %v841
        %v1184 = vpack.c.bf16 %v842, %v842
        %v1185 = vpack.c.bf16 %v843, %v843
        %v1186 = vpack.c.bf16 %v844, %v844
        %v1187 = vpack.c.bf16 %v845, %v845
        %v1190 = vunpack.c.l.b16 %v1178
        %v1191 = vunpack.c.l.b16 %v1179
        %v1192 = vpack.c.b16 %v1191, %v1190
        %v1194 = vsel %vm868, %v1192, 0
        %v1197 = vsel %vm872, %v807, 0
        %1199 = vmatpush.bf16.msra.mxu0 0
        %1200 = vmatpush.bf16.msra.mxu0 0
        %1201 = vmatpush.bf16.msra.mxu0 0
        %1202 = vmatpush.bf16.msra.mxu0 0
        %1203 = vmatpush.bf16.msra.mxu0 0
        %1204 = vmatpush.bf16.msra.mxu0 0
        %1205 = vmatpush.bf16.msra.mxu0 0
        %1206 = vmatpush.bf16.msra.mxu0 %v1197
        %1207 = vmatmul.bf16.gmra.mxu0 %v1194
        %v1208 = vpop.f32.mrf.mxu0
        %v1209 = vadd.f32 0.0, %v1208
        %v1210 = vpop.f32.mrf.mxu0
        %v1211 = vadd.f32 0.0, %v1210
        %1212 = vdwg.mxu0
        %v1213 = vadd.f32 %v1029, %v1209
        %v1214 = vadd.f32 %v1030, %v1211
        %v1217 = vunpack.c.l.b16 %v1182
        %v1218 = vunpack.c.l.b16 %v1183
        %v1219 = vpack.c.b16 %v1218, %v1217
        %v1220 = vrot.slane %v1219, 1
        %v1222 = vsel %vm868, %v1220, 0
        %v1225 = vsel %vm872, %v816, 0
        %1227 = vmatpush.bf16.msra.mxu0 0
        %1228 = vmatpush.bf16.msra.mxu0 0
        %1229 = vmatpush.bf16.msra.mxu0 0
        %1230 = vmatpush.bf16.msra.mxu0 0
        %1231 = vmatpush.bf16.msra.mxu0 0
        %1232 = vmatpush.bf16.msra.mxu0 0
        %1233 = vmatpush.bf16.msra.mxu0 0
        %1234 = vmatpush.bf16.msra.mxu0 %v1225
        %1235 = vmatmul.bf16.gmra.mxu0 %v1222
        %v1236 = vpop.f32.mrf.mxu0
        %v1237 = vadd.f32 0.0, %v1236
        %v1238 = vpop.f32.mrf.mxu0
        %v1239 = vadd.f32 0.0, %v1238
        %1240 = vdwg.mxu0
        %v1241 = vadd.f32 %v1213, %v1237
        %v1242 = vadd.f32 %v1214, %v1239
        %v1243 = vshrl.u32 %v1192, 16
        %v1245 = vshll.u32 %v1192, 16
        %v1247 = vrot.slane %v1245, 1
        %v1248 = vor.u32 %v1243, %v1247
        %v1250 = vsel %vm868, %v1248, 0
        %v1253 = vsel %vm872, %v808, 0
        %1255 = vmatpush.bf16.msra.mxu0 0
        %1256 = vmatpush.bf16.msra.mxu0 0
        %1257 = vmatpush.bf16.msra.mxu0 0
        %1258 = vmatpush.bf16.msra.mxu0 0
        %1259 = vmatpush.bf16.msra.mxu0 0
        %1260 = vmatpush.bf16.msra.mxu0 0
        %1261 = vmatpush.bf16.msra.mxu0 0
        %1262 = vmatpush.bf16.msra.mxu0 %v1253
        %1263 = vmatmul.bf16.gmra.mxu0 %v1250
        %v1264 = vpop.f32.mrf.mxu0
        %v1265 = vadd.f32 0.0, %v1264
        %v1266 = vpop.f32.mrf.mxu0
        %v1267 = vadd.f32 0.0, %v1266
        %1268 = vdwg.mxu0
        %v1269 = vadd.f32 %v1241, %v1265
        %v1270 = vadd.f32 %v1242, %v1267
        %v1272 = vunpack.c.l.b16 %v1184
        %v1273 = vpack.c.b16 %v1272, %v1272
        %v1275 = vshrl.u32 %v1219, 16
        %v1277 = vrot.slane %v1275, 1
        %v1278 = vshll.u32 %v1219, 16
        %v1280 = vrot.slane %v1278, 2
        %v1281 = vor.u32 %v1277, %v1280
        %v1283 = vshll.u32 %v1273, 16
        %v1285 = vrot.slane %v1283, 2
        %v1286 = vsel %vm946, %v1281, %v1285
        %v1288 = vsel %vm868, %v1286, 0
        %v1291 = vsel %vm872, %v817, 0
        %1293 = vmatpush.bf16.msra.mxu0 0
        %1294 = vmatpush.bf16.msra.mxu0 0
        %1295 = vmatpush.bf16.msra.mxu0 0
        %1296 = vmatpush.bf16.msra.mxu0 0
        %1297 = vmatpush.bf16.msra.mxu0 0
        %1298 = vmatpush.bf16.msra.mxu0 0
        %1299 = vmatpush.bf16.msra.mxu0 0
        %1300 = vmatpush.bf16.msra.mxu0 %v1291
        %1301 = vmatmul.bf16.gmra.mxu0 %v1288
        %v1302 = vpop.f32.mrf.mxu0
        %v1303 = vadd.f32 0.0, %v1302
        %v1304 = vpop.f32.mrf.mxu0
        %v1305 = vadd.f32 0.0, %v1304
        %1306 = vdwg.mxu0
        %v1307 = vadd.f32 %v1269, %v1303
        %v1308 = vadd.f32 %v1270, %v1305
        %v1309 = vrot.slane %v1192, 1
        %v1311 = vsel %vm868, %v1309, 0
        %v1314 = vsel %vm872, %v809, 0
        %1316 = vmatpush.bf16.msra.mxu0 0
        %1317 = vmatpush.bf16.msra.mxu0 0
        %1318 = vmatpush.bf16.msra.mxu0 0
        %1319 = vmatpush.bf16.msra.mxu0 0
        %1320 = vmatpush.bf16.msra.mxu0 0
        %1321 = vmatpush.bf16.msra.mxu0 0
        %1322 = vmatpush.bf16.msra.mxu0 0
        %1323 = vmatpush.bf16.msra.mxu0 %v1314
        %1324 = vmatmul.bf16.gmra.mxu0 %v1311
        %v1325 = vpop.f32.mrf.mxu0
        %v1326 = vadd.f32 0.0, %v1325
        %v1327 = vpop.f32.mrf.mxu0
        %v1328 = vadd.f32 0.0, %v1327
        %1329 = vdwg.mxu0
        %v1330 = vadd.f32 %v1307, %v1326
        %v1331 = vadd.f32 %v1308, %v1328
        %v1332 = vrot.slane %v1219, 2
        %v1333 = vrot.slane %v1273, 2
        %v1334 = vsel %vm1005, %v1332, %v1333
        %v1336 = vsel %vm868, %v1334, 0
        %v1339 = vsel %vm872, %v818, 0
        %1341 = vmatpush.bf16.msra.mxu0 0
        %1342 = vmatpush.bf16.msra.mxu0 0
        %1343 = vmatpush.bf16.msra.mxu0 0
        %1344 = vmatpush.bf16.msra.mxu0 0
        %1345 = vmatpush.bf16.msra.mxu0 0
        %1346 = vmatpush.bf16.msra.mxu0 0
        %1347 = vmatpush.bf16.msra.mxu0 0
        %1348 = vmatpush.bf16.msra.mxu0 %v1339
        %1349 = vmatmul.bf16.gmra.mxu0 %v1336
        %v1350 = vpop.f32.mrf.mxu0
        %v1351 = vadd.f32 0.0, %v1350
        %v1352 = vpop.f32.mrf.mxu0
        %v1353 = vadd.f32 0.0, %v1352
        %1354 = vdwg.mxu0
        %v1355 = vadd.f32 %v1330, %v1351
        %v1356 = vadd.f32 %v1331, %v1353
        %v1359 = vunpack.c.l.b16 %v1180
        %v1360 = vunpack.c.l.b16 %v1181
        %v1361 = vpack.c.b16 %v1360, %v1359
        %v1363 = vsel %vm868, %v1361, 0
        %1365 = vmatpush.bf16.msra.mxu0 0
        %1366 = vmatpush.bf16.msra.mxu0 0
        %1367 = vmatpush.bf16.msra.mxu0 0
        %1368 = vmatpush.bf16.msra.mxu0 0
        %1369 = vmatpush.bf16.msra.mxu0 0
        %1370 = vmatpush.bf16.msra.mxu0 0
        %1371 = vmatpush.bf16.msra.mxu0 0
        %1372 = vmatpush.bf16.msra.mxu0 %v1197
        %1373 = vmatmul.bf16.gmra.mxu0 %v1363
        %v1374 = vpop.f32.mrf.mxu0
        %v1375 = vadd.f32 0.0, %v1374
        %v1376 = vpop.f32.mrf.mxu0
        %v1377 = vadd.f32 0.0, %v1376
        %1378 = vdwg.mxu0
        %v1379 = vadd.f32 %v1176, %v1375
        %v1380 = vadd.f32 %v1177, %v1377
        %v1383 = vunpack.c.l.b16 %v1185
        %v1384 = vunpack.c.l.b16 %v1186
        %v1385 = vpack.c.b16 %v1384, %v1383
        %v1386 = vrot.slane %v1385, 1
        %v1388 = vsel %vm868, %v1386, 0
        %1390 = vmatpush.bf16.msra.mxu0 0
        %1391 = vmatpush.bf16.msra.mxu0 0
        %1392 = vmatpush.bf16.msra.mxu0 0
        %1393 = vmatpush.bf16.msra.mxu0 0
        %1394 = vmatpush.bf16.msra.mxu0 0
        %1395 = vmatpush.bf16.msra.mxu0 0
        %1396 = vmatpush.bf16.msra.mxu0 0
        %1397 = vmatpush.bf16.msra.mxu0 %v1225
        %1398 = vmatmul.bf16.gmra.mxu0 %v1388
        %v1399 = vpop.f32.mrf.mxu0
        %v1400 = vadd.f32 0.0, %v1399
        %v1401 = vpop.f32.mrf.mxu0
        %v1402 = vadd.f32 0.0, %v1401
        %1403 = vdwg.mxu0
        %v1404 = vadd.f32 %v1379, %v1400
        %v1405 = vadd.f32 %v1380, %v1402
        %v1406 = vshrl.u32 %v1361, 16
        %v1408 = vshll.u32 %v1361, 16
        %v1410 = vrot.slane %v1408, 1
        %v1411 = vor.u32 %v1406, %v1410
        %v1413 = vsel %vm868, %v1411, 0
        %1415 = vmatpush.bf16.msra.mxu0 0
        %1416 = vmatpush.bf16.msra.mxu0 0
        %1417 = vmatpush.bf16.msra.mxu0 0
        %1418 = vmatpush.bf16.msra.mxu0 0
        %1419 = vmatpush.bf16.msra.mxu0 0
        %1420 = vmatpush.bf16.msra.mxu0 0
        %1421 = vmatpush.bf16.msra.mxu0 0
        %1422 = vmatpush.bf16.msra.mxu0 %v1253
        %1423 = vmatmul.bf16.gmra.mxu0 %v1413
        %v1424 = vpop.f32.mrf.mxu0
        %v1425 = vadd.f32 0.0, %v1424
        %v1426 = vpop.f32.mrf.mxu0
        %v1427 = vadd.f32 0.0, %v1426
        %1428 = vdwg.mxu0
        %v1429 = vadd.f32 %v1404, %v1425
        %v1430 = vadd.f32 %v1405, %v1427
        %v1432 = vunpack.c.l.b16 %v1187
        %v1433 = vpack.c.b16 %v1432, %v1432
        %v1435 = vshrl.u32 %v1385, 16
        %v1437 = vrot.slane %v1435, 1
        %v1438 = vshll.u32 %v1385, 16
        %v1440 = vrot.slane %v1438, 2
        %v1441 = vor.u32 %v1437, %v1440
        %v1443 = vshll.u32 %v1433, 16
        %v1445 = vrot.slane %v1443, 2
        %v1446 = vsel %vm946, %v1441, %v1445
        %v1448 = vsel %vm868, %v1446, 0
        %1450 = vmatpush.bf16.msra.mxu0 0
        %1451 = vmatpush.bf16.msra.mxu0 0
        %1452 = vmatpush.bf16.msra.mxu0 0
        %1453 = vmatpush.bf16.msra.mxu0 0
        %1454 = vmatpush.bf16.msra.mxu0 0
        %1455 = vmatpush.bf16.msra.mxu0 0
        %1456 = vmatpush.bf16.msra.mxu0 0
        %1457 = vmatpush.bf16.msra.mxu0 %v1291
        %1458 = vmatmul.bf16.gmra.mxu0 %v1448
        %v1459 = vpop.f32.mrf.mxu0
        %v1460 = vadd.f32 0.0, %v1459
        %v1461 = vpop.f32.mrf.mxu0
        %v1462 = vadd.f32 0.0, %v1461
        %1463 = vdwg.mxu0
        %v1464 = vadd.f32 %v1429, %v1460
        %v1465 = vadd.f32 %v1430, %v1462
        %v1466 = vrot.slane %v1361, 1
        %v1468 = vsel %vm868, %v1466, 0
        %1470 = vmatpush.bf16.msra.mxu0 0
        %1471 = vmatpush.bf16.msra.mxu0 0
        %1472 = vmatpush.bf16.msra.mxu0 0
        %1473 = vmatpush.bf16.msra.mxu0 0
        %1474 = vmatpush.bf16.msra.mxu0 0
        %1475 = vmatpush.bf16.msra.mxu0 0
        %1476 = vmatpush.bf16.msra.mxu0 0
        %1477 = vmatpush.bf16.msra.mxu0 %v1314
        %1478 = vmatmul.bf16.gmra.mxu0 %v1468
        %v1479 = vpop.f32.mrf.mxu0
        %v1480 = vadd.f32 0.0, %v1479
        %v1481 = vpop.f32.mrf.mxu0
        %v1482 = vadd.f32 0.0, %v1481
        %1483 = vdwg.mxu0
        %v1484 = vadd.f32 %v1464, %v1480
        %v1485 = vadd.f32 %v1465, %v1482
        %v1486 = vrot.slane %v1385, 2
        %v1487 = vrot.slane %v1433, 2
        %v1488 = vsel %vm1005, %v1486, %v1487
        %v1490 = vsel %vm868, %v1488, 0
        %1492 = vmatpush.bf16.msra.mxu0 0
        %1493 = vmatpush.bf16.msra.mxu0 0
        %1494 = vmatpush.bf16.msra.mxu0 0
        %1495 = vmatpush.bf16.msra.mxu0 0
        %1496 = vmatpush.bf16.msra.mxu0 0
        %1497 = vmatpush.bf16.msra.mxu0 0
        %1498 = vmatpush.bf16.msra.mxu0 0
        %1499 = vmatpush.bf16.msra.mxu0 %v1339
        %1500 = vmatmul.bf16.gmra.mxu0 %v1490
        %v1501 = vpop.f32.mrf.mxu0
        %v1502 = vadd.f32 0.0, %v1501
        %v1503 = vpop.f32.mrf.mxu0
        %v1504 = vadd.f32 0.0, %v1503
        %1505 = vdwg.mxu0
        %v1506 = vadd.f32 %v1484, %v1502
        %v1507 = vadd.f32 %v1485, %v1504
        %v1508 = vpack.c.bf16 %v830, %v830
        %v1509 = vpack.c.bf16 %v831, %v831
        %v1510 = vpack.c.bf16 %v832, %v832
        %v1511 = vpack.c.bf16 %v833, %v833
        %v1512 = vpack.c.bf16 %v846, %v846
        %v1513 = vpack.c.bf16 %v847, %v847
        %v1514 = vpack.c.bf16 %v848, %v848
        %v1515 = vpack.c.bf16 %v849, %v849
        %v1516 = vpack.c.bf16 %v850, %v850
        %v1517 = vpack.c.bf16 %v851, %v851
        %v1520 = vunpack.c.l.b16 %v1508
        %v1521 = vunpack.c.l.b16 %v1509
        %v1522 = vpack.c.b16 %v1521, %v1520
        %v1524 = vsel %vm868, %v1522, 0
        %v1527 = vsel %vm872, %v810, 0
        %1529 = vmatpush.bf16.msra.mxu0 0
        %1530 = vmatpush.bf16.msra.mxu0 0
        %1531 = vmatpush.bf16.msra.mxu0 0
        %1532 = vmatpush.bf16.msra.mxu0 0
        %1533 = vmatpush.bf16.msra.mxu0 0
        %1534 = vmatpush.bf16.msra.mxu0 0
        %1535 = vmatpush.bf16.msra.mxu0 0
        %1536 = vmatpush.bf16.msra.mxu0 %v1527
        %1537 = vmatmul.bf16.gmra.mxu0 %v1524
        %v1538 = vpop.f32.mrf.mxu0
        %v1539 = vadd.f32 0.0, %v1538
        %v1540 = vpop.f32.mrf.mxu0
        %v1541 = vadd.f32 0.0, %v1540
        %1542 = vdwg.mxu0
        %v1543 = vadd.f32 %v1355, %v1539
        %v1544 = vadd.f32 %v1356, %v1541
        %v1547 = vunpack.c.l.b16 %v1512
        %v1548 = vunpack.c.l.b16 %v1513
        %v1549 = vpack.c.b16 %v1548, %v1547
        %v1550 = vrot.slane %v1549, 1
        %v1552 = vsel %vm868, %v1550, 0
        %v1555 = vsel %vm872, %v819, 0
        %1557 = vmatpush.bf16.msra.mxu0 0
        %1558 = vmatpush.bf16.msra.mxu0 0
        %1559 = vmatpush.bf16.msra.mxu0 0
        %1560 = vmatpush.bf16.msra.mxu0 0
        %1561 = vmatpush.bf16.msra.mxu0 0
        %1562 = vmatpush.bf16.msra.mxu0 0
        %1563 = vmatpush.bf16.msra.mxu0 0
        %1564 = vmatpush.bf16.msra.mxu0 %v1555
        %1565 = vmatmul.bf16.gmra.mxu0 %v1552
        %v1566 = vpop.f32.mrf.mxu0
        %v1567 = vadd.f32 0.0, %v1566
        %v1568 = vpop.f32.mrf.mxu0
        %v1569 = vadd.f32 0.0, %v1568
        %1570 = vdwg.mxu0
        %v1571 = vadd.f32 %v1543, %v1567
        %v1572 = vadd.f32 %v1544, %v1569
        %v1573 = vshrl.u32 %v1522, 16
        %v1575 = vshll.u32 %v1522, 16
        %v1577 = vrot.slane %v1575, 1
        %v1578 = vor.u32 %v1573, %v1577
        %v1580 = vsel %vm868, %v1578, 0
        %v1583 = vsel %vm872, %v811, 0
        %1585 = vmatpush.bf16.msra.mxu0 0
        %1586 = vmatpush.bf16.msra.mxu0 0
        %1587 = vmatpush.bf16.msra.mxu0 0
        %1588 = vmatpush.bf16.msra.mxu0 0
        %1589 = vmatpush.bf16.msra.mxu0 0
        %1590 = vmatpush.bf16.msra.mxu0 0
        %1591 = vmatpush.bf16.msra.mxu0 0
        %1592 = vmatpush.bf16.msra.mxu0 %v1583
        %1593 = vmatmul.bf16.gmra.mxu0 %v1580
        %v1594 = vpop.f32.mrf.mxu0
        %v1595 = vadd.f32 0.0, %v1594
        %v1596 = vpop.f32.mrf.mxu0
        %v1597 = vadd.f32 0.0, %v1596
        %1598 = vdwg.mxu0
        %v1599 = vadd.f32 %v1571, %v1595
        %v1600 = vadd.f32 %v1572, %v1597
        %v1602 = vunpack.c.l.b16 %v1514
        %v1603 = vpack.c.b16 %v1602, %v1602
        %v1605 = vshrl.u32 %v1549, 16
        %v1607 = vrot.slane %v1605, 1
        %v1608 = vshll.u32 %v1549, 16
        %v1610 = vrot.slane %v1608, 2
        %v1611 = vor.u32 %v1607, %v1610
        %v1613 = vshll.u32 %v1603, 16
        %v1615 = vrot.slane %v1613, 2
        %v1616 = vsel %vm946, %v1611, %v1615
        %v1618 = vsel %vm868, %v1616, 0
        %v1621 = vsel %vm872, %v820, 0
        %1623 = vmatpush.bf16.msra.mxu0 0
        %1624 = vmatpush.bf16.msra.mxu0 0
        %1625 = vmatpush.bf16.msra.mxu0 0
        %1626 = vmatpush.bf16.msra.mxu0 0
        %1627 = vmatpush.bf16.msra.mxu0 0
        %1628 = vmatpush.bf16.msra.mxu0 0
        %1629 = vmatpush.bf16.msra.mxu0 0
        %1630 = vmatpush.bf16.msra.mxu0 %v1621
        %1631 = vmatmul.bf16.gmra.mxu0 %v1618
        %v1632 = vpop.f32.mrf.mxu0
        %v1633 = vadd.f32 0.0, %v1632
        %v1634 = vpop.f32.mrf.mxu0
        %v1635 = vadd.f32 0.0, %v1634
        %1636 = vdwg.mxu0
        %v1637 = vadd.f32 %v1599, %v1633
        %v1638 = vadd.f32 %v1600, %v1635
        %v1639 = vrot.slane %v1522, 1
        %v1641 = vsel %vm868, %v1639, 0
        %v1644 = vsel %vm872, %v812, 0
        %1646 = vmatpush.bf16.msra.mxu0 0
        %1647 = vmatpush.bf16.msra.mxu0 0
        %1648 = vmatpush.bf16.msra.mxu0 0
        %1649 = vmatpush.bf16.msra.mxu0 0
        %1650 = vmatpush.bf16.msra.mxu0 0
        %1651 = vmatpush.bf16.msra.mxu0 0
        %1652 = vmatpush.bf16.msra.mxu0 0
        %1653 = vmatpush.bf16.msra.mxu0 %v1644
        %1654 = vmatmul.bf16.gmra.mxu0 %v1641
        %v1655 = vpop.f32.mrf.mxu0
        %v1656 = vadd.f32 0.0, %v1655
        %v1657 = vpop.f32.mrf.mxu0
        %v1658 = vadd.f32 0.0, %v1657
        %1659 = vdwg.mxu0
        %v1660 = vadd.f32 %v1637, %v1656
        %v1661 = vadd.f32 %v1638, %v1658
        %v1662 = vrot.slane %v1549, 2
        %v1663 = vrot.slane %v1603, 2
        %v1664 = vsel %vm1005, %v1662, %v1663
        %v1666 = vsel %vm868, %v1664, 0
        %v1669 = vsel %vm872, %v821, 0
        %1671 = vmatpush.bf16.msra.mxu0 0
        %1672 = vmatpush.bf16.msra.mxu0 0
        %1673 = vmatpush.bf16.msra.mxu0 0
        %1674 = vmatpush.bf16.msra.mxu0 0
        %1675 = vmatpush.bf16.msra.mxu0 0
        %1676 = vmatpush.bf16.msra.mxu0 0
        %1677 = vmatpush.bf16.msra.mxu0 0
        %1678 = vmatpush.bf16.msra.mxu0 %v1669
        %1679 = vmatmul.bf16.gmra.mxu0 %v1666
        %v1680 = vpop.f32.mrf.mxu0
        %v1681 = vadd.f32 0.0, %v1680
        %v1682 = vpop.f32.mrf.mxu0
        %v1683 = vadd.f32 0.0, %v1682
        %1684 = vdwg.mxu0
        %v1685 = vadd.f32 %v1660, %v1681
        %v1686 = vadd.f32 %v1661, %v1683
        %v1689 = vunpack.c.l.b16 %v1510
        %v1690 = vunpack.c.l.b16 %v1511
        %v1691 = vpack.c.b16 %v1690, %v1689
        %v1693 = vsel %vm868, %v1691, 0
        %1695 = vmatpush.bf16.msra.mxu0 0
        %1696 = vmatpush.bf16.msra.mxu0 0
        %1697 = vmatpush.bf16.msra.mxu0 0
        %1698 = vmatpush.bf16.msra.mxu0 0
        %1699 = vmatpush.bf16.msra.mxu0 0
        %1700 = vmatpush.bf16.msra.mxu0 0
        %1701 = vmatpush.bf16.msra.mxu0 0
        %1702 = vmatpush.bf16.msra.mxu0 %v1527
        %1703 = vmatmul.bf16.gmra.mxu0 %v1693
        %v1704 = vpop.f32.mrf.mxu0
        %v1705 = vadd.f32 0.0, %v1704
        %v1706 = vpop.f32.mrf.mxu0
        %v1707 = vadd.f32 0.0, %v1706
        %1708 = vdwg.mxu0
        %v1709 = vadd.f32 %v1506, %v1705
        %v1710 = vadd.f32 %v1507, %v1707
        %v1713 = vunpack.c.l.b16 %v1515
        %v1714 = vunpack.c.l.b16 %v1516
        %v1715 = vpack.c.b16 %v1714, %v1713
        %v1716 = vrot.slane %v1715, 1
        %v1718 = vsel %vm868, %v1716, 0
        %1720 = vmatpush.bf16.msra.mxu0 0
        %1721 = vmatpush.bf16.msra.mxu0 0
        %1722 = vmatpush.bf16.msra.mxu0 0
        %1723 = vmatpush.bf16.msra.mxu0 0
        %1724 = vmatpush.bf16.msra.mxu0 0
        %1725 = vmatpush.bf16.msra.mxu0 0
        %1726 = vmatpush.bf16.msra.mxu0 0
        %1727 = vmatpush.bf16.msra.mxu0 %v1555
        %1728 = vmatmul.bf16.gmra.mxu0 %v1718
        %v1729 = vpop.f32.mrf.mxu0
        %v1730 = vadd.f32 0.0, %v1729
        %v1731 = vpop.f32.mrf.mxu0
        %v1732 = vadd.f32 0.0, %v1731
        %1733 = vdwg.mxu0
        %v1734 = vadd.f32 %v1709, %v1730
        %v1735 = vadd.f32 %v1710, %v1732
        %v1736 = vshrl.u32 %v1691, 16
        %v1738 = vshll.u32 %v1691, 16
        %v1740 = vrot.slane %v1738, 1
        %v1741 = vor.u32 %v1736, %v1740
        %v1743 = vsel %vm868, %v1741, 0
        %1745 = vmatpush.bf16.msra.mxu0 0
        %1746 = vmatpush.bf16.msra.mxu0 0
        %1747 = vmatpush.bf16.msra.mxu0 0
        %1748 = vmatpush.bf16.msra.mxu0 0
        %1749 = vmatpush.bf16.msra.mxu0 0
        %1750 = vmatpush.bf16.msra.mxu0 0
        %1751 = vmatpush.bf16.msra.mxu0 0
        %1752 = vmatpush.bf16.msra.mxu0 %v1583
        %1753 = vmatmul.bf16.gmra.mxu0 %v1743
        %v1754 = vpop.f32.mrf.mxu0
        %v1755 = vadd.f32 0.0, %v1754
        %v1756 = vpop.f32.mrf.mxu0
        %v1757 = vadd.f32 0.0, %v1756
        %1758 = vdwg.mxu0
        %v1759 = vadd.f32 %v1734, %v1755
        %v1760 = vadd.f32 %v1735, %v1757
        %v1762 = vunpack.c.l.b16 %v1517
        %v1763 = vpack.c.b16 %v1762, %v1762
        %v1765 = vshrl.u32 %v1715, 16
        %v1767 = vrot.slane %v1765, 1
        %v1768 = vshll.u32 %v1715, 16
        %v1770 = vrot.slane %v1768, 2
        %v1771 = vor.u32 %v1767, %v1770
        %v1773 = vshll.u32 %v1763, 16
        %v1775 = vrot.slane %v1773, 2
        %v1776 = vsel %vm946, %v1771, %v1775
        %v1778 = vsel %vm868, %v1776, 0
        %1780 = vmatpush.bf16.msra.mxu0 0
        %1781 = vmatpush.bf16.msra.mxu0 0
        %1782 = vmatpush.bf16.msra.mxu0 0
        %1783 = vmatpush.bf16.msra.mxu0 0
        %1784 = vmatpush.bf16.msra.mxu0 0
        %1785 = vmatpush.bf16.msra.mxu0 0
        %1786 = vmatpush.bf16.msra.mxu0 0
        %1787 = vmatpush.bf16.msra.mxu0 %v1621
        %1788 = vmatmul.bf16.gmra.mxu0 %v1778
        %v1789 = vpop.f32.mrf.mxu0
        %v1790 = vadd.f32 0.0, %v1789
        %v1791 = vpop.f32.mrf.mxu0
        %v1792 = vadd.f32 0.0, %v1791
        %1793 = vdwg.mxu0
        %v1794 = vadd.f32 %v1759, %v1790
        %v1795 = vadd.f32 %v1760, %v1792
        %v1796 = vrot.slane %v1691, 1
        %v1798 = vsel %vm868, %v1796, 0
        %1800 = vmatpush.bf16.msra.mxu0 0
        %1801 = vmatpush.bf16.msra.mxu0 0
        %1802 = vmatpush.bf16.msra.mxu0 0
        %1803 = vmatpush.bf16.msra.mxu0 0
        %1804 = vmatpush.bf16.msra.mxu0 0
        %1805 = vmatpush.bf16.msra.mxu0 0
        %1806 = vmatpush.bf16.msra.mxu0 0
        %1807 = vmatpush.bf16.msra.mxu0 %v1644
        %1808 = vmatmul.bf16.gmra.mxu0 %v1798
        %v1809 = vpop.f32.mrf.mxu0
        %v1810 = vadd.f32 0.0, %v1809
        %v1811 = vpop.f32.mrf.mxu0
        %v1812 = vadd.f32 0.0, %v1811
        %1813 = vdwg.mxu0
        %v1814 = vadd.f32 %v1794, %v1810
        %v1815 = vadd.f32 %v1795, %v1812
        %v1816 = vrot.slane %v1715, 2
        %v1817 = vrot.slane %v1763, 2
        %v1818 = vsel %vm1005, %v1816, %v1817
        %v1820 = vsel %vm868, %v1818, 0
        %1822 = vmatpush.bf16.msra.mxu0 0
        %1823 = vmatpush.bf16.msra.mxu0 0
        %1824 = vmatpush.bf16.msra.mxu0 0
        %1825 = vmatpush.bf16.msra.mxu0 0
        %1826 = vmatpush.bf16.msra.mxu0 0
        %1827 = vmatpush.bf16.msra.mxu0 0
        %1828 = vmatpush.bf16.msra.mxu0 0
        %1829 = vmatpush.bf16.msra.mxu0 %v1669
        %1830 = vmatmul.bf16.gmra.mxu0 %v1820
        %v1831 = vpop.f32.mrf.mxu0
        %v1832 = vadd.f32 0.0, %v1831
        %v1833 = vpop.f32.mrf.mxu0
        %v1834 = vadd.f32 0.0, %v1833
        %1835 = vdwg.mxu0
        %v1836 = vadd.f32 %v1814, %v1832
        %v1837 = vadd.f32 %v1815, %v1834
        %1838 = vst.msk [vmem:[%s781] sm:$0xff] %vm868, %v1685
        %vm1839 = vcmask 29696
        %1840 = vst.msk [vmem:[%s781 + $0x8] sm:$0x3f] %vm1839, %v1686
        %1841 = vst.msk [vmem:[%s781 + $0x10] sm:$0xff] %vm868, %v1836
        %1842 = vst.msk [vmem:[%s781 + $0x18] sm:$0x3f] %vm1839, %v1837
        %v1843 = vsel %vm868, %v1685, 0.0
        %v1844 = vsel %vm1839, %v1686, 0.0
        %v1845 = vadd.f32 %v1843, %v1844
        %v1846 = vsel %vm868, %v1836, 0.0
        %v1847 = vadd.f32 %v1845, %v1846
        %v1848 = vsel %vm1839, %v1837, 0.0
        %v1849 = vadd.f32 %v1847, %v1848
        %v1850 = vrot.slane %v1849, 4
        %v1851 = vadd.f32 %v1849, %v1850
        %v1852 = vrot.slane %v1851, 2
        %v1853 = vadd.f32 %v1851, %v1852
        %v1854 = vrot.slane %v1853, 1
        %v1855 = vadd.f32 %v1853, %v1854
        %vm1856 = vcmask 24576
        %1857 = vst.msk [vmem:[%s799] sm:$0x1] %vm1856, %v1855
        %v1858 = vmul.f32 %v1685, %v1685
        %v1859 = vmul.f32 %v1686, %v1686
        %v1860 = vmul.f32 %v1836, %v1836
        %v1861 = vmul.f32 %v1837, %v1837
        %v1862 = vsel %vm868, %v1858, 0.0
        %v1863 = vsel %vm1839, %v1859, 0.0
        %v1864 = vadd.f32 %v1862, %v1863
        %v1865 = vsel %vm868, %v1860, 0.0
        %v1866 = vadd.f32 %v1864, %v1865
        %v1867 = vsel %vm1839, %v1861, 0.0
        %v1868 = vadd.f32 %v1866, %v1867
        %v1869 = vrot.slane %v1868, 4
        %v1870 = vadd.f32 %v1868, %v1869
        %v1871 = vrot.slane %v1870, 2
        %v1872 = vadd.f32 %v1870, %v1871
        %v1873 = vrot.slane %v1872, 1
        %v1874 = vadd.f32 %v1872, %v1873
        %1875 = vst.msk [vmem:[%s802] sm:$0x1] %vm1856, %v1874
        %s1876 = sand.u32 %s238, 1
        %s1877 = sand.u32 %s238, 1
        %s1878 = smul.addr %s1877, 32
        %s1879 = scalar_lea.vmem [#allocation8], %s1878
        %p1880 = scmp.lt.s32.totalorder %s22, 13
        %s1881 = scalar_select %p1880, %s22, 13
        %s1882 = scalar_lea.vmem %s9, %s1881
        %p1883 = scmp.lt.s32.totalorder %s22, 13
        %s1884 = scalar_select %p1883, %s22, 13
        %s1885 = scalar_lea.vmem %s10, %s1884
        // Predicated region
        $region281: #{up_forward.5} parent=255 // pred_check
          %p1886 = pneg %p248
        $region282: #{up_forward.5} parent=255 // pred_check_branch
          %1888 = sbr.rel (%p1886) target = $region284
        $region283: #{up_forward.5} parent=255 // pred_region
          %s1889 = smul.addr %s22, 2
          %s1890 = smul.addr %s1889, 8
          %s1891 = scalar_lea.vmem %s8, %s1890
          // Predicated region
          $region285: #{up_forward.5} parent=283 // pred_check
            _
          $region286: #{up_forward.5} parent=283 // pred_check_branch
            %1893 = sbr.rel (0) target = $region288
          $region287: #{up_forward.5} parent=283 // pred_region
            // Predicated region
            $region289: #{up_forward.5} parent=287 // pred_check
              _
            $region290: #{up_forward.5} parent=287 // pred_check_branch
              %1895 = sbr.rel (0) target = $region292
            $region291: #{up_forward.5} parent=287 // pred_region
              // Predicated region
              $region304: #{up_forward.5} parent=291 // pred_check
                _
              $region305: #{up_forward.5} parent=291 // pred_check_branch
                %1917 = sbr.rel (0) target = $region307
              $region306: #{up_forward.5} parent=291 // pred_region
                loop: start=0, step=1, limit=1
                $region308: #{up_forward.5} parent=306 // loop_pre_header
                  _
                $region309: #{up_forward.5} parent=306 // loop_header
                  %s1919 = sphi 0, %s1923
                  %p1920 = scmp.ge.s32.totalorder %s1919, 1
                  %s1924 = sphi %s1879, %s1879
                  %s1925 = sphi %s1891, %s1891
                $region310: #{up_forward.5} parent=306 // loop_header_branch
                  %1922 = sbr.rel (%p1920) target = $region314
                $region311: #{up_forward.5} parent=306 // loop_body
                  %v1926 = vld [vmem:[%s1924] sm:$0xff]
                  %1927 = vst [vmem:[%s1925] sm:$0xff] %v1926
                  %v1928 = vld [vmem:[%s1924 + $0x8] sm:$0xff]
                  %1929 = vst [vmem:[%s1925 + $0x8] sm:$0xff] %v1928
                  %v1930 = vld [vmem:[%s1924 + $0x10] sm:$0xff]
                  %1931 = vst [vmem:[%s1925 + $0xe0] sm:$0xff] %v1930
                  %v1932 = vld [vmem:[%s1924 + $0x18] sm:$0xff]
                  %1933 = vst [vmem:[%s1925 + $0xe8] sm:$0xff] %v1932
                $region312: #{up_forward.5} parent=306 // loop_footer
                  %s1923 = sadd.s32 1, %s1919
                $region313: #{up_forward.5} parent=306 // loop_footer_branch
                  %1918 = sbr.rel target = $region309
                $region314: #{up_forward.5} parent=306 // loop_exit
                  _
              $region307: #{up_forward.5} parent=291 // pred_fallthru
                _
              // Predicated region
              $region315: #{up_forward.5} parent=291 // pred_check
                _
              $region316: #{up_forward.5} parent=291 // pred_check_branch
                %1935 = sbr.rel target = $region318
              $region317: #{up_forward.5} parent=291 // pred_region
                _
              $region318: #{up_forward.5} parent=291 // pred_fallthru
                _
            $region292: #{up_forward.5} parent=287 // pred_fallthru
              _
            // Predicated region
            $region293: #{up_forward.5} parent=287 // pred_check
              _
            $region294: #{up_forward.5} parent=287 // pred_check_branch
              %1897 = sbr.rel target = $region296
            $region295: #{up_forward.5} parent=287 // pred_region
              %s1899 = ssub.s32 256, 1
              loop: start=0, step=1, limit=1
              $region297: #{up_forward.5} parent=295 // loop_pre_header
                _
              $region298: #{up_forward.5} parent=295 // loop_header
                %s1901 = sphi 0, %s1905
                %p1902 = scmp.ge.s32.totalorder %s1901, 1
                %s1906 = sphi %s1879, %s1879
                %s1907 = sphi %s1891, %s1891
              $region299: #{up_forward.5} parent=295 // loop_header_branch
                %1904 = sbr.rel (%p1902) target = $region303
              $region300: #{up_forward.5} parent=295 // loop_body
                %v1908 = vld [vmem:[%s1906] sm:%s1899]
                %1909 = vst [vmem:[%s1907] sm:%s1899] %v1908
                %v1910 = vld [vmem:[%s1906 + $0x8] sm:%s1899]
                %1911 = vst [vmem:[%s1907 + $0x8] sm:%s1899] %v1910
                %v1912 = vld [vmem:[%s1906 + $0x10] sm:%s1899]
                %1913 = vst [vmem:[%s1907 + $0xe0] sm:%s1899] %v1912
                %v1914 = vld [vmem:[%s1906 + $0x18] sm:%s1899]
                %1915 = vst [vmem:[%s1907 + $0xe8] sm:%s1899] %v1914
              $region301: #{up_forward.5} parent=295 // loop_footer
                %s1905 = sadd.s32 1, %s1901
              $region302: #{up_forward.5} parent=295 // loop_footer_branch
                %1900 = sbr.rel target = $region298
              $region303: #{up_forward.5} parent=295 // loop_exit
                _
            $region296: #{up_forward.5} parent=287 // pred_fallthru
              _
          $region288: #{up_forward.5} parent=283 // pred_fallthru
            _
          %1936 = vnop
        $region284: #{up_forward.5} parent=255 // pred_fallthru
          _
        // Predicated region
        $region319: #{up_forward.5} parent=255 // pred_check
          %p1937 = pneg %p274
        $region320: #{up_forward.5} parent=255 // pred_check_branch
          %1939 = sbr.rel (%p1937) target = $region322
        $region321: #{up_forward.5} parent=255 // pred_region
          _
        $region322: #{up_forward.5} parent=255 // pred_fallthru
          _
        // Predicated region
        $region323: #{up_forward.5} parent=255 // pred_check
          %p1940 = pneg %p300
        $region324: #{up_forward.5} parent=255 // pred_check_branch
          %1942 = sbr.rel (%p1940) target = $region326
        $region325: #{up_forward.5} parent=255 // pred_region
          _
        $region326: #{up_forward.5} parent=255 // pred_fallthru
          _
      $region256: #{up_forward.5} parent=5 // pred_fallthru
        _
      %p1943 = scmp.le.s32.totalorder 2, %s17
      // Predicated region
      $region327: #{up_forward.5} parent=5 // pred_check
        %p1944 = pneg %p1943
      $region328: #{up_forward.5} parent=5 // pred_check_branch
        %1946 = sbr.rel (%p1944) target = $region330
      $region329: #{up_forward.5} parent=5 // pred_region
        %s1947 = ssub.s32 %s17, 2
        // Predicated region
        $region331: #{up_forward.5} parent=329 // pred_check
          %p1948 = pneg %p254
        $region332: #{up_forward.5} parent=329 // pred_check_branch
          %1950 = sbr.rel (%p1948) target = $region334
        $region333: #{up_forward.5} parent=329 // pred_region
          %s1951 = sand.u32 %s239, 1
          %s1952 = sand.u32 %s239, 1
          %s1953 = smul.addr %s1952, 32
          %s1954 = scalar_lea.vmem [#allocation8], %s1953
        $region334: #{up_forward.5} parent=329 // pred_fallthru
          _
        // Predicated region
        $region335: #{up_forward.5} parent=329 // pred_check
          %p1955 = pneg %p280
        $region336: #{up_forward.5} parent=329 // pred_check_branch
          %1957 = sbr.rel (%p1955) target = $region338
        $region337: #{up_forward.5} parent=329 // pred_region
          %p1958 = scmp.lt.s32.totalorder %s23, 13
          %s1959 = scalar_select %p1958, %s23, 13
          %s1960 = scalar_lea.vmem %s9, %s1959
        $region338: #{up_forward.5} parent=329 // pred_fallthru
          _
        // Predicated region
        $region339: #{up_forward.5} parent=329 // pred_check
          %p1961 = pneg %p306
        $region340: #{up_forward.5} parent=329 // pred_check_branch
          %1963 = sbr.rel (%p1961) target = $region342
        $region341: #{up_forward.5} parent=329 // pred_region
          %p1964 = scmp.lt.s32.totalorder %s23, 13
          %s1965 = scalar_select %p1964, %s23, 13
          %s1966 = scalar_lea.vmem %s10, %s1965
        $region342: #{up_forward.5} parent=329 // pred_fallthru
          _
      $region330: #{up_forward.5} parent=5 // pred_fallthru
        _
    $region6: #{up_forward.5} parent=1 // loop_footer
      %s21 = sadd.s32 1, %s17
    $region7: #{up_forward.5} parent=1 // loop_footer_branch
      %16 = sbr.rel target = $region3
    $region8: #{up_forward.5} parent=1 // loop_exit
      _

// kernel: up_forward.6
$region0: #{up_forward.6}
  #allocation0 [shape = 'u32[]', space=smem, size = 0x4, offset = 0x4, fixed_abs, tag = 'smem constant byte address 0x4 - core index']
  #allocation1 [shape = 'u32[72,128]{1,0:T(1,128)}', space=vmem, size = 0x9000, scoped, tag = 'internal scratch']
  %s0 = inlined_call_operand.vmem [shape: f32[2,14,14,4], index: 0, kind: input, shape index: {}, may-alias: {0,1,2}]
  %s1 = inlined_call_operand.vmem [shape: f32[2,14,14,4], index: 1, kind: input, shape index: {}, may-alias: {0,1,2}]
  %s2 = inlined_call_operand.vmem [shape: f32[2,14,14,4], index: 2, kind: input, shape index: {}, may-alias: {0,1,2}]
  %s3 = inlined_call_operand.vmem [shape: f32[1,4], index: 3, kind: input, shape index: {}]
  %s4 = inlined_call_operand.vmem [shape: f32[1,4], index: 4, kind: input, shape index: {}]
  %s5 = inlined_call_operand.vmem [shape: bf16[3,3,4,4], index: 5, kind: input, shape index: {}]
  %s6 = inlined_call_operand.vmem [shape: f32[2,12,12,4], index: 6, kind: output, shape index: {0}]
  %s7 = inlined_call_operand.vmem [shape: f32[12,1,4], index: 7, kind: output, shape index: {1}]
  %s8 = inlined_call_operand.vmem [shape: f32[12,1,4], index: 8, kind: output, shape index: {2}]
  %9 = xla_tuple %s6, %s7, %s8
  %s10 = sld [smem:[#allocation0]]
  $region221: #{up_forward.6} parent=0
    _
  %s12 = ssub.s32 1, %s10
  %s13 = scalar_select 0, %s12, %s10
  $region1: #{up_forward.6} parent=0
    #allocation2 [shape = 'u8[32768]{0}', space=vmem, size = 0x8000, scoped, tag = 'input window, operand 0']
    #allocation3 [shape = 'u8[32768]{0}', space=vmem, size = 0x8000, scoped, tag = 'input window, operand 1']
    #allocation4 [shape = 'u8[32768]{0}', space=vmem, size = 0x8000, scoped, tag = 'input window, operand 2']
    #allocation5 [shape = 'u8[32768]{0}', space=vmem, size = 0x8000, scoped, tag = 'output window, operand 0']
    loop: start=0, step=1, limit=14
    $region2: #{up_forward.6} parent=1 // loop_pre_header
      _
    $region3: #{up_forward.6} parent=1 // loop_header
      %s15 = sphi 0, %s19
      %p16 = scmp.ge.s32.totalorder %s15, 14
      %s25 = sphi 0, %s27
      %s28 = sphi 0, %s25
      %s29 = sphi 0, %s28
      %s45 = sphi 0, %s29
      %s53 = sphi 0, %s55
      %s56 = sphi 0, %s53
      %s57 = sphi 0, %s56
      %s73 = sphi 0, %s57
      %s81 = sphi 0, %s83
      %s84 = sphi 0, %s81
      %s85 = sphi 0, %s84
      %s101 = sphi 0, %s85
      %s105 = sphi 0, %s105
      %s107 = sphi 0, %s105
      %s108 = sphi 0, %s107
      %s122 = sphi 0, %s108
      %s126 = sphi 0, %s126
      %s128 = sphi 0, %s126
      %s129 = sphi 0, %s128
      %s143 = sphi 0, %s129
      %s147 = sphi 0, %s147
      %s149 = sphi 0, %s147
      %s150 = sphi 0, %s149
      %s164 = sphi 0, %s150
      %s170 = sphi 0, %s172
      %s173 = sphi 0, %s170
      %s174 = sphi 0, %s173
      %s190 = sphi 0, %s174
      %s196 = sphi 0, %s198
      %s199 = sphi 0, %s196
      %s200 = sphi 0, %s199
      %s216 = sphi 0, %s200
      %s222 = sphi 0, %s224
      %s225 = sphi 0, %s222
      %s226 = sphi 0, %s225
      %s242 = sphi 0, %s226
    $region4: #{up_forward.6} parent=1 // loop_header_branch
      %18 = sbr.rel (%p16) target = $region8
    $region5: #{up_forward.6} parent=1 // loop_body
      %s20 = ssub.s32 %s15, 1
      %s21 = ssub.s32 %s15, 2
      %s22 = sadd.s32 %s15, 1
      %s23 = ssub.s32 %s15, %s22
      %p24 = scmp.eq.s32.totalorder %s23, 0
      %s26 = sadd.s32 %s25, 1
      %s27 = scalar_select %p24, %s25, %s26
      %p30 = pneg %p24
      %p31 = scmp.eq.s32.totalorder %s15, 11
      %p32 = por %p30, %p31
      %p33 = scmp.ne.s32.totalorder %s25, %s28
      %p34 = scmp.eq.s32.totalorder %s15, 0
      %p35 = por %p33, %p34
      %p36 = scmp.ne.s32.totalorder %s25, %s28
      %p37 = scmp.eq.s32.totalorder %s20, 11
      %p38 = por %p36, %p37
      %p39 = scmp.ne.s32.totalorder %s28, %s29
      %p40 = scmp.eq.s32.totalorder %s20, 0
      %p41 = por %p39, %p40
      %p42 = scmp.ne.s32.totalorder %s28, %s29
      %p43 = scmp.eq.s32.totalorder %s21, 11
      %p44 = por %p42, %p43
      %p46 = scmp.ne.s32.totalorder %s29, %s45
      %p47 = scmp.eq.s32.totalorder %s21, 0
      %p48 = por %p46, %p47
      %s49 = sadd.s32 %s15, 1
      %s50 = sadd.s32 %s22, 1
      %s51 = ssub.s32 %s49, %s50
      %p52 = scmp.eq.s32.totalorder %s51, 0
      %s54 = sadd.s32 %s53, 1
      %s55 = scalar_select %p52, %s53, %s54
      %p58 = pneg %p52
      %p59 = scmp.eq.s32.totalorder %s15, 11
      %p60 = por %p58, %p59
      %p61 = scmp.ne.s32.totalorder %s53, %s56
      %p62 = scmp.eq.s32.totalorder %s15, 0
      %p63 = por %p61, %p62
      %p64 = scmp.ne.s32.totalorder %s53, %s56
      %p65 = scmp.eq.s32.totalorder %s20, 11
      %p66 = por %p64, %p65
      %p67 = scmp.ne.s32.totalorder %s56, %s57
      %p68 = scmp.eq.s32.totalorder %s20, 0
      %p69 = por %p67, %p68
      %p70 = scmp.ne.s32.totalorder %s56, %s57
      %p71 = scmp.eq.s32.totalorder %s21, 11
      %p72 = por %p70, %p71
      %p74 = scmp.ne.s32.totalorder %s57, %s73
      %p75 = scmp.eq.s32.totalorder %s21, 0
      %p76 = por %p74, %p75
      %s77 = sadd.s32 %s15, 2
      %s78 = sadd.s32 %s22, 2
      %s79 = ssub.s32 %s77, %s78
      %p80 = scmp.eq.s32.totalorder %s79, 0
      %s82 = sadd.s32 %s81, 1
      %s83 = scalar_select %p80, %s81, %s82
      %p86 = pneg %p80
      %p87 = scmp.eq.s32.totalorder %s15, 11
      %p88 = por %p86, %p87
      %p89 = scmp.ne.s32.totalorder %s81, %s84
      %p90 = scmp.eq.s32.totalorder %s15, 0
      %p91 = por %p89, %p90
      %p92 = scmp.ne.s32.totalorder %s81, %s84
      %p93 = scmp.eq.s32.totalorder %s20, 11
      %p94 = por %p92, %p93
      %p95 = scmp.ne.s32.totalorder %s84, %s85
      %p96 = scmp.eq.s32.totalorder %s20, 0
      %p97 = por %p95, %p96
      %p98 = scmp.ne.s32.totalorder %s84, %s85
      %p99 = scmp.eq.s32.totalorder %s21, 11
      %p100 = por %p98, %p99
      %p102 = scmp.ne.s32.totalorder %s85, %s101
      %p103 = scmp.eq.s32.totalorder %s21, 0
      %p104 = por %p102, %p103
      %s106 = sadd.s32 %s105, 1
      %p109 = scmp.eq.s32.totalorder %s15, 11
      %p110 = scmp.ne.s32.totalorder %s105, %s107
      %p111 = scmp.eq.s32.totalorder %s15, 0
      %p112 = por %p110, %p111
      %p113 = scmp.ne.s32.totalorder %s105, %s107
      %p114 = scmp.eq.s32.totalorder %s20, 11
      %p115 = por %p113, %p114
      %p116 = scmp.ne.s32.totalorder %s107, %s108
      %p117 = scmp.eq.s32.totalorder %s20, 0
      %p118 = por %p116, %p117
      %p119 = scmp.ne.s32.totalorder %s107, %s108
      %p120 = scmp.eq.s32.totalorder %s21, 11
      %p121 = por %p119, %p120
      %p123 = scmp.ne.s32.totalorder %s108, %s122
      %p124 = scmp.eq.s32.totalorder %s21, 0
      %p125 = por %p123, %p124
      %s127 = sadd.s32 %s126, 1
      %p130 = scmp.eq.s32.totalorder %s15, 11
      %p131 = scmp.ne.s32.totalorder %s126, %s128
      %p132 = scmp.eq.s32.totalorder %s15, 0
      %p133 = por %p131, %p132
      %p134 = scmp.ne.s32.totalorder %s126, %s128
      %p135 = scmp.eq.s32.totalorder %s20, 11
      %p136 = por %p134, %p135
      %p137 = scmp.ne.s32.totalorder %s128, %s129
      %p138 = scmp.eq.s32.totalorder %s20, 0
      %p139 = por %p137, %p138
      %p140 = scmp.ne.s32.totalorder %s128, %s129
      %p141 = scmp.eq.s32.totalorder %s21, 11
      %p142 = por %p140, %p141
      %p144 = scmp.ne.s32.totalorder %s129, %s143
      %p145 = scmp.eq.s32.totalorder %s21, 0
      %p146 = por %p144, %p145
      %s148 = sadd.s32 %s147, 1
      %p151 = scmp.eq.s32.totalorder %s15, 11
      %p152 = scmp.ne.s32.totalorder %s147, %s149
      %p153 = scmp.eq.s32.totalorder %s15, 0
      %p154 = por %p152, %p153
      %p155 = scmp.ne.s32.totalorder %s147, %s149
      %p156 = scmp.eq.s32.totalorder %s20, 11
      %p157 = por %p155, %p156
      %p158 = scmp.ne.s32.totalorder %s149, %s150
      %p159 = scmp.eq.s32.totalorder %s20, 0
      %p160 = por %p158, %p159
      %p161 = scmp.ne.s32.totalorder %s149, %s150
      %p162 = scmp.eq.s32.totalorder %s21, 11
      %p163 = por %p161, %p162
      %p165 = scmp.ne.s32.totalorder %s150, %s164
      %p166 = scmp.eq.s32.totalorder %s21, 0
      %p167 = por %p165, %p166
      %s168 = ssub.s32 %s15, %s22
      %p169 = scmp.eq.s32.totalorder %s168, 0
      %s171 = sadd.s32 %s170, 1
      %s172 = scalar_select %p169, %s170, %s171
      %p175 = pneg %p169
      %p176 = scmp.eq.s32.totalorder %s15, 11
      %p177 = por %p175, %p176
      %p178 = scmp.ne.s32.totalorder %s170, %s173
      %p179 = scmp.eq.s32.totalorder %s15, 0
      %p180 = por %p178, %p179
      %p181 = scmp.ne.s32.totalorder %s170, %s173
      %p182 = scmp.eq.s32.totalorder %s20, 11
      %p183 = por %p181, %p182
      %p184 = scmp.ne.s32.totalorder %s173, %s174
      %p185 = scmp.eq.s32.totalorder %s20, 0
      %p186 = por %p184, %p185
      %p187 = scmp.ne.s32.totalorder %s173, %s174
      %p188 = scmp.eq.s32.totalorder %s21, 11
      %p189 = por %p187, %p188
      %p191 = scmp.ne.s32.totalorder %s174, %s190
      %p192 = scmp.eq.s32.totalorder %s21, 0
      %p193 = por %p191, %p192
      %s194 = ssub.s32 %s15, %s22
      %p195 = scmp.eq.s32.totalorder %s194, 0
      %s197 = sadd.s32 %s196, 1
      %s198 = scalar_select %p195, %s196, %s197
      %p201 = pneg %p195
      %p202 = scmp.eq.s32.totalorder %s15, 11
      %p203 = por %p201, %p202
      %p204 = scmp.ne.s32.totalorder %s196, %s199
      %p205 = scmp.eq.s32.totalorder %s15, 0
      %p206 = por %p204, %p205
      %p207 = scmp.ne.s32.totalorder %s196, %s199
      %p208 = scmp.eq.s32.totalorder %s20, 11
      %p209 = por %p207, %p208
      %p210 = scmp.ne.s32.totalorder %s199, %s200
      %p211 = scmp.eq.s32.totalorder %s20, 0
      %p212 = por %p210, %p211
      %p213 = scmp.ne.s32.totalorder %s199, %s200
      %p214 = scmp.eq.s32.totalorder %s21, 11
      %p215 = por %p213, %p214
      %p217 = scmp.ne.s32.totalorder %s200, %s216
      %p218 = scmp.eq.s32.totalorder %s21, 0
      %p219 = por %p217, %p218
      %s220 = ssub.s32 %s15, %s22
      %p221 = scmp.eq.s32.totalorder %s220, 0
      %s223 = sadd.s32 %s222, 1
      %s224 = scalar_select %p221, %s222, %s223
      %p227 = pneg %p221
      %p228 = scmp.eq.s32.totalorder %s15, 11
      %p229 = por %p227, %p228
      %p230 = scmp.ne.s32.totalorder %s222, %s225
      %p231 = scmp.eq.s32.totalorder %s15, 0
      %p232 = por %p230, %p231
      %p233 = scmp.ne.s32.totalorder %s222, %s225
      %p234 = scmp.eq.s32.totalorder %s20, 11
      %p235 = por %p233, %p234
      %p236 = scmp.ne.s32.totalorder %s225, %s226
      %p237 = scmp.eq.s32.totalorder %s20, 0
      %p238 = por %p236, %p237
      %p239 = scmp.ne.s32.totalorder %s225, %s226
      %p240 = scmp.eq.s32.totalorder %s21, 11
      %p241 = por %p239, %p240
      %p243 = scmp.ne.s32.totalorder %s226, %s242
      %p244 = scmp.eq.s32.totalorder %s21, 0
      %p245 = por %p243, %p244
      %p246 = scmp.le.s32.totalorder 1, %s15
      %p247 = scmp.lt.s32.totalorder %s15, 13
      %p248 = pnand %p246, %p247
      %p249 = pneg %p248
      // Predicated region
      $region9: #{up_forward.6} parent=5 // pred_check
        _
      $region10: #{up_forward.6} parent=5 // pred_check_branch
        %251 = sbr.rel (%p248) target = $region12
      $region11: #{up_forward.6} parent=5 // pred_region
        %s252 = ssub.s32 %s15, 1
        // Predicated region
        $region13: #{up_forward.6} parent=11 // pred_check
          %p253 = pneg %p118
        $region14: #{up_forward.6} parent=11 // pred_check_branch
          %255 = sbr.rel (%p253) target = $region16
        $region15: #{up_forward.6} parent=11 // pred_region
          _
        $region16: #{up_forward.6} parent=11 // pred_fallthru
          _
        // Predicated region
        $region17: #{up_forward.6} parent=11 // pred_check
          %p256 = pneg %p139
        $region18: #{up_forward.6} parent=11 // pred_check_branch
          %258 = sbr.rel (%p256) target = $region20
        $region19: #{up_forward.6} parent=11 // pred_region
          _
        $region20: #{up_forward.6} parent=11 // pred_fallthru
          _
        // Predicated region
        $region21: #{up_forward.6} parent=11 // pred_check
          %p259 = pneg %p160
        $region22: #{up_forward.6} parent=11 // pred_check_branch
          %261 = sbr.rel (%p259) target = $region24
        $region23: #{up_forward.6} parent=11 // pred_region
          _
        $region24: #{up_forward.6} parent=11 // pred_fallthru
          _
      $region12: #{up_forward.6} parent=5 // pred_fallthru
        _
      %p262 = scmp.lt.s32.totalorder %s15, 12
      // Predicated region
      $region25: #{up_forward.6} parent=5 // pred_check
        %p263 = pneg %p262
      $region26: #{up_forward.6} parent=5 // pred_check_branch
        %265 = sbr.rel (%p263) target = $region28
      $region27: #{up_forward.6} parent=5 // pred_region
        // Predicated region
        $region29: #{up_forward.6} parent=27 // pred_check
          %p266 = pneg %p35
        $region30: #{up_forward.6} parent=27 // pred_check_branch
          %268 = sbr.rel (%p266) target = $region32
        $region31: #{up_forward.6} parent=27 // pred_region
          %s269 = sand.u32 %s25, 1
          %s270 = sand.u32 %s25, 1
          %s271 = smul.addr %s270, 32
          %s272 = scalar_lea.vmem [#allocation2], %s271
          %s273 = smul.addr %s15, 2
          %s274 = smul.addr %s273, 8
          %s275 = scalar_lea.vmem %s0, %s274
          // Predicated region
          $region33: #{up_forward.6} parent=31 // pred_check
            _
          $region34: #{up_forward.6} parent=31 // pred_check_branch
            %277 = sbr.rel (0) target = $region36
          $region35: #{up_forward.6} parent=31 // pred_region
            // Predicated region
            $region37: #{up_forward.6} parent=35 // pred_check
              _
            $region38: #{up_forward.6} parent=35 // pred_check_branch
              %279 = sbr.rel (0) target = $region40
            $region39: #{up_forward.6} parent=35 // pred_region
              // Predicated region
              $region52: #{up_forward.6} parent=39 // pred_check
                _
              $region53: #{up_forward.6} parent=39 // pred_check_branch
                %301 = sbr.rel (0) target = $region55
              $region54: #{up_forward.6} parent=39 // pred_region
                loop: start=0, step=1, limit=1
                $region56: #{up_forward.6} parent=54 // loop_pre_header
                  _
                $region57: #{up_forward.6} parent=54 // loop_header
                  %s303 = sphi 0, %s307
                  %p304 = scmp.ge.s32.totalorder %s303, 1
                  %s308 = sphi %s275, %s275
                  %s309 = sphi %s272, %s272
                $region58: #{up_forward.6} parent=54 // loop_header_branch
                  %306 = sbr.rel (%p304) target = $region62
                $region59: #{up_forward.6} parent=54 // loop_body
                  %v310 = vld [vmem:[%s308] sm:$0xff]
                  %311 = vst [vmem:[%s309] sm:$0xff] %v310
                  %v312 = vld [vmem:[%s308 + $0x8] sm:$0xff]
                  %313 = vst [vmem:[%s309 + $0x8] sm:$0xff] %v312
                  %v314 = vld [vmem:[%s308 + $0xe0] sm:$0xff]
                  %315 = vst [vmem:[%s309 + $0x10] sm:$0xff] %v314
                  %v316 = vld [vmem:[%s308 + $0xe8] sm:$0xff]
                  %317 = vst [vmem:[%s309 + $0x18] sm:$0xff] %v316
                $region60: #{up_forward.6} parent=54 // loop_footer
                  %s307 = sadd.s32 1, %s303
                $region61: #{up_forward.6} parent=54 // loop_footer_branch
                  %302 = sbr.rel target = $region57
                $region62: #{up_forward.6} parent=54 // loop_exit
                  _
              $region55: #{up_forward.6} parent=39 // pred_fallthru
                _
              // Predicated region
              $region63: #{up_forward.6} parent=39 // pred_check
                _
              $region64: #{up_forward.6} parent=39 // pred_check_branch
                %319 = sbr.rel target = $region66
              $region65: #{up_forward.6} parent=39 // pred_region
                _
              $region66: #{up_forward.6} parent=39 // pred_fallthru
                _
            $region40: #{up_forward.6} parent=35 // pred_fallthru
              _
            // Predicated region
            $region41: #{up_forward.6} parent=35 // pred_check
              _
            $region42: #{up_forward.6} parent=35 // pred_check_branch
              %281 = sbr.rel target = $region44
            $region43: #{up_forward.6} parent=35 // pred_region
              %s283 = ssub.s32 256, 1
              loop: start=0, step=1, limit=1
              $region45: #{up_forward.6} parent=43 // loop_pre_header
                _
              $region46: #{up_forward.6} parent=43 // loop_header
                %s285 = sphi 0, %s289
                %p286 = scmp.ge.s32.totalorder %s285, 1
                %s290 = sphi %s275, %s275
                %s291 = sphi %s272, %s272
              $region47: #{up_forward.6} parent=43 // loop_header_branch
                %288 = sbr.rel (%p286) target = $region51
              $region48: #{up_forward.6} parent=43 // loop_body
                %v292 = vld [vmem:[%s290] sm:%s283]
                %293 = vst [vmem:[%s291] sm:%s283] %v292
                %v294 = vld [vmem:[%s290 + $0x8] sm:%s283]
                %295 = vst [vmem:[%s291 + $0x8] sm:%s283] %v294
                %v296 = vld [vmem:[%s290 + $0xe0] sm:%s283]
                %297 = vst [vmem:[%s291 + $0x10] sm:%s283] %v296
                %v298 = vld [vmem:[%s290 + $0xe8] sm:%s283]
                %299 = vst [vmem:[%s291 + $0x18] sm:%s283] %v298
              $region49: #{up_forward.6} parent=43 // loop_footer
                %s289 = sadd.s32 1, %s285
              $region50: #{up_forward.6} parent=43 // loop_footer_branch
                %284 = sbr.rel target = $region46
              $region51: #{up_forward.6} parent=43 // loop_exit
                _
            $region44: #{up_forward.6} parent=35 // pred_fallthru
              _
          $region36: #{up_forward.6} parent=31 // pred_fallthru
            _
          %320 = vnop
        $region32: #{up_forward.6} parent=27 // pred_fallthru
          _
        // Predicated region
        $region67: #{up_forward.6} parent=27 // pred_check
          %p321 = pneg %p63
        $region68: #{up_forward.6} parent=27 // pred_check_branch
          %323 = sbr.rel (%p321) target = $region70
        $region69: #{up_forward.6} parent=27 // pred_region
          %s324 = sand.u32 %s53, 1
          %s325 = sand.u32 %s53, 1
          %s326 = smul.addr %s325, 32
          %s327 = scalar_lea.vmem [#allocation3], %s326
          %s328 = sadd.s32 %s15, 1
          %s329 = smul.addr %s328, 2
          %s330 = smul.addr %s329, 8
          %s331 = scalar_lea.vmem %s1, %s330
          // Predicated region
          $region71: #{up_forward.6} parent=69 // pred_check
            _
          $region72: #{up_forward.6} parent=69 // pred_check_branch
            %333 = sbr.rel (0) target = $region74
          $region73: #{up_forward.6} parent=69 // pred_region
            // Predicated region
            $region75: #{up_forward.6} parent=73 // pred_check
              _
            $region76: #{up_forward.6} parent=73 // pred_check_branch
              %335 = sbr.rel (0) target = $region78
            $region77: #{up_forward.6} parent=73 // pred_region
              // Predicated region
              $region90: #{up_forward.6} parent=77 // pred_check
                _
              $region91: #{up_forward.6} parent=77 // pred_check_branch
                %357 = sbr.rel (0) target = $region93
              $region92: #{up_forward.6} parent=77 // pred_region
                loop: start=0, step=1, limit=1
                $region94: #{up_forward.6} parent=92 // loop_pre_header
                  _
                $region95: #{up_forward.6} parent=92 // loop_header
                  %s359 = sphi 0, %s363
                  %p360 = scmp.ge.s32.totalorder %s359, 1
                  %s364 = sphi %s331, %s331
                  %s365 = sphi %s327, %s327
                $region96: #{up_forward.6} parent=92 // loop_header_branch
                  %362 = sbr.rel (%p360) target = $region100
                $region97: #{up_forward.6} parent=92 // loop_body
                  %v366 = vld [vmem:[%s364] sm:$0xff]
                  %367 = vst [vmem:[%s365] sm:$0xff] %v366
                  %v368 = vld [vmem:[%s364 + $0x8] sm:$0xff]
                  %369 = vst [vmem:[%s365 + $0x8] sm:$0xff] %v368
                  %v370 = vld [vmem:[%s364 + $0xe0] sm:$0xff]
                  %371 = vst [vmem:[%s365 + $0x10] sm:$0xff] %v370
                  %v372 = vld [vmem:[%s364 + $0xe8] sm:$0xff]
                  %373 = vst [vmem:[%s365 + $0x18] sm:$0xff] %v372
                $region98: #{up_forward.6} parent=92 // loop_footer
                  %s363 = sadd.s32 1, %s359
                $region99: #{up_forward.6} parent=92 // loop_footer_branch
                  %358 = sbr.rel target = $region95
                $region100: #{up_forward.6} parent=92 // loop_exit
                  _
              $region93: #{up_forward.6} parent=77 // pred_fallthru
                _
              // Predicated region
              $region101: #{up_forward.6} parent=77 // pred_check
                _
              $region102: #{up_forward.6} parent=77 // pred_check_branch
                %375 = sbr.rel target = $region104
              $region103: #{up_forward.6} parent=77 // pred_region
                _
              $region104: #{up_forward.6} parent=77 // pred_fallthru
                _
            $region78: #{up_forward.6} parent=73 // pred_fallthru
              _
            // Predicated region
            $region79: #{up_forward.6} parent=73 // pred_check
              _
            $region80: #{up_forward.6} parent=73 // pred_check_branch
              %337 = sbr.rel target = $region82
            $region81: #{up_forward.6} parent=73 // pred_region
              %s339 = ssub.s32 256, 1
              loop: start=0, step=1, limit=1
              $region83: #{up_forward.6} parent=81 // loop_pre_header
                _
              $region84: #{up_forward.6} parent=81 // loop_header
                %s341 = sphi 0, %s345
                %p342 = scmp.ge.s32.totalorder %s341, 1
                %s346 = sphi %s331, %s331
                %s347 = sphi %s327, %s327
              $region85: #{up_forward.6} parent=81 // loop_header_branch
                %344 = sbr.rel (%p342) target = $region89
              $region86: #{up_forward.6} parent=81 // loop_body
                %v348 = vld [vmem:[%s346] sm:%s339]
                %349 = vst [vmem:[%s347] sm:%s339] %v348
                %v350 = vld [vmem:[%s346 + $0x8] sm:%s339]
                %351 = vst [vmem:[%s347 + $0x8] sm:%s339] %v350
                %v352 = vld [vmem:[%s346 + $0xe0] sm:%s339]
                %353 = vst [vmem:[%s347 + $0x10] sm:%s339] %v352
                %v354 = vld [vmem:[%s346 + $0xe8] sm:%s339]
                %355 = vst [vmem:[%s347 + $0x18] sm:%s339] %v354
              $region87: #{up_forward.6} parent=81 // loop_footer
                %s345 = sadd.s32 1, %s341
              $region88: #{up_forward.6} parent=81 // loop_footer_branch
                %340 = sbr.rel target = $region84
              $region89: #{up_forward.6} parent=81 // loop_exit
                _
            $region82: #{up_forward.6} parent=73 // pred_fallthru
              _
          $region74: #{up_forward.6} parent=69 // pred_fallthru
            _
          %376 = vnop
        $region70: #{up_forward.6} parent=27 // pred_fallthru
          _
        // Predicated region
        $region105: #{up_forward.6} parent=27 // pred_check
          %p377 = pneg %p91
        $region106: #{up_forward.6} parent=27 // pred_check_branch
          %379 = sbr.rel (%p377) target = $region108
        $region107: #{up_forward.6} parent=27 // pred_region
          %s380 = sand.u32 %s81, 1
          %s381 = sand.u32 %s81, 1
          %s382 = smul.addr %s381, 32
          %s383 = scalar_lea.vmem [#allocation4], %s382
          %s384 = sadd.s32 %s15, 2
          %s385 = smul.addr %s384, 2
          %s386 = smul.addr %s385, 8
          %s387 = scalar_lea.vmem %s2, %s386
          // Predicated region
          $region109: #{up_forward.6} parent=107 // pred_check
            _
          $region110: #{up_forward.6} parent=107 // pred_check_branch
            %389 = sbr.rel (0) target = $region112
          $region111: #{up_forward.6} parent=107 // pred_region
            // Predicated region
            $region113: #{up_forward.6} parent=111 // pred_check
              _
            $region114: #{up_forward.6} parent=111 // pred_check_branch
              %391 = sbr.rel (0) target = $region116
            $region115: #{up_forward.6} parent=111 // pred_region
              // Predicated region
              $region128: #{up_forward.6} parent=115 // pred_check
                _
              $region129: #{up_forward.6} parent=115 // pred_check_branch
                %413 = sbr.rel (0) target = $region131
              $region130: #{up_forward.6} parent=115 // pred_region
                loop: start=0, step=1, limit=1
                $region132: #{up_forward.6} parent=130 // loop_pre_header
                  _
                $region133: #{up_forward.6} parent=130 // loop_header
                  %s415 = sphi 0, %s419
                  %p416 = scmp.ge.s32.totalorder %s415, 1
                  %s420 = sphi %s387, %s387
                  %s421 = sphi %s383, %s383
                $region134: #{up_forward.6} parent=130 // loop_header_branch
                  %418 = sbr.rel (%p416) target = $region138
                $region135: #{up_forward.6} parent=130 // loop_body
                  %v422 = vld [vmem:[%s420] sm:$0xff]
                  %423 = vst [vmem:[%s421] sm:$0xff] %v422
                  %v424 = vld [vmem:[%s420 + $0x8] sm:$0xff]
                  %425 = vst [vmem:[%s421 + $0x8] sm:$0xff] %v424
                  %v426 = vld [vmem:[%s420 + $0xe0] sm:$0xff]
                  %427 = vst [vmem:[%s421 + $0x10] sm:$0xff] %v426
                  %v428 = vld [vmem:[%s420 + $0xe8] sm:$0xff]
                  %429 = vst [vmem:[%s421 + $0x18] sm:$0xff] %v428
                $region136: #{up_forward.6} parent=130 // loop_footer
                  %s419 = sadd.s32 1, %s415
                $region137: #{up_forward.6} parent=130 // loop_footer_branch
                  %414 = sbr.rel target = $region133
                $region138: #{up_forward.6} parent=130 // loop_exit
                  _
              $region131: #{up_forward.6} parent=115 // pred_fallthru
                _
              // Predicated region
              $region139: #{up_forward.6} parent=115 // pred_check
                _
              $region140: #{up_forward.6} parent=115 // pred_check_branch
                %431 = sbr.rel target = $region142
              $region141: #{up_forward.6} parent=115 // pred_region
                _
              $region142: #{up_forward.6} parent=115 // pred_fallthru
                _
            $region116: #{up_forward.6} parent=111 // pred_fallthru
              _
            // Predicated region
            $region117: #{up_forward.6} parent=111 // pred_check
              _
            $region118: #{up_forward.6} parent=111 // pred_check_branch
              %393 = sbr.rel target = $region120
            $region119: #{up_forward.6} parent=111 // pred_region
              %s395 = ssub.s32 256, 1
              loop: start=0, step=1, limit=1
              $region121: #{up_forward.6} parent=119 // loop_pre_header
                _
              $region122: #{up_forward.6} parent=119 // loop_header
                %s397 = sphi 0, %s401
                %p398 = scmp.ge.s32.totalorder %s397, 1
                %s402 = sphi %s387, %s387
                %s403 = sphi %s383, %s383
              $region123: #{up_forward.6} parent=119 // loop_header_branch
                %400 = sbr.rel (%p398) target = $region127
              $region124: #{up_forward.6} parent=119 // loop_body
                %v404 = vld [vmem:[%s402] sm:%s395]
                %405 = vst [vmem:[%s403] sm:%s395] %v404
                %v406 = vld [vmem:[%s402 + $0x8] sm:%s395]
                %407 = vst [vmem:[%s403 + $0x8] sm:%s395] %v406
                %v408 = vld [vmem:[%s402 + $0xe0] sm:%s395]
                %409 = vst [vmem:[%s403 + $0x10] sm:%s395] %v408
                %v410 = vld [vmem:[%s402 + $0xe8] sm:%s395]
                %411 = vst [vmem:[%s403 + $0x18] sm:%s395] %v410
              $region125: #{up_forward.6} parent=119 // loop_footer
                %s401 = sadd.s32 1, %s397
              $region126: #{up_forward.6} parent=119 // loop_footer_branch
                %396 = sbr.rel target = $region122
              $region127: #{up_forward.6} parent=119 // loop_exit
                _
            $region120: #{up_forward.6} parent=111 // pred_fallthru
              _
          $region112: #{up_forward.6} parent=107 // pred_fallthru
            _
          %432 = vnop
        $region108: #{up_forward.6} parent=27 // pred_fallthru
          _
      $region28: #{up_forward.6} parent=5 // pred_fallthru
        _
      %p433 = scmp.le.s32.totalorder 1, %s15
      %p434 = scmp.lt.s32.totalorder %s15, 13
      %p435 = pnand %p433, %p434
      %p436 = pneg %p435
      // Predicated region
      $region143: #{up_forward.6} parent=5 // pred_check
        _
      $region144: #{up_forward.6} parent=5 // pred_check_branch
        %438 = sbr.rel (%p435) target = $region146
      $region145: #{up_forward.6} parent=5 // pred_region
        %s439 = ssub.s32 %s15, 1
        %s440 = sand.u32 %s28, 1
        %s441 = sand.u32 %s28, 1
        %s442 = smul.addr %s441, 32
        %s443 = scalar_lea.vmem [#allocation2], %s442
        // Predicated region
        $region147: #{up_forward.6} parent=145 // pred_check
          %p444 = pneg %p41
        $region148: #{up_forward.6} parent=145 // pred_check_branch
          %446 = sbr.rel (%p444) target = $region150
        $region149: #{up_forward.6} parent=145 // pred_region
          _
        $region150: #{up_forward.6} parent=145 // pred_fallthru
          _
        %s447 = sand.u32 %s56, 1
        %s448 = sand.u32 %s56, 1
        %s449 = smul.addr %s448, 32
        %s450 = scalar_lea.vmem [#allocation3], %s449
        // Predicated region
        $region151: #{up_forward.6} parent=145 // pred_check
          %p451 = pneg %p69
        $region152: #{up_forward.6} parent=145 // pred_check_branch
          %453 = sbr.rel (%p451) target = $region154
        $region153: #{up_forward.6} parent=145 // pred_region
          _
        $region154: #{up_forward.6} parent=145 // pred_fallthru
          _
        %s454 = sand.u32 %s84, 1
        %s455 = sand.u32 %s84, 1
        %s456 = smul.addr %s455, 32
        %s457 = scalar_lea.vmem [#allocation4], %s456
        // Predicated region
        $region155: #{up_forward.6} parent=145 // pred_check
          %p458 = pneg %p97
        $region156: #{up_forward.6} parent=145 // pred_check_branch
          %460 = sbr.rel (%p458) target = $region158
        $region157: #{up_forward.6} parent=145 // pred_region
          _
        $region158: #{up_forward.6} parent=145 // pred_fallthru
          _
        %s461 = sand.u32 %s28, 1
        %s462 = sand.u32 %s28, 1
        %s463 = smul.addr %s462, 32
        %s464 = scalar_lea.vmem [#allocation2], %s463
        %p465 = pneg %p41
        %p466 = pneg %p38
        %s467 = sand.u32 %s56, 1
        %s468 = sand.u32 %s56, 1
        %s469 = smul.addr %s468, 32
        %s470 = scalar_lea.vmem [#allocation3], %s469
        %p471 = pneg %p69
        %p472 = pneg %p66
        %s473 = sand.u32 %s84, 1
        %s474 = sand.u32 %s84, 1
        %s475 = smul.addr %s474, 32
        %s476 = scalar_lea.vmem [#allocation4], %s475
        %p477 = pneg %p97
        %p478 = pneg %p94
        %p479 = pneg %p118
        %p480 = pneg %p115
        %p481 = pneg %p139
        %p482 = pneg %p136
        %p483 = pneg %p160
        %p484 = pneg %p157
        %p485 = pneg %p186
        %p486 = pneg %p183
        %s487 = sand.u32 %s173, 1
        %s488 = sand.u32 %s173, 1
        %s489 = smul.addr %s488, 32
        %s490 = scalar_lea.vmem [#allocation5], %s489
        %p491 = pneg %p212
        %p492 = pneg %p209
        %p493 = scmp.lt.s32.totalorder %s20, 11
        %s494 = scalar_select %p493, %s20, 11
        %s495 = scalar_lea.vmem %s7, %s494
        %p496 = pneg %p238
        %p497 = pneg %p235
        %p498 = scmp.lt.s32.totalorder %s20, 11
        %s499 = scalar_select %p498, %s20, 11
        %s500 = scalar_lea.vmem %s8, %s499
        %s501 = sadd.s32 %s20, 1
        %s502 = sadd.s32 %s20, 2
        %p503 = scmp.lt.s32.totalorder %s20, 11
        %s504 = scalar_select %p503, %s20, 11
        %s505 = scalar_lea.vmem %s7, %s504
        %p506 = scmp.lt.s32.totalorder %s20, 11
        %s507 = scalar_select %p506, %s20, 11
        %s508 = scalar_lea.vmem %s8, %s507
        %v510 = vld [vmem:[%s5] sm:$0x3]
        %v511 = vld [vmem:[%s5 + $0x2] sm:$0x3]
        %v512 = vld [vmem:[%s5 + $0x4] sm:$0x3]
        %v513 = vld [vmem:[%s5 + $0x6] sm:$0x3]
        %v514 = vld [vmem:[%s5 + $0x8] sm:$0x3]
        %v515 = vld [vmem:[%s5 + $0xa] sm:$0x3]
        %v516 = vld [vmem:[%s5 + $0xc] sm:$0x3]
        %v517 = vld [vmem:[%s5 + $0xe] sm:$0x3]
        %v518 = vld [vmem:[%s5 + $0x10] sm:$0x3]
        %v519 = vld [vmem:[%s3] sm:$0x1]
        %v520 = vld [vmem:[%s4] sm:$0x1]
        %v521 = vld [vmem:[%s443] sm:$0xff]
        %v522 = vld [vmem:[%s443 + $0x8] sm:$0x3f]
        %v523 = vld [vmem:[%s443 + $0x10] sm:$0xff]
        %v524 = vld [vmem:[%s443 + $0x18] sm:$0x3f]
        %v525 = vld [vmem:[%s450] sm:$0xff]
        %v526 = vld [vmem:[%s450 + $0x8] sm:$0x3f]
        %v527 = vld [vmem:[%s450 + $0x10] sm:$0xff]
        %v528 = vld [vmem:[%s450 + $0x18] sm:$0x3f]
        %v529 = vld [vmem:[%s457] sm:$0xff]
        %v530 = vld [vmem:[%s457 + $0x8] sm:$0x3f]
        %v531 = vld [vmem:[%s457 + $0x10] sm:$0xff]
        %v532 = vld [vmem:[%s457 + $0x18] sm:$0x3f]
        %v534 = vperm.slane %v519, 0
        %v536 = vmul.f32 %v521, %v534
        %v537 = vmul.f32 %v522, %v534
        %v538 = vmul.f32 %v523, %v534
        %v539 = vmul.f32 %v524, %v534
        %v541 = vperm.slane %v520, 0
        %v543 = vadd.f32 %v536, %v541
        %v544 = vadd.f32 %v537, %v541
        %v545 = vadd.f32 %v538, %v541
        %v546 = vadd.f32 %v539, %v541
        %v547 = vmax.f32 %v543, 0.0
        %v548 = vmax.f32 %v544, 0.0
        %v549 = vmax.f32 %v545, 0.0
        %v550 = vmax.f32 %v546, 0.0
        %v551 = vpack.c.bf16 %v547, %v547
        %v552 = vpack.c.bf16 %v548, %v548
        %v553 = vpack.c.bf16 %v549, %v549
        %v554 = vpack.c.bf16 %v550, %v550
        %v557 = vunpack.c.l.b16 %v551
        %v558 = vunpack.c.l.b16 %v552
        %v559 = vpack.c.b16 %v558, %v557
        %v561 = vshrl.u32 %v559, 16
        %v563 = vshll.u32 %v559, 16
        %v565 = vrot.slane %v563, 1
        %v566 = vor.u32 %v561, %v565
        %vm567 = vcmask 31744
        %v569 = vsel %vm567, %v566, 0
        %vm571 = vcmask 1041408
        %v573 = vsel %vm571, %v511, 0
        %575 = vmatpush.bf16.msra.mxu0 0
        %576 = vmatpush.bf16.msra.mxu0 0
        %577 = vmatpush.bf16.msra.mxu0 0
        %578 = vmatpush.bf16.msra.mxu0 0
        %579 = vmatpush.bf16.msra.mxu0 0
        %580 = vmatpush.bf16.msra.mxu0 0
        %581 = vmatpush.bf16.msra.mxu0 0
        %582 = vmatpush.bf16.msra.mxu0 %v573
        %583 = vmatmul.bf16.gmra.mxu0 %v569
        %v584 = vpop.f32.mrf.mxu0
        %v585 = vadd.f32 0.0, %v584
        %v586 = vpop.f32.mrf.mxu0
        %v587 = vadd.f32 0.0, %v586
        %588 = vdwg.mxu0
        %v589 = vsel %vm567, %v559, 0
        %v592 = vsel %vm571, %v510, 0
        %594 = vmatpush.bf16.msra.mxu0 0
        %595 = vmatpush.bf16.msra.mxu0 0
        %596 = vmatpush.bf16.msra.mxu0 0
        %597 = vmatpush.bf16.msra.mxu0 0
        %598 = vmatpush.bf16.msra.mxu0 0
        %599 = vmatpush.bf16.msra.mxu0 0
        %600 = vmatpush.bf16.msra.mxu0 0
        %601 = vmatpush.bf16.msra.mxu0 %v592
        %602 = vmatmul.bf16.gmra.mxu0 %v589
        %v603 = vpop.f32.mrf.mxu0
        %v604 = vadd.f32 %v585, %v603
        %v605 = vpop.f32.mrf.mxu0
        %v606 = vadd.f32 %v587, %v605
        %607 = vdwg.mxu0
        %v608 = vrot.slane %v559, 1
        %v610 = vsel %vm567, %v608, 0
        %v613 = vsel %vm571, %v512, 0
        %615 = vmatpush.bf16.msra.mxu0 0
        %616 = vmatpush.bf16.msra.mxu0 0
        %617 = vmatpush.bf16.msra.mxu0 0
        %618 = vmatpush.bf16.msra.mxu0 0
        %619 = vmatpush.bf16.msra.mxu0 0
        %620 = vmatpush.bf16.msra.mxu0 0
        %621 = vmatpush.bf16.msra.mxu0 0
        %622 = vmatpush.bf16.msra.mxu0 %v613
        %623 = vmatmul.bf16.gmra.mxu0 %v610
        %v624 = vpop.f32.mrf.mxu0
        %v625 = vadd.f32 0.0, %v624
        %v626 = vpop.f32.mrf.mxu0
        %v627 = vadd.f32 0.0, %v626
        %628 = vdwg.mxu0
        %v629 = vadd.f32 %v604, %v625
        %v630 = vadd.f32 %v606, %v627
        %v633 = vunpack.c.l.b16 %v553
        %v634 = vunpack.c.l.b16 %v554
        %v635 = vpack.c.b16 %v634, %v633
        %v637 = vshrl.u32 %v635, 16
        %v639 = vshll.u32 %v635, 16
        %v641 = vrot.slane %v639, 1
        %v642 = vor.u32 %v637, %v641
        %v644 = vsel %vm567, %v642, 0
        %646 = vmatpush.bf16.msra.mxu0 0
        %647 = vmatpush.bf16.msra.mxu0 0
        %648 = vmatpush.bf16.msra.mxu0 0
        %649 = vmatpush.bf16.msra.mxu0 0
        %650 = vmatpush.bf16.msra.mxu0 0
        %651 = vmatpush.bf16.msra.mxu0 0
        %652 = vmatpush.bf16.msra.mxu0 0
        %653 = vmatpush.bf16.msra.mxu0 %v573
        %654 = vmatmul.bf16.gmra.mxu0 %v644
        %v655 = vpop.f32.mrf.mxu0
        %v656 = vadd.f32 0.0, %v655
        %v657 = vpop.f32.mrf.mxu0
        %v658 = vadd.f32 0.0, %v657
        %659 = vdwg.mxu0
        %v660 = vsel %vm567, %v635, 0
        %662 = vmatpush.bf16.msra.mxu0 0
        %663 = vmatpush.bf16.msra.mxu0 0
        %664 = vmatpush.bf16.msra.mxu0 0
        %665 = vmatpush.bf16.msra.mxu0 0
        %666 = vmatpush.bf16.msra.mxu0 0
        %667 = vmatpush.bf16.msra.mxu0 0
        %668 = vmatpush.bf16.msra.mxu0 0
        %669 = vmatpush.bf16.msra.mxu0 %v592
        %670 = vmatmul.bf16.gmra.mxu0 %v660
        %v671 = vpop.f32.mrf.mxu0
        %v672 = vadd.f32 %v656, %v671
        %v673 = vpop.f32.mrf.mxu0
        %v674 = vadd.f32 %v658, %v673
        %675 = vdwg.mxu0
        %v676 = vrot.slane %v635, 1
        %v678 = vsel %vm567, %v676, 0
        %680 = vmatpush.bf16.msra.mxu0 0
        %681 = vmatpush.bf16.msra.mxu0 0
        %682 = vmatpush.bf16.msra.mxu0 0
        %683 = vmatpush.bf16.msra.mxu0 0
        %684 = vmatpush.bf16.msra.mxu0 0
        %685 = vmatpush.bf16.msra.mxu0 0
        %686 = vmatpush.bf16.msra.mxu0 0
        %687 = vmatpush.bf16.msra.mxu0 %v613
        %688 = vmatmul.bf16.gmra.mxu0 %v678
        %v689 = vpop.f32.mrf.mxu0
        %v690 = vadd.f32 0.0, %v689
        %v691 = vpop.f32.mrf.mxu0
        %v692 = vadd.f32 0.0, %v691
        %693 = vdwg.mxu0
        %v694 = vadd.f32 %v672, %v690
        %v695 = vadd.f32 %v674, %v692
        %v696 = vmul.f32 %v525, %v534
        %v697 = vmul.f32 %v526, %v534
        %v698 = vmul.f32 %v527, %v534
        %v699 = vmul.f32 %v528, %v534
        %v700 = vadd.f32 %v696, %v541
        %v701 = vadd.f32 %v697, %v541
        %v702 = vadd.f32 %v698, %v541
        %v703 = vadd.f32 %v699, %v541
        %v704 = vmax.f32 %v700, 0.0
        %v705 = vmax.f32 %v701, 0.0
        %v706 = vmax.f32 %v702, 0.0
        %v707 = vmax.f32 %v703, 0.0
        %v708 = vpack.c.bf16 %v704, %v704
        %v709 = vpack.c.bf16 %v705, %v705
        %v710 = vpack.c.bf16 %v706, %v706
        %v711 = vpack.c.bf16 %v707, %v707
        %v714 = vunpack.c.l.b16 %v708
        %v715 = vunpack.c.l.b16 %v709
        %v716 = vpack.c.b16 %v715, %v714
        %v718 = vsel %vm567, %v716, 0
        %v721 = vsel %vm571, %v513, 0
        %723 = vmatpush.bf16.msra.mxu0 0
        %724 = vmatpush.bf16.msra.mxu0 0
        %725 = vmatpush.bf16.msra.mxu0 0
        %726 = vmatpush.bf16.msra.mxu0 0
        %727 = vmatpush.bf16.msra.mxu0 0
        %728 = vmatpush.bf16.msra.mxu0 0
        %729 = vmatpush.bf16.msra.mxu0 0
        %730 = vmatpush.bf16.msra.mxu0 %v721
        %731 = vmatmul.bf16.gmra.mxu0 %v718
        %v732 = vpop.f32.mrf.mxu0
        %v733 = vadd.f32 0.0, %v732
        %v734 = vpop.f32.mrf.mxu0
        %v735 = vadd.f32 0.0, %v734
        %736 = vdwg.mxu0
        %v737 = vadd.f32 %v629, %v733
        %v738 = vadd.f32 %v630, %v735
        %v739 = vshrl.u32 %v716, 16
        %v741 = vshll.u32 %v716, 16
        %v743 = vrot.slane %v741, 1
        %v744 = vor.u32 %v739, %v743
        %v746 = vsel %vm567, %v744, 0
        %v749 = vsel %vm571, %v514, 0
        %751 = vmatpush.bf16.msra.mxu0 0
        %752 = vmatpush.bf16.msra.mxu0 0
        %753 = vmatpush.bf16.msra.mxu0 0
        %754 = vmatpush.bf16.msra.mxu0 0
        %755 = vmatpush.bf16.msra.mxu0 0
        %756 = vmatpush.bf16.msra.mxu0 0
        %757 = vmatpush.bf16.msra.mxu0 0
        %758 = vmatpush.bf16.msra.mxu0 %v749
        %759 = vmatmul.bf16.gmra.mxu0 %v746
        %v760 = vpop.f32.mrf.mxu0
        %v761 = vadd.f32 0.0, %v760
        %v762 = vpop.f32.mrf.mxu0
        %v763 = vadd.f32 0.0, %v762
        %764 = vdwg.mxu0
        %v765 = vadd.f32 %v737, %v761
        %v766 = vadd.f32 %v738, %v763
        %v767 = vrot.slane %v716, 1
        %v769 = vsel %vm567, %v767, 0
        %v772 = vsel %vm571, %v515, 0
        %774 = vmatpush.bf16.msra.mxu0 0
        %775 = vmatpush.bf16.msra.mxu0 0
        %776 = vmatpush.bf16.msra.mxu0 0
        %777 = vmatpush.bf16.msra.mxu0 0
        %778 = vmatpush.bf16.msra.mxu0 0
        %779 = vmatpush.bf16.msra.mxu0 0
        %780 = vmatpush.bf16.msra.mxu0 0
        %781 = vmatpush.bf16.msra.mxu0 %v772
        %782 = vmatmul.bf16.gmra.mxu0 %v769
        %v783 = vpop.f32.mrf.mxu0
        %v784 = vadd.f32 0.0, %v783
        %v785 = vpop.f32.mrf.mxu0
        %v786 = vadd.f32 0.0, %v785
        %787 = vdwg.mxu0
        %v788 = vadd.f32 %v765, %v784
        %v789 = vadd.f32 %v766, %v786
        %v792 = vunpack.c.l.b16 %v710
        %v793 = vunpack.c.l.b16 %v711
        %v794 = vpack.c.b16 %v793, %v792
        %v796 = vsel %vm567, %v794, 0
        %798 = vmatpush.bf16.msra.mxu0 0
        %799 = vmatpush.bf16.msra.mxu0 0
        %800 = vmatpush.bf16.msra.mxu0 0
        %801 = vmatpush.bf16.msra.mxu0 0
        %802 = vmatpush.bf16.msra.mxu0 0
        %803 = vmatpush.bf16.msra.mxu0 0
        %804 = vmatpush.bf16.msra.mxu0 0
        %805 = vmatpush.bf16.msra.mxu0 %v721
        %806 = vmatmul.bf16.gmra.mxu0 %v796
        %v807 = vpop.f32.mrf.mxu0
        %v808 = vadd.f32 0.0, %v807
        %v809 = vpop.f32.mrf.mxu0
        %v810 = vadd.f32 0.0, %v809
        %811 = vdwg.mxu0
        %v812 = vadd.f32 %v694, %v808
        %v813 = vadd.f32 %v695, %v810
        %v814 = vshrl.u32 %v794, 16
        %v816 = vshll.u32 %v794, 16
        %v818 = vrot.slane %v816, 1
        %v819 = vor.u32 %v814, %v818
        %v821 = vsel %vm567, %v819, 0
        %823 = vmatpush.bf16.msra.mxu0 0
        %824 = vmatpush.bf16.msra.mxu0 0
        %825 = vmatpush.bf16.msra.mxu0 0
        %826 = vmatpush.bf16.msra.mxu0 0
        %827 = vmatpush.bf16.msra.mxu0 0
        %828 = vmatpush.bf16.msra.mxu0 0
        %829 = vmatpush.bf16.msra.mxu0 0
        %830 = vmatpush.bf16.msra.mxu0 %v749
        %831 = vmatmul.bf16.gmra.mxu0 %v821
        %v832 = vpop.f32.mrf.mxu0
        %v833 = vadd.f32 0.0, %v832
        %v834 = vpop.f32.mrf.mxu0
        %v835 = vadd.f32 0.0, %v834
        %836 = vdwg.mxu0
        %v837 = vadd.f32 %v812, %v833
        %v838 = vadd.f32 %v813, %v835
        %v839 = vrot.slane %v794, 1
        %v841 = vsel %vm567, %v839, 0
        %843 = vmatpush.bf16.msra.mxu0 0
        %844 = vmatpush.bf16.msra.mxu0 0
        %845 = vmatpush.bf16.msra.mxu0 0
        %846 = vmatpush.bf16.msra.mxu0 0
        %847 = vmatpush.bf16.msra.mxu0 0
        %848 = vmatpush.bf16.msra.mxu0 0
        %849 = vmatpush.bf16.msra.mxu0 0
        %850 = vmatpush.bf16.msra.mxu0 %v772
        %851 = vmatmul.bf16.gmra.mxu0 %v841
        %v852 = vpop.f32.mrf.mxu0
        %v853 = vadd.f32 0.0, %v852
        %v854 = vpop.f32.mrf.mxu0
        %v855 = vadd.f32 0.0, %v854
        %856 = vdwg.mxu0
        %v857 = vadd.f32 %v837, %v853
        %v858 = vadd.f32 %v838, %v855
        %v859 = vmul.f32 %v529, %v534
        %v860 = vmul.f32 %v530, %v534
        %v861 = vmul.f32 %v531, %v534
        %v862 = vmul.f32 %v532, %v534
        %v863 = vadd.f32 %v859, %v541
        %v864 = vadd.f32 %v860, %v541
        %v865 = vadd.f32 %v861, %v541
        %v866 = vadd.f32 %v862, %v541
        %v867 = vmax.f32 %v863, 0.0
        %v868 = vmax.f32 %v864, 0.0
        %v869 = vmax.f32 %v865, 0.0
        %v870 = vmax.f32 %v866, 0.0
        %v871 = vpack.c.bf16 %v867, %v867
        %v872 = vpack.c.bf16 %v868, %v868
        %v873 = vpack.c.bf16 %v869, %v869
        %v874 = vpack.c.bf16 %v870, %v870
        %v877 = vunpack.c.l.b16 %v871
        %v878 = vunpack.c.l.b16 %v872
        %v879 = vpack.c.b16 %v878, %v877
        %v881 = vsel %vm567, %v879, 0
        %v884 = vsel %vm571, %v516, 0
        %886 = vmatpush.bf16.msra.mxu0 0
        %887 = vmatpush.bf16.msra.mxu0 0
        %888 = vmatpush.bf16.msra.mxu0 0
        %889 = vmatpush.bf16.msra.mxu0 0
        %890 = vmatpush.bf16.msra.mxu0 0
        %891 = vmatpush.bf16.msra.mxu0 0
        %892 = vmatpush.bf16.msra.mxu0 0
        %893 = vmatpush.bf16.msra.mxu0 %v884
        %894 = vmatmul.bf16.gmra.mxu0 %v881
        %v895 = vpop.f32.mrf.mxu0
        %v896 = vadd.f32 0.0, %v895
        %v897 = vpop.f32.mrf.mxu0
        %v898 = vadd.f32 0.0, %v897
        %899 = vdwg.mxu0
        %v900 = vadd.f32 %v788, %v896
        %v901 = vadd.f32 %v789, %v898
        %v902 = vshrl.u32 %v879, 16
        %v904 = vshll.u32 %v879, 16
        %v906 = vrot.slane %v904, 1
        %v907 = vor.u32 %v902, %v906
        %v909 = vsel %vm567, %v907, 0
        %v912 = vsel %vm571, %v517, 0
        %914 = vmatpush.bf16.msra.mxu0 0
        %915 = vmatpush.bf16.msra.mxu0 0
        %916 = vmatpush.bf16.msra.mxu0 0
        %917 = vmatpush.bf16.msra.mxu0 0
        %918 = vmatpush.bf16.msra.mxu0 0
        %919 = vmatpush.bf16.msra.mxu0 0
        %920 = vmatpush.bf16.msra.mxu0 0
        %921 = vmatpush.bf16.msra.mxu0 %v912
        %922 = vmatmul.bf16.gmra.mxu0 %v909
        %v923 = vpop.f32.mrf.mxu0
        %v924 = vadd.f32 0.0, %v923
        %v925 = vpop.f32.mrf.mxu0
        %v926 = vadd.f32 0.0, %v925
        %927 = vdwg.mxu0
        %v928 = vadd.f32 %v900, %v924
        %v929 = vadd.f32 %v901, %v926
        %v930 = vrot.slane %v879, 1
        %v932 = vsel %vm567, %v930, 0
        %v935 = vsel %vm571, %v518, 0
        %937 = vmatpush.bf16.msra.mxu0 0
        %938 = vmatpush.bf16.msra.mxu0 0
        %939 = vmatpush.bf16.msra.mxu0 0
        %940 = vmatpush.bf16.msra.mxu0 0
        %941 = vmatpush.bf16.msra.mxu0 0
        %942 = vmatpush.bf16.msra.mxu0 0
        %943 = vmatpush.bf16.msra.mxu0 0
        %944 = vmatpush.bf16.msra.mxu0 %v935
        %945 = vmatmul.bf16.gmra.mxu0 %v932
        %v946 = vpop.f32.mrf.mxu0
        %v947 = vadd.f32 0.0, %v946
        %v948 = vpop.f32.mrf.mxu0
        %v949 = vadd.f32 0.0, %v948
        %950 = vdwg.mxu0
        %v951 = vadd.f32 %v928, %v947
        %v952 = vadd.f32 %v929, %v949
        %v955 = vunpack.c.l.b16 %v873
        %v956 = vunpack.c.l.b16 %v874
        %v957 = vpack.c.b16 %v956, %v955
        %v959 = vsel %vm567, %v957, 0
        %961 = vmatpush.bf16.msra.mxu0 0
        %962 = vmatpush.bf16.msra.mxu0 0
        %963 = vmatpush.bf16.msra.mxu0 0
        %964 = vmatpush.bf16.msra.mxu0 0
        %965 = vmatpush.bf16.msra.mxu0 0
        %966 = vmatpush.bf16.msra.mxu0 0
        %967 = vmatpush.bf16.msra.mxu0 0
        %968 = vmatpush.bf16.msra.mxu0 %v884
        %969 = vmatmul.bf16.gmra.mxu0 %v959
        %v970 = vpop.f32.mrf.mxu0
        %v971 = vadd.f32 0.0, %v970
        %v972 = vpop.f32.mrf.mxu0
        %v973 = vadd.f32 0.0, %v972
        %974 = vdwg.mxu0
        %v975 = vadd.f32 %v857, %v971
        %v976 = vadd.f32 %v858, %v973
        %v977 = vshrl.u32 %v957, 16
        %v979 = vshll.u32 %v957, 16
        %v981 = vrot.slane %v979, 1
        %v982 = vor.u32 %v977, %v981
        %v984 = vsel %vm567, %v982, 0
        %986 = vmatpush.bf16.msra.mxu0 0
        %987 = vmatpush.bf16.msra.mxu0 0
        %988 = vmatpush.bf16.msra.mxu0 0
        %989 = vmatpush.bf16.msra.mxu0 0
        %990 = vmatpush.bf16.msra.mxu0 0
        %991 = vmatpush.bf16.msra.mxu0 0
        %992 = vmatpush.bf16.msra.mxu0 0
        %993 = vmatpush.bf16.msra.mxu0 %v912
        %994 = vmatmul.bf16.gmra.mxu0 %v984
        %v995 = vpop.f32.mrf.mxu0
        %v996 = vadd.f32 0.0, %v995
        %v997 = vpop.f32.mrf.mxu0
        %v998 = vadd.f32 0.0, %v997
        %999 = vdwg.mxu0
        %v1000 = vadd.f32 %v975, %v996
        %v1001 = vadd.f32 %v976, %v998
        %v1002 = vrot.slane %v957, 1
        %v1004 = vsel %vm567, %v1002, 0
        %1006 = vmatpush.bf16.msra.mxu0 0
        %1007 = vmatpush.bf16.msra.mxu0 0
        %1008 = vmatpush.bf16.msra.mxu0 0
        %1009 = vmatpush.bf16.msra.mxu0 0
        %1010 = vmatpush.bf16.msra.mxu0 0
        %1011 = vmatpush.bf16.msra.mxu0 0
        %1012 = vmatpush.bf16.msra.mxu0 0
        %1013 = vmatpush.bf16.msra.mxu0 %v935
        %1014 = vmatmul.bf16.gmra.mxu0 %v1004
        %v1015 = vpop.f32.mrf.mxu0
        %v1016 = vadd.f32 0.0, %v1015
        %v1017 = vpop.f32.mrf.mxu0
        %v1018 = vadd.f32 0.0, %v1017
        %1019 = vdwg.mxu0
        %v1020 = vadd.f32 %v1000, %v1016
        %v1021 = vadd.f32 %v1001, %v1018
        %1022 = vst.msk [vmem:[%s490] sm:$0xff] %vm567, %v951
        %vm1023 = vcmask 27648
        %1024 = vst.msk [vmem:[%s490 + $0x8] sm:$0xf] %vm1023, %v952
        %1025 = vst.msk [vmem:[%s490 + $0x10] sm:$0xff] %vm567, %v1020
        %1026 = vst.msk [vmem:[%s490 + $0x18] sm:$0xf] %vm1023, %v1021
        %v1027 = vsel %vm567, %v951, 0.0
        %v1028 = vsel %vm1023, %v952, 0.0
        %v1029 = vadd.f32 %v1027, %v1028
        %v1030 = vsel %vm567, %v1020, 0.0
        %v1031 = vadd.f32 %v1029, %v1030
        %v1032 = vsel %vm1023, %v1021, 0.0
        %v1033 = vadd.f32 %v1031, %v1032
        %v1034 = vrot.slane %v1033, 4
        %v1035 = vadd.f32 %v1033, %v1034
        %v1036 = vrot.slane %v1035, 2
        %v1037 = vadd.f32 %v1035, %v1036
        %v1038 = vrot.slane %v1037, 1
        %v1039 = vadd.f32 %v1037, %v1038
        %vm1040 = vcmask 24576
        %1041 = vst.msk [vmem:[%s505] sm:$0x1] %vm1040, %v1039
        %v1042 = vmul.f32 %v951, %v951
        %v1043 = vmul.f32 %v952, %v952
        %v1044 = vmul.f32 %v1020, %v1020
        %v1045 = vmul.f32 %v1021, %v1021
        %v1046 = vsel %vm567, %v1042, 0.0
        %v1047 = vsel %vm1023, %v1043, 0.0
        %v1048 = vadd.f32 %v1046, %v1047
        %v1049 = vsel %vm567, %v1044, 0.0
        %v1050 = vadd.f32 %v1048, %v1049
        %v1051 = vsel %vm1023, %v1045, 0.0
        %v1052 = vadd.f32 %v1050, %v1051
        %v1053 = vrot.slane %v1052, 4
        %v1054 = vadd.f32 %v1052, %v1053
        %v1055 = vrot.slane %v1054, 2
        %v1056 = vadd.f32 %v1054, %v1055
        %v1057 = vrot.slane %v1056, 1
        %v1058 = vadd.f32 %v1056, %v1057
        %1059 = vst.msk [vmem:[%s508] sm:$0x1] %vm1040, %v1058
        %s1060 = sand.u32 %s173, 1
        %s1061 = sand.u32 %s173, 1
        %s1062 = smul.addr %s1061, 32
        %s1063 = scalar_lea.vmem [#allocation5], %s1062
        %p1064 = scmp.lt.s32.totalorder %s20, 11
        %s1065 = scalar_select %p1064, %s20, 11
        %s1066 = scalar_lea.vmem %s7, %s1065
        %p1067 = scmp.lt.s32.totalorder %s20, 11
        %s1068 = scalar_select %p1067, %s20, 11
        %s1069 = scalar_lea.vmem %s8, %s1068
        // Predicated region
        $region159: #{up_forward.6} parent=145 // pred_check
          %p1070 = pneg %p183
        $region160: #{up_forward.6} parent=145 // pred_check_branch
          %1072 = sbr.rel (%p1070) target = $region162
        $region161: #{up_forward.6} parent=145 // pred_region
          %s1073 = smul.addr %s20, 2
          %s1074 = smul.addr %s1073, 8
          %s1075 = scalar_lea.vmem %s6, %s1074
          // Predicated region
          $region163: #{up_forward.6} parent=161 // pred_check
            _
          $region164: #{up_forward.6} parent=161 // pred_check_branch
            %1077 = sbr.rel (0) target = $region166
          $region165: #{up_forward.6} parent=161 // pred_region
            // Predicated region
            $region167: #{up_forward.6} parent=165 // pred_check
              _
            $region168: #{up_forward.6} parent=165 // pred_check_branch
              %1079 = sbr.rel (0) target = $region170
            $region169: #{up_forward.6} parent=165 // pred_region
              // Predicated region
              $region182: #{up_forward.6} parent=169 // pred_check
                _
              $region183: #{up_forward.6} parent=169 // pred_check_branch
                %1101 = sbr.rel (0) target = $region185
              $region184: #{up_forward.6} parent=169 // pred_region
                loop: start=0, step=1, limit=1
                $region186: #{up_forward.6} parent=184 // loop_pre_header
                  _
                $region187: #{up_forward.6} parent=184 // loop_header
                  %s1103 = sphi 0, %s1107
                  %p1104 = scmp.ge.s32.totalorder %s1103, 1
                  %s1108 = sphi %s1063, %s1063
                  %s1109 = sphi %s1075, %s1075
                $region188: #{up_forward.6} parent=184 // loop_header_branch
                  %1106 = sbr.rel (%p1104) target = $region192
                $region189: #{up_forward.6} parent=184 // loop_body
                  %v1110 = vld [vmem:[%s1108] sm:$0xff]
                  %1111 = vst [vmem:[%s1109] sm:$0xff] %v1110
                  %v1112 = vld [vmem:[%s1108 + $0x8] sm:$0xff]
                  %1113 = vst [vmem:[%s1109 + $0x8] sm:$0xff] %v1112
                  %v1114 = vld [vmem:[%s1108 + $0x10] sm:$0xff]
                  %1115 = vst [vmem:[%s1109 + $0xc0] sm:$0xff] %v1114
                  %v1116 = vld [vmem:[%s1108 + $0x18] sm:$0xff]
                  %1117 = vst [vmem:[%s1109 + $0xc8] sm:$0xff] %v1116
                $region190: #{up_forward.6} parent=184 // loop_footer
                  %s1107 = sadd.s32 1, %s1103
                $region191: #{up_forward.6} parent=184 // loop_footer_branch
                  %1102 = sbr.rel target = $region187
                $region192: #{up_forward.6} parent=184 // loop_exit
                  _
              $region185: #{up_forward.6} parent=169 // pred_fallthru
                _
              // Predicated region
              $region193: #{up_forward.6} parent=169 // pred_check
                _
              $region194: #{up_forward.6} parent=169 // pred_check_branch
                %1119 = sbr.rel target = $region196
              $region195: #{up_forward.6} parent=169 // pred_region
                _
              $region196: #{up_forward.6} parent=169 // pred_fallthru
                _
            $region170: #{up_forward.6} parent=165 // pred_fallthru
              _
            // Predicated region
            $region171: #{up_forward.6} parent=165 // pred_check
              _
            $region172: #{up_forward.6} parent=165 // pred_check_branch
              %1081 = sbr.rel target = $region174
            $region173: #{up_forward.6} parent=165 // pred_region
              %s1083 = ssub.s32 256, 1
              loop: start=0, step=1, limit=1
              $region175: #{up_forward.6} parent=173 // loop_pre_header
                _
              $region176: #{up_forward.6} parent=173 // loop_header
                %s1085 = sphi 0, %s1089
                %p1086 = scmp.ge.s32.totalorder %s1085, 1
                %s1090 = sphi %s1063, %s1063
                %s1091 = sphi %s1075, %s1075
              $region177: #{up_forward.6} parent=173 // loop_header_branch
                %1088 = sbr.rel (%p1086) target = $region181
              $region178: #{up_forward.6} parent=173 // loop_body
                %v1092 = vld [vmem:[%s1090] sm:%s1083]
                %1093 = vst [vmem:[%s1091] sm:%s1083] %v1092
                %v1094 = vld [vmem:[%s1090 + $0x8] sm:%s1083]
                %1095 = vst [vmem:[%s1091 + $0x8] sm:%s1083] %v1094
                %v1096 = vld [vmem:[%s1090 + $0x10] sm:%s1083]
                %1097 = vst [vmem:[%s1091 + $0xc0] sm:%s1083] %v1096
                %v1098 = vld [vmem:[%s1090 + $0x18] sm:%s1083]
                %1099 = vst [vmem:[%s1091 + $0xc8] sm:%s1083] %v1098
              $region179: #{up_forward.6} parent=173 // loop_footer
                %s1089 = sadd.s32 1, %s1085
              $region180: #{up_forward.6} parent=173 // loop_footer_branch
                %1084 = sbr.rel target = $region176
              $region181: #{up_forward.6} parent=173 // loop_exit
                _
            $region174: #{up_forward.6} parent=165 // pred_fallthru
              _
          $region166: #{up_forward.6} parent=161 // pred_fallthru
            _
          %1120 = vnop
        $region162: #{up_forward.6} parent=145 // pred_fallthru
          _
        // Predicated region
        $region197: #{up_forward.6} parent=145 // pred_check
          %p1121 = pneg %p209
        $region198: #{up_forward.6} parent=145 // pred_check_branch
          %1123 = sbr.rel (%p1121) target = $region200
        $region199: #{up_forward.6} parent=145 // pred_region
          _
        $region200: #{up_forward.6} parent=145 // pred_fallthru
          _
        // Predicated region
        $region201: #{up_forward.6} parent=145 // pred_check
          %p1124 = pneg %p235
        $region202: #{up_forward.6} parent=145 // pred_check_branch
          %1126 = sbr.rel (%p1124) target = $region204
        $region203: #{up_forward.6} parent=145 // pred_region
          _
        $region204: #{up_forward.6} parent=145 // pred_fallthru
          _
      $region146: #{up_forward.6} parent=5 // pred_fallthru
        _
      %p1127 = scmp.le.s32.totalorder 2, %s15
      // Predicated region
      $region205: #{up_forward.6} parent=5 // pred_check
        %p1128 = pneg %p1127
      $region206: #{up_forward.6} parent=5 // pred_check_branch
        %1130 = sbr.rel (%p1128) target = $region208
      $region207: #{up_forward.6} parent=5 // pred_region
        %s1131 = ssub.s32 %s15, 2
        // Predicated region
        $region209: #{up_forward.6} parent=207 // pred_check
          %p1132 = pneg %p189
        $region210: #{up_forward.6} parent=207 // pred_check_branch
          %1134 = sbr.rel (%p1132) target = $region212
        $region211: #{up_forward.6} parent=207 // pred_region
          %s1135 = sand.u32 %s174, 1
          %s1136 = sand.u32 %s174, 1
          %s1137 = smul.addr %s1136, 32
          %s1138 = scalar_lea.vmem [#allocation5], %s1137
        $region212: #{up_forward.6} parent=207 // pred_fallthru
          _
        // Predicated region
        $region213: #{up_forward.6} parent=207 // pred_check
          %p1139 = pneg %p215
        $region214: #{up_forward.6} parent=207 // pred_check_branch
          %1141 = sbr.rel (%p1139) target = $region216
        $region215: #{up_forward.6} parent=207 // pred_region
          %p1142 = scmp.lt.s32.totalorder %s21, 11
          %s1143 = scalar_select %p1142, %s21, 11
          %s1144 = scalar_lea.vmem %s7, %s1143
        $region216: #{up_forward.6} parent=207 // pred_fallthru
          _
        // Predicated region
        $region217: #{up_forward.6} parent=207 // pred_check
          %p1145 = pneg %p241
        $region218: #{up_forward.6} parent=207 // pred_check_branch
          %1147 = sbr.rel (%p1145) target = $region220
        $region219: #{up_forward.6} parent=207 // pred_region
          %p1148 = scmp.lt.s32.totalorder %s21, 11
          %s1149 = scalar_select %p1148, %s21, 11
          %s1150 = scalar_lea.vmem %s8, %s1149
        $region220: #{up_forward.6} parent=207 // pred_fallthru
          _
      $region208: #{up_forward.6} parent=5 // pred_fallthru
        _
    $region6: #{up_forward.6} parent=1 // loop_footer
      %s19 = sadd.s32 1, %s15
    $region7: #{up_forward.6} parent=1 // loop_footer_branch
      %14 = sbr.rel target = $region3
    $region8: #{up_forward.6} parent=1 // loop_exit
      _

</llo_original>
